<compile_context>
chip_gen: v7x
topology: tpu7x:2x2x1
jax: 0.10.0
libtpu: 0.0.40
codegen_flags: <defaults>
</compile_context>

<pallas_src>
import jax
import jax.numpy as jnp
from jax.experimental import pallas as pl
from jax.experimental.pallas import tpu as pltpu

_BN_EPS = 1e-5
_LEAKY = 0.2
_VMEM_LIMIT = 32 * 1024 * 1024  # safe on v5e/v6e (128 MiB VMEM) and v7x (64 MiB VMEM)


# -----------------------------------------------------------------------------
# Kernel 1: ConvTranspose3d(Cin, Cin//2, kernel_size=2, stride=2)  (the upsample)
# k=2 / s=2 means no overlap: every input voxel produces a 2x2x2 output block, so the
# whole layer is a single (H*W, Cin) x (Cin, 8*Cu) matmul per (n, d) grid step, written
# tap-major along the lane axis; the wrapper de-interleaves the taps with XLA glue.
# -----------------------------------------------------------------------------
def _upsample_kernel(x_ref, w_ref, b_ref, o_ref):
    # x_ref: (1, 1, H*W, Cin) bf16; w_ref: (Cin, 8*Cu) bf16; b_ref: (1, 8*Cu) f32
    # o_ref: (1, 1, H*W, 8*Cu) bf16
    acc = jnp.dot(x_ref[0, 0], w_ref[...], preferred_element_type=jnp.float32)
    o_ref[0, 0] = (acc + b_ref[...]).astype(jnp.bfloat16)


def upsample2x(x_ndhwc, wt, bt):
    """ConvTranspose3d(Cin, Cu, k=2, s=2) with bias. Returns bf16 NDHWC."""
    n, d, h, w, cin = x_ndhwc.shape
    cu = wt.shape[1]
    hw = h * w
    x2d = x_ndhwc.astype(jnp.bfloat16).reshape(n, d, hw, cin)
    # PyTorch weight (Cin, Cu, 2, 2, 2) -> (Cin, 8 taps * Cu), tap-major, bf16.
    wcat = jnp.transpose(wt, (0, 2, 3, 4, 1)).reshape(cin, 8 * cu).astype(jnp.bfloat16)
    bcat = jnp.tile(bt, 8).reshape(1, 8 * cu).astype(jnp.float32)

    y8 = pl.pallas_call(
        _upsample_kernel,
        grid=(n, d),
        in_specs=[
            pl.BlockSpec((1, 1, hw, cin), lambda ni, di: (ni, di, 0, 0)),
            pl.BlockSpec((cin, 8 * cu), lambda ni, di: (0, 0)),
            pl.BlockSpec((1, 8 * cu), lambda ni, di: (0, 0)),
        ],
        out_specs=pl.BlockSpec((1, 1, hw, 8 * cu), lambda ni, di: (ni, di, 0, 0)),
        out_shape=jax.ShapeDtypeStruct((n, d, hw, 8 * cu), jnp.bfloat16),
        compiler_params=pltpu.CompilerParams(
            dimension_semantics=("parallel", "parallel"),
            vmem_limit_bytes=_VMEM_LIMIT),
    )(x2d, wcat, bcat)

    # De-interleave the 2x2x2 taps into the upsampled volume (pure XLA glue).
    y8 = y8.reshape(n, d, h, w, 2, 2, 2, cu)          # (n, d, h, w, kd, kh, kw, cu)
    y = jnp.transpose(y8, (0, 1, 4, 2, 5, 3, 6, 7)).reshape(n, 2 * d, 2 * h, 2 * w, cu)
    return y


# -----------------------------------------------------------------------------
# Kernel 2: Conv3d(k=3, p=1, s=1) + per-batch BatchNorm statistics (pass 1 of the BN).
# -----------------------------------------------------------------------------
def _make_conv_stats_kernel(h, w):
    wp = w + 2
    rows = h * wp  # "wide" output rows per depth slice (columns u>=w are garbage)

    def kernel(xm_ref, x0_ref, xp_ref, w_ref, y_ref, s1_ref, s2_ref):
        di = pl.program_id(1)

        def tap_sum(src_ref, kd):
            part = None
            for kh in range(3):
                for kw in range(3):
                    start = kh * wp + kw
                    lhs = src_ref[0, 0, start:start + rows, :]        # (rows, Cin) bf16
                    contrib = jnp.dot(lhs, w_ref[kd, kh, kw],
                                      preferred_element_type=jnp.float32)
                    part = contrib if part is None else part + contrib
            return part

        # Central depth tap (kd=1) always contributes; accumulate in the output block.
        y_ref[0, 0] = tap_sum(x0_ref, 1)

        # Depth zero-padding: skip the kd=0 / kd=2 taps at the volume boundaries.
        @pl.when(di > 0)
        def _():
            y_ref[0, 0] += tap_sum(xm_ref, 0)

        @pl.when(di < pl.num_programs(1) - 1)
        def _():
            y_ref[0, 0] += tap_sum(xp_ref, 2)

        acc = y_ref[0, 0]                      # wide conv output (f32), bias omitted

        # Mask the 2 garbage columns per width-row out of the BatchNorm statistics.
        col = jax.lax.broadcasted_iota(jnp.int32, (rows, 1), 0) % wp
        accv = jnp.where(col < w, acc, 0.0)

        @pl.when(di == 0)
        def _():
            s1_ref[...] = jnp.zeros_like(s1_ref)
            s2_ref[...] = jnp.zeros_like(s2_ref)

        s1_ref[...] += jnp.sum(accv, axis=0, keepdims=True)
        s2_ref[...] += jnp.sum(accv * accv, axis=0, keepdims=True)

    return kernel


# -----------------------------------------------------------------------------
# Kernel 3: BatchNorm normalize + LeakyReLU(0.2)  (pass 2 of the BN).
# -----------------------------------------------------------------------------
def _make_bn_lrelu_kernel(h, w, out_dtype):
    def kernel(y_ref, scale_ref, shift_ref, o_ref):
        # y_ref: (1, 1, H, W+2, C) wide conv output; o_ref: (1, 1, H, W, C)
        z = y_ref[0, 0, :, 0:w, :] * scale_ref[...] + shift_ref[...]
        o_ref[0, 0] = jnp.maximum(z, _LEAKY * z).astype(out_dtype)

    return kernel


def conv3x3_bn_lrelu(x_ndhwc, w_oidhw, gamma, beta, out_dtype):
    """One Conv3d(k=3,p=1,s=1) + BatchNorm3d(train) + LeakyReLU(0.2) layer."""
    n, d, h, w, cin = x_ndhwc.shape
    cout = w_oidhw.shape[0]
    hp, wp = h + 2, w + 2
    rows_out = h * wp
    rows_in = hp * wp + 8  # +8 tail rows so every tap's wide slice stays in bounds

    # HW zero-pad by 1, flatten (Hp, Wp) -> rows, pad the tail, cast to bf16 for the MXU.
    xpad = jnp.pad(x_ndhwc.astype(jnp.bfloat16),
                   ((0, 0), (0, 0), (1, 1), (1, 1), (0, 0)))
    x2d = jnp.pad(xpad.reshape(n, d, hp * wp, cin), ((0, 0), (0, 0), (0, 8), (0, 0)))

    # PyTorch weight (Cout, Cin, 3, 3, 3) -> (3, 3, 3, Cin, Cout), bf16.
    wmat = jnp.transpose(w_oidhw, (2, 3, 4, 1, 0)).astype(jnp.bfloat16)

    xspec = lambda imap: pl.BlockSpec((1, 1, rows_in, cin), imap)
    y_wide, s1, s2 = pl.pallas_call(
        _make_conv_stats_kernel(h, w),
        grid=(n, d),
        in_specs=[
            xspec(lambda ni, di: (ni, jnp.maximum(di - 1, 0), 0, 0)),      # depth tap kd=0
            xspec(lambda ni, di: (ni, di, 0, 0)),                          # depth tap kd=1
            xspec(lambda ni, di: (ni, jnp.minimum(di + 1, d - 1), 0, 0)),  # depth tap kd=2
            pl.BlockSpec((3, 3, 3, cin, cout), lambda ni, di: (0, 0, 0, 0, 0)),
        ],
        out_specs=[
            pl.BlockSpec((1, 1, rows_out, cout), lambda ni, di: (ni, di, 0, 0)),
            pl.BlockSpec((1, 8, cout), lambda ni, di: (ni, 0, 0)),   # per-batch stats
            pl.BlockSpec((1, 8, cout), lambda ni, di: (ni, 0, 0)),
        ],
        out_shape=[
            jax.ShapeDtypeStruct((n, d, rows_out, cout), jnp.float32),
            jax.ShapeDtypeStruct((n, 8, cout), jnp.float32),
            jax.ShapeDtypeStruct((n, 8, cout), jnp.float32),
        ],
        compiler_params=pltpu.CompilerParams(
            # stats only accumulate along depth -> batch axis can use both TCs on v7x
            dimension_semantics=("parallel", "arbitrary"),
            vmem_limit_bytes=_VMEM_LIMIT),
    )(x2d, x2d, x2d, wmat)

    # Per-channel BatchNorm affine (tiny scalar math; glue).
    m = n * d * h * w
    mean = jnp.sum(s1[:, 0, :], axis=0) / m
    var = jnp.maximum(jnp.sum(s2[:, 0, :], axis=0) / m - mean * mean, 0.0)  # biased var
    inv = jax.lax.rsqrt(var + _BN_EPS)
    scale = (gamma * inv).reshape(1, cout).astype(jnp.float32)
    shift = (beta - mean * gamma * inv).reshape(1, cout).astype(jnp.float32)

    y5 = y_wide.reshape(n, d, h, wp, cout)            # free reinterpretation
    out = pl.pallas_call(
        _make_bn_lrelu_kernel(h, w, out_dtype),
        grid=(n, d),
        in_specs=[
            pl.BlockSpec((1, 1, h, wp, cout), lambda ni, di: (ni, di, 0, 0, 0)),
            pl.BlockSpec((1, cout), lambda ni, di: (0, 0)),
            pl.BlockSpec((1, cout), lambda ni, di: (0, 0)),
        ],
        out_specs=pl.BlockSpec((1, 1, h, w, cout), lambda ni, di: (ni, di, 0, 0, 0)),
        out_shape=jax.ShapeDtypeStruct((n, d, h, w, cout), out_dtype),
        compiler_params=pltpu.CompilerParams(
            dimension_semantics=("parallel", "parallel"),
            vmem_limit_bytes=_VMEM_LIMIT),
    )(y5, scale, shift)
    return out


# -----------------------------------------------------------------------------
# UpBlock forward (gen_type=1, the default).
# -----------------------------------------------------------------------------
def up_block_forward(params, x_ncdhw, x_skip_ncdhw):
    x = jnp.transpose(x_ncdhw, (0, 2, 3, 4, 1))           # NCDHW -> NDHWC
    skip = jnp.transpose(x_skip_ncdhw, (0, 2, 3, 4, 1))

    up = upsample2x(x, params['wt'], params['bt'])         # (N, 2D, 2H, 2W, Cin//2) bf16

    # F.pad so the upsampled volume matches the skip connection's spatial size.
    dd = skip.shape[1] - up.shape[1]
    hh = skip.shape[2] - up.shape[2]
    ww = skip.shape[3] - up.shape[3]
    up = jnp.pad(up, ((0, 0), (dd // 2, dd - dd // 2), (hh // 2, hh - hh // 2),
                      (ww // 2, ww - ww // 2), (0, 0)))

    cat = jnp.concatenate([skip.astype(jnp.bfloat16), up], axis=-1)  # [x_skip, x] on C

    h1 = conv3x3_bn_lrelu(cat, params['w1'], params['g1'], params['be1'],
                          out_dtype=jnp.bfloat16)          # stays NDHWC bf16 between layers
    h2 = conv3x3_bn_lrelu(h1, params['w2'], params['g2'], params['be2'],
                          out_dtype=jnp.float32)
    return jnp.transpose(h2, (0, 4, 1, 2, 3))              # NDHWC -> NCDHW


def init_upblock_params(key, in_channels, out_channels):
    """Deterministic synthetic parameters with PyTorch-like shapes/scales."""
    cu = in_channels // 2
    k_up, k1, k2 = jax.random.split(key, 3)

    def _uniform(k, shape, bound):
        return jax.random.uniform(k, shape, jnp.float32, -bound, bound)

    kuw, kub = jax.random.split(k_up)
    bu = 1.0 / jnp.sqrt(jnp.float32(in_channels * 8))
    wt = _uniform(kuw, (in_channels, cu, 2, 2, 2), bu)     # ConvTranspose3d weight (I, O, k, k, k)
    bt = _uniform(kub, (cu,), bu)

    k1w, k1b = jax.random.split(k1)
    b1b = 1.0 / jnp.sqrt(jnp.float32(in_channels * 27))
    w1 = _uniform(k1w, (out_channels, in_channels, 3, 3, 3), b1b)
    b1 = _uniform(k1b, (out_channels,), b1b)

    k2w, k2b = jax.random.split(k2)
    b2b = 1.0 / jnp.sqrt(jnp.float32(out_channels * 27))
    w2 = _uniform(k2w, (out_channels, out_channels, 3, 3, 3), b2b)
    b2 = _uniform(k2b, (out_channels,), b2b)

    return dict(
        wt=wt, bt=bt,
        w1=w1, b1=b1,
        g1=jnp.ones((out_channels,), jnp.float32), be1=jnp.zeros((out_channels,), jnp.float32),
        w2=w2, b2=b2,
        g2=jnp.ones((out_channels,), jnp.float32), be2=jnp.zeros((out_channels,), jnp.float32),
    )


# -----------------------------------------------------------------------------
# Plain-JAX f32 reference of the same forward pass (correctness check).
# -----------------------------------------------------------------------------
def _ref_conv_bn_lrelu(x, w, b, g, be):
    y = jax.lax.conv_general_dilated(
        x, w, window_strides=(1, 1, 1), padding=((1, 1),) * 3,
        dimension_numbers=('NCDHW', 'OIDHW', 'NCDHW'),
        precision=jax.lax.Precision.HIGHEST)
    y = y + b.reshape(1, -1, 1, 1, 1)                      # bias (cancelled by BN)
    mean = jnp.mean(y, axis=(0, 2, 3, 4), keepdims=True)
    var = jnp.mean((y - mean) ** 2, axis=(0, 2, 3, 4), keepdims=True)
    y = (y - mean) * jax.lax.rsqrt(var + _BN_EPS)
    y = y * g.reshape(1, -1, 1, 1, 1) + be.reshape(1, -1, 1, 1, 1)
    return jnp.where(y >= 0, y, _LEAKY * y)


def _reference(params, x, x_skip):
    wt = params['wt']
    w_conv = jnp.transpose(jnp.flip(wt, axis=(2, 3, 4)), (1, 0, 2, 3, 4))
    y = jax.lax.conv_general_dilated(
        x, w_conv, window_strides=(1, 1, 1), padding=((1, 1),) * 3,
        lhs_dilation=(2, 2, 2),
        dimension_numbers=('NCDHW', 'OIDHW', 'NCDHW'),
        precision=jax.lax.Precision.HIGHEST)
    y = y + params['bt'].reshape(1, -1, 1, 1, 1)
    dd = x_skip.shape[2] - y.shape[2]
    hh = x_skip.shape[3] - y.shape[3]
    ww = x_skip.shape[4] - y.shape[4]
    y = jnp.pad(y, ((0, 0), (0, 0), (dd // 2, dd - dd // 2),
                    (hh // 2, hh - hh // 2), (ww // 2, ww - ww // 2)))
    y = jnp.concatenate([x_skip, y], axis=1)
    y = _ref_conv_bn_lrelu(y, params['w1'], params['b1'], params['g1'], params['be1'])
    y = _ref_conv_bn_lrelu(y, params['w2'], params['b2'], params['g2'], params['be2'])
    return y


if __name__ == "__main__":
    key = jax.random.PRNGKey(0)
    kx, ks, kp = jax.random.split(key, 3)

    # Small shapes consistent with the module: NCDHW volumetric input + skip connection.
    N, Cin, Cout = 2, 8, 8
    D = H = W = 4                        # pre-upsample spatial size
    Ds, Hs, Ws = 2 * D, 2 * H, 2 * W     # skip connection spatial size

    x = jax.random.normal(kx, (N, Cin, D, H, W), jnp.float32)
    x_skip = jax.random.normal(ks, (N, Cin // 2, Ds, Hs, Ws), jnp.float32)
    params = init_upblock_params(kp, Cin, Cout)

    out = jax.jit(up_block_forward)(params, x, x_skip)
    out = jax.block_until_ready(out)
    assert out.shape == (N, Cout, Ds, Hs, Ws), out.shape

    ref = _reference(params, x, x_skip)
    err = float(jnp.max(jnp.abs(out - ref)))
    # bf16 MXU inputs (f32 accumulation) -> a few 1e-2 absolute on unit-scale outputs.
    assert err < 5e-2, f"max abs err vs reference: {err}"

    print("KERNEL_OK")
</pallas_src>

<mosaic_0001>
module attributes {stable_mosaic.version = 11 : i64} {
  func.func @_upsample_kernel(%arg0: i32, %arg1: i32, %arg2: memref<1x1x16x8xbf16, #tpu.memory_space<vmem>>, %arg3: memref<8x32xbf16, #tpu.memory_space<vmem>>, %arg4: memref<1x32xf32, #tpu.memory_space<vmem>>, %arg5: memref<1x1x16x32xbf16, #tpu.memory_space<vmem>>) attributes {dimension_semantics = [#tpu.dimension_semantics<parallel>, #tpu.dimension_semantics<parallel>], iteration_bounds = array<i64: 2, 4>, scalar_prefetch = 0 : i64, scratch_operands = 0 : i64, tpu.core_type = #tpu.core_type<tc>, window_params = [{transform_indices = @transform_0, window_bounds = array<i64: 1, 1, 16, 8>}, {pipeline_mode = #tpu.pipeline_mode<synchronous>, transform_indices = @transform_1, window_bounds = array<i64: 8, 32>}, {pipeline_mode = #tpu.pipeline_mode<synchronous>, transform_indices = @transform_2, window_bounds = array<i64: 1, 32>}, {transform_indices = @transform_3, window_bounds = array<i64: 1, 1, 16, 32>}]} {
    %c0 = arith.constant 0 : index
    %c0_0 = arith.constant 0 : index
    %c0_1 = arith.constant 0 : index
    %c0_2 = arith.constant 0 : index
    %0 = vector.load %arg2[%c0, %c0_0, %c0_1, %c0_2] : memref<1x1x16x8xbf16, #tpu.memory_space<vmem>>, vector<1x1x16x8xbf16>
    %1 = vector.shape_cast %0 : vector<1x1x16x8xbf16> to vector<16x8xbf16>
    %c0_3 = arith.constant 0 : index
    %c0_4 = arith.constant 0 : index
    %2 = vector.load %arg3[%c0_3, %c0_4] : memref<8x32xbf16, #tpu.memory_space<vmem>>, vector<8x32xbf16>
    %cst = arith.constant dense<0.000000e+00> : vector<16x32xf32>
    %3 = tpu.matmul %1, %2, %cst {dimension_numbers = #tpu.dot_dimension_numbers<[1], [0], [0], [1], [0, 0, 1, 1], [], []>} : vector<16x8xbf16>, vector<8x32xbf16>, vector<16x32xf32> -> vector<16x32xf32>
    %c0_5 = arith.constant 0 : index
    %c0_6 = arith.constant 0 : index
    %4 = vector.load %arg4[%c0_5, %c0_6] : memref<1x32xf32, #tpu.memory_space<vmem>>, vector<1x32xf32>
    %5 = vector.broadcast %4 : vector<1x32xf32> to vector<16x32xf32>
    %6 = arith.addf %3, %5 : vector<16x32xf32>
    %7 = arith.truncf %6 : vector<16x32xf32> to vector<16x32xbf16>
    %c0_7 = arith.constant 0 : index
    %c0_8 = arith.constant 0 : index
    %c0_9 = arith.constant 0 : index
    %c0_10 = arith.constant 0 : index
    %8 = vector.load %arg5[%c0_7, %c0_8, %c0_9, %c0_10] : memref<1x1x16x32xbf16, #tpu.memory_space<vmem>>, vector<1x1x16x32xbf16>
    %9 = vector.shape_cast %8 : vector<1x1x16x32xbf16> to vector<16x32xbf16>
    %10 = vector.shape_cast %7 : vector<16x32xbf16> to vector<1x1x16x32xbf16>
    tpu.vector_store %arg5[%c0_7, %c0_8, %c0_9, %c0_10], %10 {strides = array<i32>} : memref<1x1x16x32xbf16, #tpu.memory_space<vmem>>, vector<1x1x16x32xbf16>,
    return
  }
  func.func @transform_0(%arg0: i32, %arg1: i32) -> (i32, i32, i32, i32) {
    %c0_i32 = arith.constant 0 : i32
    %c0_i32_0 = arith.constant 0 : i32
    %c0_i32_1 = arith.constant 0 : i32
    return %arg0, %arg1, %c0_i32, %c0_i32_0 : i32, i32, i32, i32
  }
  func.func @transform_1(%arg0: i32, %arg1: i32) -> (i32, i32) {
    %c0_i32 = arith.constant 0 : i32
    %c0_i32_0 = arith.constant 0 : i32
    %c0_i32_1 = arith.constant 0 : i32
    return %c0_i32, %c0_i32_0 : i32, i32
  }
  func.func @transform_2(%arg0: i32, %arg1: i32) -> (i32, i32) {
    %c0_i32 = arith.constant 0 : i32
    %c0_i32_0 = arith.constant 0 : i32
    %c0_i32_1 = arith.constant 0 : i32
    return %c0_i32, %c0_i32_0 : i32, i32
  }
  func.func @transform_3(%arg0: i32, %arg1: i32) -> (i32, i32, i32, i32) {
    %c0_i32 = arith.constant 0 : i32
    %c0_i32_0 = arith.constant 0 : i32
    %c0_i32_1 = arith.constant 0 : i32
    return %arg0, %arg1, %c0_i32, %c0_i32_0 : i32, i32, i32, i32
  }
}

module attributes {stable_mosaic.version = 11 : i64} {
  func.func @kernel(%arg0: i32, %arg1: i32, %arg2: memref<1x1x108x8xbf16, #tpu.memory_space<vmem>>, %arg3: memref<1x1x108x8xbf16, #tpu.memory_space<vmem>>, %arg4: memref<1x1x108x8xbf16, #tpu.memory_space<vmem>>, %arg5: memref<3x3x3x8x8xbf16, #tpu.memory_space<vmem>>, %arg6: memref<1x1x80x8xf32, #tpu.memory_space<vmem>>, %arg7: memref<1x8x8xf32, #tpu.memory_space<vmem>>, %arg8: memref<1x8x8xf32, #tpu.memory_space<vmem>>) attributes {dimension_semantics = [#tpu.dimension_semantics<parallel>, #tpu.dimension_semantics<arbitrary>], iteration_bounds = array<i64: 2, 8>, scalar_prefetch = 0 : i64, scratch_operands = 0 : i64, tpu.core_type = #tpu.core_type<tc>, window_params = [{transform_indices = @transform_0, window_bounds = array<i64: 1, 1, 108, 8>}, {transform_indices = @transform_1, window_bounds = array<i64: 1, 1, 108, 8>}, {transform_indices = @transform_2, window_bounds = array<i64: 1, 1, 108, 8>}, {pipeline_mode = #tpu.pipeline_mode<synchronous>, transform_indices = @transform_3, window_bounds = array<i64: 3, 3, 3, 8, 8>}, {transform_indices = @transform_4, window_bounds = array<i64: 1, 1, 80, 8>}, {transform_indices = @transform_5, window_bounds = array<i64: 1, 8, 8>}, {transform_indices = @transform_6, window_bounds = array<i64: 1, 8, 8>}]} {
    %c0 = arith.constant 0 : index
    %c0_0 = arith.constant 0 : index
    %c0_1 = arith.constant 0 : index
    %c0_2 = arith.constant 0 : index
    %0 = vector.load %arg3[%c0, %c0_0, %c0_1, %c0_2] : memref<1x1x108x8xbf16, #tpu.memory_space<vmem>>, vector<1x1x80x8xbf16>
    %1 = vector.shape_cast %0 : vector<1x1x80x8xbf16> to vector<80x8xbf16>
    %c1 = arith.constant 1 : index
    %c0_3 = arith.constant 0 : index
    %c0_4 = arith.constant 0 : index
    %c0_5 = arith.constant 0 : index
    %c0_6 = arith.constant 0 : index
    %2 = vector.load %arg5[%c1, %c0_3, %c0_4, %c0_5, %c0_6] : memref<3x3x3x8x8xbf16, #tpu.memory_space<vmem>>, vector<1x1x1x8x8xbf16>
    %3 = vector.shape_cast %2 : vector<1x1x1x8x8xbf16> to vector<8x8xbf16>
    %cst = arith.constant dense<0.000000e+00> : vector<80x8xf32>
    %4 = tpu.matmul %1, %3, %cst {dimension_numbers = #tpu.dot_dimension_numbers<[1], [0], [0], [1], [0, 0, 1, 1], [], []>} : vector<80x8xbf16>, vector<8x8xbf16>, vector<80x8xf32> -> vector<80x8xf32>
    %c0_7 = arith.constant 0 : index
    %c0_8 = arith.constant 0 : index
    %c1_9 = arith.constant 1 : index
    %c0_10 = arith.constant 0 : index
    %5 = vector.load %arg3[%c0_7, %c0_8, %c1_9, %c0_10] : memref<1x1x108x8xbf16, #tpu.memory_space<vmem>>, vector<1x1x80x8xbf16>
    %6 = vector.shape_cast %5 : vector<1x1x80x8xbf16> to vector<80x8xbf16>
    %c1_11 = arith.constant 1 : index
    %c0_12 = arith.constant 0 : index
    %c1_13 = arith.constant 1 : index
    %c0_14 = arith.constant 0 : index
    %c0_15 = arith.constant 0 : index
    %7 = vector.load %arg5[%c1_11, %c0_12, %c1_13, %c0_14, %c0_15] : memref<3x3x3x8x8xbf16, #tpu.memory_space<vmem>>, vector<1x1x1x8x8xbf16>
    %8 = vector.shape_cast %7 : vector<1x1x1x8x8xbf16> to vector<8x8xbf16>
    %cst_16 = arith.constant dense<0.000000e+00> : vector<80x8xf32>
    %9 = tpu.matmul %6, %8, %cst_16 {dimension_numbers = #tpu.dot_dimension_numbers<[1], [0], [0], [1], [0, 0, 1, 1], [], []>} : vector<80x8xbf16>, vector<8x8xbf16>, vector<80x8xf32> -> vector<80x8xf32>
    %10 = arith.addf %4, %9 : vector<80x8xf32>
    %c0_17 = arith.constant 0 : index
    %c0_18 = arith.constant 0 : index
    %c2 = arith.constant 2 : index
    %c0_19 = arith.constant 0 : index
    %11 = vector.load %arg3[%c0_17, %c0_18, %c2, %c0_19] : memref<1x1x108x8xbf16, #tpu.memory_space<vmem>>, vector<1x1x80x8xbf16>
    %12 = vector.shape_cast %11 : vector<1x1x80x8xbf16> to vector<80x8xbf16>
    %c1_20 = arith.constant 1 : index
    %c0_21 = arith.constant 0 : index
    %c2_22 = arith.constant 2 : index
    %c0_23 = arith.constant 0 : index
    %c0_24 = arith.constant 0 : index
    %13 = vector.load %arg5[%c1_20, %c0_21, %c2_22, %c0_23, %c0_24] : memref<3x3x3x8x8xbf16, #tpu.memory_space<vmem>>, vector<1x1x1x8x8xbf16>
    %14 = vector.shape_cast %13 : vector<1x1x1x8x8xbf16> to vector<8x8xbf16>
    %cst_25 = arith.constant dense<0.000000e+00> : vector<80x8xf32>
    %15 = tpu.matmul %12, %14, %cst_25 {dimension_numbers = #tpu.dot_dimension_numbers<[1], [0], [0], [1], [0, 0, 1, 1], [], []>} : vector<80x8xbf16>, vector<8x8xbf16>, vector<80x8xf32> -> vector<80x8xf32>
    %16 = arith.addf %10, %15 : vector<80x8xf32>
    %c0_26 = arith.constant 0 : index
    %c0_27 = arith.constant 0 : index
    %c10 = arith.constant 10 : index
    %c0_28 = arith.constant 0 : index
    %17 = vector.load %arg3[%c0_26, %c0_27, %c10, %c0_28] : memref<1x1x108x8xbf16, #tpu.memory_space<vmem>>, vector<1x1x80x8xbf16>
    %18 = vector.shape_cast %17 : vector<1x1x80x8xbf16> to vector<80x8xbf16>
    %c1_29 = arith.constant 1 : index
    %c1_30 = arith.constant 1 : index
    %c0_31 = arith.constant 0 : index
    %c0_32 = arith.constant 0 : index
    %c0_33 = arith.constant 0 : index
    %19 = vector.load %arg5[%c1_29, %c1_30, %c0_31, %c0_32, %c0_33] : memref<3x3x3x8x8xbf16, #tpu.memory_space<vmem>>, vector<1x1x1x8x8xbf16>
    %20 = vector.shape_cast %19 : vector<1x1x1x8x8xbf16> to vector<8x8xbf16>
    %cst_34 = arith.constant dense<0.000000e+00> : vector<80x8xf32>
    %21 = tpu.matmul %18, %20, %cst_34 {dimension_numbers = #tpu.dot_dimension_numbers<[1], [0], [0], [1], [0, 0, 1, 1], [], []>} : vector<80x8xbf16>, vector<8x8xbf16>, vector<80x8xf32> -> vector<80x8xf32>
    %22 = arith.addf %16, %21 : vector<80x8xf32>
    %c0_35 = arith.constant 0 : index
    %c0_36 = arith.constant 0 : index
    %c11 = arith.constant 11 : index
    %c0_37 = arith.constant 0 : index
    %23 = vector.load %arg3[%c0_35, %c0_36, %c11, %c0_37] : memref<1x1x108x8xbf16, #tpu.memory_space<vmem>>, vector<1x1x80x8xbf16>
    %24 = vector.shape_cast %23 : vector<1x1x80x8xbf16> to vector<80x8xbf16>
    %c1_38 = arith.constant 1 : index
    %c1_39 = arith.constant 1 : index
    %c1_40 = arith.constant 1 : index
    %c0_41 = arith.constant 0 : index
    %c0_42 = arith.constant 0 : index
    %25 = vector.load %arg5[%c1_38, %c1_39, %c1_40, %c0_41, %c0_42] : memref<3x3x3x8x8xbf16, #tpu.memory_space<vmem>>, vector<1x1x1x8x8xbf16>
    %26 = vector.shape_cast %25 : vector<1x1x1x8x8xbf16> to vector<8x8xbf16>
    %cst_43 = arith.constant dense<0.000000e+00> : vector<80x8xf32>
    %27 = tpu.matmul %24, %26, %cst_43 {dimension_numbers = #tpu.dot_dimension_numbers<[1], [0], [0], [1], [0, 0, 1, 1], [], []>} : vector<80x8xbf16>, vector<8x8xbf16>, vector<80x8xf32> -> vector<80x8xf32>
    %28 = arith.addf %22, %27 : vector<80x8xf32>
    %c0_44 = arith.constant 0 : index
    %c0_45 = arith.constant 0 : index
    %c12 = arith.constant 12 : index
    %c0_46 = arith.constant 0 : index
    %29 = vector.load %arg3[%c0_44, %c0_45, %c12, %c0_46] : memref<1x1x108x8xbf16, #tpu.memory_space<vmem>>, vector<1x1x80x8xbf16>
    %30 = vector.shape_cast %29 : vector<1x1x80x8xbf16> to vector<80x8xbf16>
    %c1_47 = arith.constant 1 : index
    %c1_48 = arith.constant 1 : index
    %c2_49 = arith.constant 2 : index
    %c0_50 = arith.constant 0 : index
    %c0_51 = arith.constant 0 : index
    %31 = vector.load %arg5[%c1_47, %c1_48, %c2_49, %c0_50, %c0_51] : memref<3x3x3x8x8xbf16, #tpu.memory_space<vmem>>, vector<1x1x1x8x8xbf16>
    %32 = vector.shape_cast %31 : vector<1x1x1x8x8xbf16> to vector<8x8xbf16>
    %cst_52 = arith.constant dense<0.000000e+00> : vector<80x8xf32>
    %33 = tpu.matmul %30, %32, %cst_52 {dimension_numbers = #tpu.dot_dimension_numbers<[1], [0], [0], [1], [0, 0, 1, 1], [], []>} : vector<80x8xbf16>, vector<8x8xbf16>, vector<80x8xf32> -> vector<80x8xf32>
    %34 = arith.addf %28, %33 : vector<80x8xf32>
    %c0_53 = arith.constant 0 : index
    %c0_54 = arith.constant 0 : index
    %c20 = arith.constant 20 : index
    %c0_55 = arith.constant 0 : index
    %35 = vector.load %arg3[%c0_53, %c0_54, %c20, %c0_55] : memref<1x1x108x8xbf16, #tpu.memory_space<vmem>>, vector<1x1x80x8xbf16>
    %36 = vector.shape_cast %35 : vector<1x1x80x8xbf16> to vector<80x8xbf16>
    %c1_56 = arith.constant 1 : index
    %c2_57 = arith.constant 2 : index
    %c0_58 = arith.constant 0 : index
    %c0_59 = arith.constant 0 : index
    %c0_60 = arith.constant 0 : index
    %37 = vector.load %arg5[%c1_56, %c2_57, %c0_58, %c0_59, %c0_60] : memref<3x3x3x8x8xbf16, #tpu.memory_space<vmem>>, vector<1x1x1x8x8xbf16>
    %38 = vector.shape_cast %37 : vector<1x1x1x8x8xbf16> to vector<8x8xbf16>
    %cst_61 = arith.constant dense<0.000000e+00> : vector<80x8xf32>
    %39 = tpu.matmul %36, %38, %cst_61 {dimension_numbers = #tpu.dot_dimension_numbers<[1], [0], [0], [1], [0, 0, 1, 1], [], []>} : vector<80x8xbf16>, vector<8x8xbf16>, vector<80x8xf32> -> vector<80x8xf32>
    %40 = arith.addf %34, %39 : vector<80x8xf32>
    %c0_62 = arith.constant 0 : index
    %c0_63 = arith.constant 0 : index
    %c21 = arith.constant 21 : index
    %c0_64 = arith.constant 0 : index
    %41 = vector.load %arg3[%c0_62, %c0_63, %c21, %c0_64] : memref<1x1x108x8xbf16, #tpu.memory_space<vmem>>, vector<1x1x80x8xbf16>
    %42 = vector.shape_cast %41 : vector<1x1x80x8xbf16> to vector<80x8xbf16>
    %c1_65 = arith.constant 1 : index
    %c2_66 = arith.constant 2 : index
    %c1_67 = arith.constant 1 : index
    %c0_68 = arith.constant 0 : index
    %c0_69 = arith.constant 0 : index
    %43 = vector.load %arg5[%c1_65, %c2_66, %c1_67, %c0_68, %c0_69] : memref<3x3x3x8x8xbf16, #tpu.memory_space<vmem>>, vector<1x1x1x8x8xbf16>
    %44 = vector.shape_cast %43 : vector<1x1x1x8x8xbf16> to vector<8x8xbf16>
    %cst_70 = arith.constant dense<0.000000e+00> : vector<80x8xf32>
    %45 = tpu.matmul %42, %44, %cst_70 {dimension_numbers = #tpu.dot_dimension_numbers<[1], [0], [0], [1], [0, 0, 1, 1], [], []>} : vector<80x8xbf16>, vector<8x8xbf16>, vector<80x8xf32> -> vector<80x8xf32>
    %46 = arith.addf %40, %45 : vector<80x8xf32>
    %c0_71 = arith.constant 0 : index
    %c0_72 = arith.constant 0 : index
    %c22 = arith.constant 22 : index
    %c0_73 = arith.constant 0 : index
    %47 = vector.load %arg3[%c0_71, %c0_72, %c22, %c0_73] : memref<1x1x108x8xbf16, #tpu.memory_space<vmem>>, vector<1x1x80x8xbf16>
    %48 = vector.shape_cast %47 : vector<1x1x80x8xbf16> to vector<80x8xbf16>
    %c1_74 = arith.constant 1 : index
    %c2_75 = arith.constant 2 : index
    %c2_76 = arith.constant 2 : index
    %c0_77 = arith.constant 0 : index
    %c0_78 = arith.constant 0 : index
    %49 = vector.load %arg5[%c1_74, %c2_75, %c2_76, %c0_77, %c0_78] : memref<3x3x3x8x8xbf16, #tpu.memory_space<vmem>>, vector<1x1x1x8x8xbf16>
    %50 = vector.shape_cast %49 : vector<1x1x1x8x8xbf16> to vector<8x8xbf16>
    %cst_79 = arith.constant dense<0.000000e+00> : vector<80x8xf32>
    %51 = tpu.matmul %48, %50, %cst_79 {dimension_numbers = #tpu.dot_dimension_numbers<[1], [0], [0], [1], [0, 0, 1, 1], [], []>} : vector<80x8xbf16>, vector<8x8xbf16>, vector<80x8xf32> -> vector<80x8xf32>
    %52 = arith.addf %46, %51 : vector<80x8xf32>
    %c0_80 = arith.constant 0 : index
    %c0_81 = arith.constant 0 : index
    %c0_82 = arith.constant 0 : index
    %c0_83 = arith.constant 0 : index
    %53 = vector.load %arg6[%c0_80, %c0_81, %c0_82, %c0_83] : memref<1x1x80x8xf32, #tpu.memory_space<vmem>>, vector<1x1x80x8xf32>
    %54 = vector.shape_cast %53 : vector<1x1x80x8xf32> to vector<80x8xf32>
    %55 = vector.shape_cast %52 : vector<80x8xf32> to vector<1x1x80x8xf32>
    tpu.vector_store %arg6[%c0_80, %c0_81, %c0_82, %c0_83], %55 {strides = array<i32>} : memref<1x1x80x8xf32, #tpu.memory_space<vmem>>, vector<1x1x80x8xf32>,
    %c0_i32 = arith.constant 0 : i32
    %56 = arith.cmpi sgt, %arg1, %c0_i32 : i32
    %57 = arith.extui %56 : i1 to i32
    %c0_i32_84 = arith.constant 0 : i32
    %58 = arith.cmpi ne, %57, %c0_i32_84 : i32
    scf.if %58 {
      %c0_111 = arith.constant 0 : index
      %c0_112 = arith.constant 0 : index
      %c0_113 = arith.constant 0 : index
      %c0_114 = arith.constant 0 : index
      %105 = vector.load %arg6[%c0_111, %c0_112, %c0_113, %c0_114] : memref<1x1x80x8xf32, #tpu.memory_space<vmem>>, vector<1x1x80x8xf32>
      %106 = vector.shape_cast %105 : vector<1x1x80x8xf32> to vector<80x8xf32>
      %c0_115 = arith.constant 0 : index
      %c0_116 = arith.constant 0 : index
      %c0_117 = arith.constant 0 : index
      %c0_118 = arith.constant 0 : index
      %107 = vector.load %arg2[%c0_115, %c0_116, %c0_117, %c0_118] : memref<1x1x108x8xbf16, #tpu.memory_space<vmem>>, vector<1x1x80x8xbf16>
      %108 = vector.shape_cast %107 : vector<1x1x80x8xbf16> to vector<80x8xbf16>
      %c0_119 = arith.constant 0 : index
      %c0_120 = arith.constant 0 : index
      %c0_121 = arith.constant 0 : index
      %c0_122 = arith.constant 0 : index
      %c0_123 = arith.constant 0 : index
      %109 = vector.load %arg5[%c0_119, %c0_120, %c0_121, %c0_122, %c0_123] : memref<3x3x3x8x8xbf16, #tpu.memory_space<vmem>>, vector<1x1x1x8x8xbf16>
      %110 = vector.shape_cast %109 : vector<1x1x1x8x8xbf16> to vector<8x8xbf16>
      %cst_124 = arith.constant dense<0.000000e+00> : vector<80x8xf32>
      %111 = tpu.matmul %108, %110, %cst_124 {dimension_numbers = #tpu.dot_dimension_numbers<[1], [0], [0], [1], [0, 0, 1, 1], [], []>} : vector<80x8xbf16>, vector<8x8xbf16>, vector<80x8xf32> -> vector<80x8xf32>
      %c0_125 = arith.constant 0 : index
      %c0_126 = arith.constant 0 : index
      %c1_127 = arith.constant 1 : index
      %c0_128 = arith.constant 0 : index
      %112 = vector.load %arg2[%c0_125, %c0_126, %c1_127, %c0_128] : memref<1x1x108x8xbf16, #tpu.memory_space<vmem>>, vector<1x1x80x8xbf16>
      %113 = vector.shape_cast %112 : vector<1x1x80x8xbf16> to vector<80x8xbf16>
      %c0_129 = arith.constant 0 : index
      %c0_130 = arith.constant 0 : index
      %c1_131 = arith.constant 1 : index
      %c0_132 = arith.constant 0 : index
      %c0_133 = arith.constant 0 : index
      %114 = vector.load %arg5[%c0_129, %c0_130, %c1_131, %c0_132, %c0_133] : memref<3x3x3x8x8xbf16, #tpu.memory_space<vmem>>, vector<1x1x1x8x8xbf16>
      %115 = vector.shape_cast %114 : vector<1x1x1x8x8xbf16> to vector<8x8xbf16>
      %cst_134 = arith.constant dense<0.000000e+00> : vector<80x8xf32>
      %116 = tpu.matmul %113, %115, %cst_134 {dimension_numbers = #tpu.dot_dimension_numbers<[1], [0], [0], [1], [0, 0, 1, 1], [], []>} : vector<80x8xbf16>, vector<8x8xbf16>, vector<80x8xf32> -> vector<80x8xf32>
      %117 = arith.addf %111, %116 : vector<80x8xf32>
      %c0_135 = arith.constant 0 : index
      %c0_136 = arith.constant 0 : index
      %c2_137 = arith.constant 2 : index
      %c0_138 = arith.constant 0 : index
      %118 = vector.load %arg2[%c0_135, %c0_136, %c2_137, %c0_138] : memref<1x1x108x8xbf16, #tpu.memory_space<vmem>>, vector<1x1x80x8xbf16>
      %119 = vector.shape_cast %118 : vector<1x1x80x8xbf16> to vector<80x8xbf16>
      %c0_139 = arith.constant 0 : index
      %c0_140 = arith.constant 0 : index
      %c2_141 = arith.constant 2 : index
      %c0_142 = arith.constant 0 : index
      %c0_143 = arith.constant 0 : index
      %120 = vector.load %arg5[%c0_139, %c0_140, %c2_141, %c0_142, %c0_143] : memref<3x3x3x8x8xbf16, #tpu.memory_space<vmem>>, vector<1x1x1x8x8xbf16>
      %121 = vector.shape_cast %120 : vector<1x1x1x8x8xbf16> to vector<8x8xbf16>
      %cst_144 = arith.constant dense<0.000000e+00> : vector<80x8xf32>
      %122 = tpu.matmul %119, %121, %cst_144 {dimension_numbers = #tpu.dot_dimension_numbers<[1], [0], [0], [1], [0, 0, 1, 1], [], []>} : vector<80x8xbf16>, vector<8x8xbf16>, vector<80x8xf32> -> vector<80x8xf32>
      %123 = arith.addf %117, %122 : vector<80x8xf32>
      %c0_145 = arith.constant 0 : index
      %c0_146 = arith.constant 0 : index
      %c10_147 = arith.constant 10 : index
      %c0_148 = arith.constant 0 : index
      %124 = vector.load %arg2[%c0_145, %c0_146, %c10_147, %c0_148] : memref<1x1x108x8xbf16, #tpu.memory_space<vmem>>, vector<1x1x80x8xbf16>
      %125 = vector.shape_cast %124 : vector<1x1x80x8xbf16> to vector<80x8xbf16>
      %c0_149 = arith.constant 0 : index
      %c1_150 = arith.constant 1 : index
      %c0_151 = arith.constant 0 : index
      %c0_152 = arith.constant 0 : index
      %c0_153 = arith.constant 0 : index
      %126 = vector.load %arg5[%c0_149, %c1_150, %c0_151, %c0_152, %c0_153] : memref<3x3x3x8x8xbf16, #tpu.memory_space<vmem>>, vector<1x1x1x8x8xbf16>
      %127 = vector.shape_cast %126 : vector<1x1x1x8x8xbf16> to vector<8x8xbf16>
      %cst_154 = arith.constant dense<0.000000e+00> : vector<80x8xf32>
      %128 = tpu.matmul %125, %127, %cst_154 {dimension_numbers = #tpu.dot_dimension_numbers<[1], [0], [0], [1], [0, 0, 1, 1], [], []>} : vector<80x8xbf16>, vector<8x8xbf16>, vector<80x8xf32> -> vector<80x8xf32>
      %129 = arith.addf %123, %128 : vector<80x8xf32>
      %c0_155 = arith.constant 0 : index
      %c0_156 = arith.constant 0 : index
      %c11_157 = arith.constant 11 : index
      %c0_158 = arith.constant 0 : index
      %130 = vector.load %arg2[%c0_155, %c0_156, %c11_157, %c0_158] : memref<1x1x108x8xbf16, #tpu.memory_space<vmem>>, vector<1x1x80x8xbf16>
      %131 = vector.shape_cast %130 : vector<1x1x80x8xbf16> to vector<80x8xbf16>
      %c0_159 = arith.constant 0 : index
      %c1_160 = arith.constant 1 : index
      %c1_161 = arith.constant 1 : index
      %c0_162 = arith.constant 0 : index
      %c0_163 = arith.constant 0 : index
      %132 = vector.load %arg5[%c0_159, %c1_160, %c1_161, %c0_162, %c0_163] : memref<3x3x3x8x8xbf16, #tpu.memory_space<vmem>>, vector<1x1x1x8x8xbf16>
      %133 = vector.shape_cast %132 : vector<1x1x1x8x8xbf16> to vector<8x8xbf16>
      %cst_164 = arith.constant dense<0.000000e+00> : vector<80x8xf32>
      %134 = tpu.matmul %131, %133, %cst_164 {dimension_numbers = #tpu.dot_dimension_numbers<[1], [0], [0], [1], [0, 0, 1, 1], [], []>} : vector<80x8xbf16>, vector<8x8xbf16>, vector<80x8xf32> -> vector<80x8xf32>
      %135 = arith.addf %129, %134 : vector<80x8xf32>
      %c0_165 = arith.constant 0 : index
      %c0_166 = arith.constant 0 : index
      %c12_167 = arith.constant 12 : index
      %c0_168 = arith.constant 0 : index
      %136 = vector.load %arg2[%c0_165, %c0_166, %c12_167, %c0_168] : memref<1x1x108x8xbf16, #tpu.memory_space<vmem>>, vector<1x1x80x8xbf16>
      %137 = vector.shape_cast %136 : vector<1x1x80x8xbf16> to vector<80x8xbf16>
      %c0_169 = arith.constant 0 : index
      %c1_170 = arith.constant 1 : index
      %c2_171 = arith.constant 2 : index
      %c0_172 = arith.constant 0 : index
      %c0_173 = arith.constant 0 : index
      %138 = vector.load %arg5[%c0_169, %c1_170, %c2_171, %c0_172, %c0_173] : memref<3x3x3x8x8xbf16, #tpu.memory_space<vmem>>, vector<1x1x1x8x8xbf16>
      %139 = vector.shape_cast %138 : vector<1x1x1x8x8xbf16> to vector<8x8xbf16>
      %cst_174 = arith.constant dense<0.000000e+00> : vector<80x8xf32>
      %140 = tpu.matmul %137, %139, %cst_174 {dimension_numbers = #tpu.dot_dimension_numbers<[1], [0], [0], [1], [0, 0, 1, 1], [], []>} : vector<80x8xbf16>, vector<8x8xbf16>, vector<80x8xf32> -> vector<80x8xf32>
      %141 = arith.addf %135, %140 : vector<80x8xf32>
      %c0_175 = arith.constant 0 : index
      %c0_176 = arith.constant 0 : index
      %c20_177 = arith.constant 20 : index
      %c0_178 = arith.constant 0 : index
      %142 = vector.load %arg2[%c0_175, %c0_176, %c20_177, %c0_178] : memref<1x1x108x8xbf16, #tpu.memory_space<vmem>>, vector<1x1x80x8xbf16>
      %143 = vector.shape_cast %142 : vector<1x1x80x8xbf16> to vector<80x8xbf16>
      %c0_179 = arith.constant 0 : index
      %c2_180 = arith.constant 2 : index
      %c0_181 = arith.constant 0 : index
      %c0_182 = arith.constant 0 : index
      %c0_183 = arith.constant 0 : index
      %144 = vector.load %arg5[%c0_179, %c2_180, %c0_181, %c0_182, %c0_183] : memref<3x3x3x8x8xbf16, #tpu.memory_space<vmem>>, vector<1x1x1x8x8xbf16>
      %145 = vector.shape_cast %144 : vector<1x1x1x8x8xbf16> to vector<8x8xbf16>
      %cst_184 = arith.constant dense<0.000000e+00> : vector<80x8xf32>
      %146 = tpu.matmul %143, %145, %cst_184 {dimension_numbers = #tpu.dot_dimension_numbers<[1], [0], [0], [1], [0, 0, 1, 1], [], []>} : vector<80x8xbf16>, vector<8x8xbf16>, vector<80x8xf32> -> vector<80x8xf32>
      %147 = arith.addf %141, %146 : vector<80x8xf32>
      %c0_185 = arith.constant 0 : index
      %c0_186 = arith.constant 0 : index
      %c21_187 = arith.constant 21 : index
      %c0_188 = arith.constant 0 : index
      %148 = vector.load %arg2[%c0_185, %c0_186, %c21_187, %c0_188] : memref<1x1x108x8xbf16, #tpu.memory_space<vmem>>, vector<1x1x80x8xbf16>
      %149 = vector.shape_cast %148 : vector<1x1x80x8xbf16> to vector<80x8xbf16>
      %c0_189 = arith.constant 0 : index
      %c2_190 = arith.constant 2 : index
      %c1_191 = arith.constant 1 : index
      %c0_192 = arith.constant 0 : index
      %c0_193 = arith.constant 0 : index
      %150 = vector.load %arg5[%c0_189, %c2_190, %c1_191, %c0_192, %c0_193] : memref<3x3x3x8x8xbf16, #tpu.memory_space<vmem>>, vector<1x1x1x8x8xbf16>
      %151 = vector.shape_cast %150 : vector<1x1x1x8x8xbf16> to vector<8x8xbf16>
      %cst_194 = arith.constant dense<0.000000e+00> : vector<80x8xf32>
      %152 = tpu.matmul %149, %151, %cst_194 {dimension_numbers = #tpu.dot_dimension_numbers<[1], [0], [0], [1], [0, 0, 1, 1], [], []>} : vector<80x8xbf16>, vector<8x8xbf16>, vector<80x8xf32> -> vector<80x8xf32>
      %153 = arith.addf %147, %152 : vector<80x8xf32>
      %c0_195 = arith.constant 0 : index
      %c0_196 = arith.constant 0 : index
      %c22_197 = arith.constant 22 : index
      %c0_198 = arith.constant 0 : index
      %154 = vector.load %arg2[%c0_195, %c0_196, %c22_197, %c0_198] : memref<1x1x108x8xbf16, #tpu.memory_space<vmem>>, vector<1x1x80x8xbf16>
      %155 = vector.shape_cast %154 : vector<1x1x80x8xbf16> to vector<80x8xbf16>
      %c0_199 = arith.constant 0 : index
      %c2_200 = arith.constant 2 : index
      %c2_201 = arith.constant 2 : index
      %c0_202 = arith.constant 0 : index
      %c0_203 = arith.constant 0 : index
      %156 = vector.load %arg5[%c0_199, %c2_200, %c2_201, %c0_202, %c0_203] : memref<3x3x3x8x8xbf16, #tpu.memory_space<vmem>>, vector<1x1x1x8x8xbf16>
      %157 = vector.shape_cast %156 : vector<1x1x1x8x8xbf16> to vector<8x8xbf16>
      %cst_204 = arith.constant dense<0.000000e+00> : vector<80x8xf32>
      %158 = tpu.matmul %155, %157, %cst_204 {dimension_numbers = #tpu.dot_dimension_numbers<[1], [0], [0], [1], [0, 0, 1, 1], [], []>} : vector<80x8xbf16>, vector<8x8xbf16>, vector<80x8xf32> -> vector<80x8xf32>
      %159 = arith.addf %153, %158 : vector<80x8xf32>
      %160 = arith.addf %106, %159 : vector<80x8xf32>
      %c0_205 = arith.constant 0 : index
      %c0_206 = arith.constant 0 : index
      %c0_207 = arith.constant 0 : index
      %c0_208 = arith.constant 0 : index
      %161 = vector.load %arg6[%c0_205, %c0_206, %c0_207, %c0_208] : memref<1x1x80x8xf32, #tpu.memory_space<vmem>>, vector<1x1x80x8xf32>
      %162 = vector.shape_cast %161 : vector<1x1x80x8xf32> to vector<80x8xf32>
      %163 = vector.shape_cast %160 : vector<80x8xf32> to vector<1x1x80x8xf32>
      tpu.vector_store %arg6[%c0_205, %c0_206, %c0_207, %c0_208], %163 {strides = array<i32>} : memref<1x1x80x8xf32, #tpu.memory_space<vmem>>, vector<1x1x80x8xf32>,
    } else {
    }
    %c7_i32 = arith.constant 7 : i32
    %59 = arith.cmpi slt, %arg1, %c7_i32 : i32
    %60 = arith.extui %59 : i1 to i32
    %c0_i32_85 = arith.constant 0 : i32
    %61 = arith.cmpi ne, %60, %c0_i32_85 : i32
    scf.if %61 {
      %c0_111 = arith.constant 0 : index
      %c0_112 = arith.constant 0 : index
      %c0_113 = arith.constant 0 : index
      %c0_114 = arith.constant 0 : index
      %105 = vector.load %arg6[%c0_111, %c0_112, %c0_113, %c0_114] : memref<1x1x80x8xf32, #tpu.memory_space<vmem>>, vector<1x1x80x8xf32>
      %106 = vector.shape_cast %105 : vector<1x1x80x8xf32> to vector<80x8xf32>
      %c0_115 = arith.constant 0 : index
      %c0_116 = arith.constant 0 : index
      %c0_117 = arith.constant 0 : index
      %c0_118 = arith.constant 0 : index
      %107 = vector.load %arg4[%c0_115, %c0_116, %c0_117, %c0_118] : memref<1x1x108x8xbf16, #tpu.memory_space<vmem>>, vector<1x1x80x8xbf16>
      %108 = vector.shape_cast %107 : vector<1x1x80x8xbf16> to vector<80x8xbf16>
      %c2_119 = arith.constant 2 : index
      %c0_120 = arith.constant 0 : index
      %c0_121 = arith.constant 0 : index
      %c0_122 = arith.constant 0 : index
      %c0_123 = arith.constant 0 : index
      %109 = vector.load %arg5[%c2_119, %c0_120, %c0_121, %c0_122, %c0_123] : memref<3x3x3x8x8xbf16, #tpu.memory_space<vmem>>, vector<1x1x1x8x8xbf16>
      %110 = vector.shape_cast %109 : vector<1x1x1x8x8xbf16> to vector<8x8xbf16>
      %cst_124 = arith.constant dense<0.000000e+00> : vector<80x8xf32>
      %111 = tpu.matmul %108, %110, %cst_124 {dimension_numbers = #tpu.dot_dimension_numbers<[1], [0], [0], [1], [0, 0, 1, 1], [], []>} : vector<80x8xbf16>, vector<8x8xbf16>, vector<80x8xf32> -> vector<80x8xf32>
      %c0_125 = arith.constant 0 : index
      %c0_126 = arith.constant 0 : index
      %c1_127 = arith.constant 1 : index
      %c0_128 = arith.constant 0 : index
      %112 = vector.load %arg4[%c0_125, %c0_126, %c1_127, %c0_128] : memref<1x1x108x8xbf16, #tpu.memory_space<vmem>>, vector<1x1x80x8xbf16>
      %113 = vector.shape_cast %112 : vector<1x1x80x8xbf16> to vector<80x8xbf16>
      %c2_129 = arith.constant 2 : index
      %c0_130 = arith.constant 0 : index
      %c1_131 = arith.constant 1 : index
      %c0_132 = arith.constant 0 : index
      %c0_133 = arith.constant 0 : index
      %114 = vector.load %arg5[%c2_129, %c0_130, %c1_131, %c0_132, %c0_133] : memref<3x3x3x8x8xbf16, #tpu.memory_space<vmem>>, vector<1x1x1x8x8xbf16>
      %115 = vector.shape_cast %114 : vector<1x1x1x8x8xbf16> to vector<8x8xbf16>
      %cst_134 = arith.constant dense<0.000000e+00> : vector<80x8xf32>
      %116 = tpu.matmul %113, %115, %cst_134 {dimension_numbers = #tpu.dot_dimension_numbers<[1], [0], [0], [1], [0, 0, 1, 1], [], []>} : vector<80x8xbf16>, vector<8x8xbf16>, vector<80x8xf32> -> vector<80x8xf32>
      %117 = arith.addf %111, %116 : vector<80x8xf32>
      %c0_135 = arith.constant 0 : index
      %c0_136 = arith.constant 0 : index
      %c2_137 = arith.constant 2 : index
      %c0_138 = arith.constant 0 : index
      %118 = vector.load %arg4[%c0_135, %c0_136, %c2_137, %c0_138] : memref<1x1x108x8xbf16, #tpu.memory_space<vmem>>, vector<1x1x80x8xbf16>
      %119 = vector.shape_cast %118 : vector<1x1x80x8xbf16> to vector<80x8xbf16>
      %c2_139 = arith.constant 2 : index
      %c0_140 = arith.constant 0 : index
      %c2_141 = arith.constant 2 : index
      %c0_142 = arith.constant 0 : index
      %c0_143 = arith.constant 0 : index
      %120 = vector.load %arg5[%c2_139, %c0_140, %c2_141, %c0_142, %c0_143] : memref<3x3x3x8x8xbf16, #tpu.memory_space<vmem>>, vector<1x1x1x8x8xbf16>
      %121 = vector.shape_cast %120 : vector<1x1x1x8x8xbf16> to vector<8x8xbf16>
      %cst_144 = arith.constant dense<0.000000e+00> : vector<80x8xf32>
      %122 = tpu.matmul %119, %121, %cst_144 {dimension_numbers = #tpu.dot_dimension_numbers<[1], [0], [0], [1], [0, 0, 1, 1], [], []>} : vector<80x8xbf16>, vector<8x8xbf16>, vector<80x8xf32> -> vector<80x8xf32>
      %123 = arith.addf %117, %122 : vector<80x8xf32>
      %c0_145 = arith.constant 0 : index
      %c0_146 = arith.constant 0 : index
      %c10_147 = arith.constant 10 : index
      %c0_148 = arith.constant 0 : index
      %124 = vector.load %arg4[%c0_145, %c0_146, %c10_147, %c0_148] : memref<1x1x108x8xbf16, #tpu.memory_space<vmem>>, vector<1x1x80x8xbf16>
      %125 = vector.shape_cast %124 : vector<1x1x80x8xbf16> to vector<80x8xbf16>
      %c2_149 = arith.constant 2 : index
      %c1_150 = arith.constant 1 : index
      %c0_151 = arith.constant 0 : index
      %c0_152 = arith.constant 0 : index
      %c0_153 = arith.constant 0 : index
      %126 = vector.load %arg5[%c2_149, %c1_150, %c0_151, %c0_152, %c0_153] : memref<3x3x3x8x8xbf16, #tpu.memory_space<vmem>>, vector<1x1x1x8x8xbf16>
      %127 = vector.shape_cast %126 : vector<1x1x1x8x8xbf16> to vector<8x8xbf16>
      %cst_154 = arith.constant dense<0.000000e+00> : vector<80x8xf32>
      %128 = tpu.matmul %125, %127, %cst_154 {dimension_numbers = #tpu.dot_dimension_numbers<[1], [0], [0], [1], [0, 0, 1, 1], [], []>} : vector<80x8xbf16>, vector<8x8xbf16>, vector<80x8xf32> -> vector<80x8xf32>
      %129 = arith.addf %123, %128 : vector<80x8xf32>
      %c0_155 = arith.constant 0 : index
      %c0_156 = arith.constant 0 : index
      %c11_157 = arith.constant 11 : index
      %c0_158 = arith.constant 0 : index
      %130 = vector.load %arg4[%c0_155, %c0_156, %c11_157, %c0_158] : memref<1x1x108x8xbf16, #tpu.memory_space<vmem>>, vector<1x1x80x8xbf16>
      %131 = vector.shape_cast %130 : vector<1x1x80x8xbf16> to vector<80x8xbf16>
      %c2_159 = arith.constant 2 : index
      %c1_160 = arith.constant 1 : index
      %c1_161 = arith.constant 1 : index
      %c0_162 = arith.constant 0 : index
      %c0_163 = arith.constant 0 : index
      %132 = vector.load %arg5[%c2_159, %c1_160, %c1_161, %c0_162, %c0_163] : memref<3x3x3x8x8xbf16, #tpu.memory_space<vmem>>, vector<1x1x1x8x8xbf16>
      %133 = vector.shape_cast %132 : vector<1x1x1x8x8xbf16> to vector<8x8xbf16>
      %cst_164 = arith.constant dense<0.000000e+00> : vector<80x8xf32>
      %134 = tpu.matmul %131, %133, %cst_164 {dimension_numbers = #tpu.dot_dimension_numbers<[1], [0], [0], [1], [0, 0, 1, 1], [], []>} : vector<80x8xbf16>, vector<8x8xbf16>, vector<80x8xf32> -> vector<80x8xf32>
      %135 = arith.addf %129, %134 : vector<80x8xf32>
      %c0_165 = arith.constant 0 : index
      %c0_166 = arith.constant 0 : index
      %c12_167 = arith.constant 12 : index
      %c0_168 = arith.constant 0 : index
      %136 = vector.load %arg4[%c0_165, %c0_166, %c12_167, %c0_168] : memref<1x1x108x8xbf16, #tpu.memory_space<vmem>>, vector<1x1x80x8xbf16>
      %137 = vector.shape_cast %136 : vector<1x1x80x8xbf16> to vector<80x8xbf16>
      %c2_169 = arith.constant 2 : index
      %c1_170 = arith.constant 1 : index
      %c2_171 = arith.constant 2 : index
      %c0_172 = arith.constant 0 : index
      %c0_173 = arith.constant 0 : index
      %138 = vector.load %arg5[%c2_169, %c1_170, %c2_171, %c0_172, %c0_173] : memref<3x3x3x8x8xbf16, #tpu.memory_space<vmem>>, vector<1x1x1x8x8xbf16>
      %139 = vector.shape_cast %138 : vector<1x1x1x8x8xbf16> to vector<8x8xbf16>
      %cst_174 = arith.constant dense<0.000000e+00> : vector<80x8xf32>
      %140 = tpu.matmul %137, %139, %cst_174 {dimension_numbers = #tpu.dot_dimension_numbers<[1], [0], [0], [1], [0, 0, 1, 1], [], []>} : vector<80x8xbf16>, vector<8x8xbf16>, vector<80x8xf32> -> vector<80x8xf32>
      %141 = arith.addf %135, %140 : vector<80x8xf32>
      %c0_175 = arith.constant 0 : index
      %c0_176 = arith.constant 0 : index
      %c20_177 = arith.constant 20 : index
      %c0_178 = arith.constant 0 : index
      %142 = vector.load %arg4[%c0_175, %c0_176, %c20_177, %c0_178] : memref<1x1x108x8xbf16, #tpu.memory_space<vmem>>, vector<1x1x80x8xbf16>
      %143 = vector.shape_cast %142 : vector<1x1x80x8xbf16> to vector<80x8xbf16>
      %c2_179 = arith.constant 2 : index
      %c2_180 = arith.constant 2 : index
      %c0_181 = arith.constant 0 : index
      %c0_182 = arith.constant 0 : index
      %c0_183 = arith.constant 0 : index
      %144 = vector.load %arg5[%c2_179, %c2_180, %c0_181, %c0_182, %c0_183] : memref<3x3x3x8x8xbf16, #tpu.memory_space<vmem>>, vector<1x1x1x8x8xbf16>
      %145 = vector.shape_cast %144 : vector<1x1x1x8x8xbf16> to vector<8x8xbf16>
      %cst_184 = arith.constant dense<0.000000e+00> : vector<80x8xf32>
      %146 = tpu.matmul %143, %145, %cst_184 {dimension_numbers = #tpu.dot_dimension_numbers<[1], [0], [0], [1], [0, 0, 1, 1], [], []>} : vector<80x8xbf16>, vector<8x8xbf16>, vector<80x8xf32> -> vector<80x8xf32>
      %147 = arith.addf %141, %146 : vector<80x8xf32>
      %c0_185 = arith.constant 0 : index
      %c0_186 = arith.constant 0 : index
      %c21_187 = arith.constant 21 : index
      %c0_188 = arith.constant 0 : index
      %148 = vector.load %arg4[%c0_185, %c0_186, %c21_187, %c0_188] : memref<1x1x108x8xbf16, #tpu.memory_space<vmem>>, vector<1x1x80x8xbf16>
      %149 = vector.shape_cast %148 : vector<1x1x80x8xbf16> to vector<80x8xbf16>
      %c2_189 = arith.constant 2 : index
      %c2_190 = arith.constant 2 : index
      %c1_191 = arith.constant 1 : index
      %c0_192 = arith.constant 0 : index
      %c0_193 = arith.constant 0 : index
      %150 = vector.load %arg5[%c2_189, %c2_190, %c1_191, %c0_192, %c0_193] : memref<3x3x3x8x8xbf16, #tpu.memory_space<vmem>>, vector<1x1x1x8x8xbf16>
      %151 = vector.shape_cast %150 : vector<1x1x1x8x8xbf16> to vector<8x8xbf16>
      %cst_194 = arith.constant dense<0.000000e+00> : vector<80x8xf32>
      %152 = tpu.matmul %149, %151, %cst_194 {dimension_numbers = #tpu.dot_dimension_numbers<[1], [0], [0], [1], [0, 0, 1, 1], [], []>} : vector<80x8xbf16>, vector<8x8xbf16>, vector<80x8xf32> -> vector<80x8xf32>
      %153 = arith.addf %147, %152 : vector<80x8xf32>
      %c0_195 = arith.constant 0 : index
      %c0_196 = arith.constant 0 : index
      %c22_197 = arith.constant 22 : index
      %c0_198 = arith.constant 0 : index
      %154 = vector.load %arg4[%c0_195, %c0_196, %c22_197, %c0_198] : memref<1x1x108x8xbf16, #tpu.memory_space<vmem>>, vector<1x1x80x8xbf16>
      %155 = vector.shape_cast %154 : vector<1x1x80x8xbf16> to vector<80x8xbf16>
      %c2_199 = arith.constant 2 : index
      %c2_200 = arith.constant 2 : index
      %c2_201 = arith.constant 2 : index
      %c0_202 = arith.constant 0 : index
      %c0_203 = arith.constant 0 : index
      %156 = vector.load %arg5[%c2_199, %c2_200, %c2_201, %c0_202, %c0_203] : memref<3x3x3x8x8xbf16, #tpu.memory_space<vmem>>, vector<1x1x1x8x8xbf16>
      %157 = vector.shape_cast %156 : vector<1x1x1x8x8xbf16> to vector<8x8xbf16>
      %cst_204 = arith.constant dense<0.000000e+00> : vector<80x8xf32>
      %158 = tpu.matmul %155, %157, %cst_204 {dimension_numbers = #tpu.dot_dimension_numbers<[1], [0], [0], [1], [0, 0, 1, 1], [], []>} : vector<80x8xbf16>, vector<8x8xbf16>, vector<80x8xf32> -> vector<80x8xf32>
      %159 = arith.addf %153, %158 : vector<80x8xf32>
      %160 = arith.addf %106, %159 : vector<80x8xf32>
      %c0_205 = arith.constant 0 : index
      %c0_206 = arith.constant 0 : index
      %c0_207 = arith.constant 0 : index
      %c0_208 = arith.constant 0 : index
      %161 = vector.load %arg6[%c0_205, %c0_206, %c0_207, %c0_208] : memref<1x1x80x8xf32, #tpu.memory_space<vmem>>, vector<1x1x80x8xf32>
      %162 = vector.shape_cast %161 : vector<1x1x80x8xf32> to vector<80x8xf32>
      %163 = vector.shape_cast %160 : vector<80x8xf32> to vector<1x1x80x8xf32>
      tpu.vector_store %arg6[%c0_205, %c0_206, %c0_207, %c0_208], %163 {strides = array<i32>} : memref<1x1x80x8xf32, #tpu.memory_space<vmem>>, vector<1x1x80x8xf32>,
    } else {
    }
    %c0_86 = arith.constant 0 : index
    %c0_87 = arith.constant 0 : index
    %c0_88 = arith.constant 0 : index
    %c0_89 = arith.constant 0 : index
    %62 = vector.load %arg6[%c0_86, %c0_87, %c0_88, %c0_89] : memref<1x1x80x8xf32, #tpu.memory_space<vmem>>, vector<1x1x80x8xf32>
    %63 = vector.shape_cast %62 : vector<1x1x80x8xf32> to vector<80x8xf32>
    %64 = tpu.iota {dimensions = array<i32: 0>} : vector<80x1xi32>
    %c10_i32 = arith.constant 10 : i32
    %c0_i32_90 = arith.constant 0 : i32
    %65 = arith.cmpi eq, %c10_i32, %c0_i32_90 : i32
    %c1_i32 = arith.constant 1 : i32
    %66 = arith.select %65, %c1_i32, %c10_i32 : i32
    %67 = vector.broadcast %66 : i32 to vector<80x1xi32>
    %68 = arith.remsi %64, %67 : vector<80x1xi32>
    %c0_i32_91 = arith.constant 0 : i32
    %69 = vector.broadcast %c0_i32_91 : i32 to vector<80x1xi32>
    %70 = arith.cmpi ne, %68, %69 : vector<80x1xi32>
    %c0_i32_92 = arith.constant 0 : i32
    %71 = vector.broadcast %c0_i32_92 : i32 to vector<80x1xi32>
    %72 = arith.cmpi slt, %68, %71 : vector<80x1xi32>
    %c0_i32_93 = arith.constant 0 : i32
    %73 = arith.cmpi slt, %66, %c0_i32_93 : i32
    %74 = vector.broadcast %73 : i1 to vector<80x1xi1>
    %75 = vector.broadcast %74 : vector<80x1xi1> to vector<80x1xi1>
    %76 = arith.xori %72, %75 : vector<80x1xi1>
    %77 = arith.andi %76, %70 : vector<80x1xi1>
    %78 = vector.broadcast %66 : i32 to vector<80x1xi32>
    %79 = arith.addi %68, %78 : vector<80x1xi32>
    %80 = arith.select %77, %79, %68 : vector<80x1xi1>, vector<80x1xi32>
    %c8_i32 = arith.constant 8 : i32
    %81 = vector.broadcast %c8_i32 : i32 to vector<80x1xi32>
    %82 = arith.cmpi slt, %80, %81 : vector<80x1xi32>
    %cst_94 = arith.constant 0.000000e+00 : f32
    %83 = vector.shape_cast %82 : vector<80x1xi1> to vector<80x1xi1>
    %84 = vector.broadcast %83 : vector<80x1xi1> to vector<80x8xi1>
    %85 = vector.broadcast %cst_94 : f32 to vector<80x8xf32>
    %86 = arith.select %84, %63, %85 : vector<80x8xi1>, vector<80x8xf32>
    %c0_i32_95 = arith.constant 0 : i32
    %87 = arith.cmpi eq, %arg1, %c0_i32_95 : i32
    %88 = arith.extui %87 : i1 to i32
    %c0_i32_96 = arith.constant 0 : i32
    %89 = arith.cmpi ne, %88, %c0_i32_96 : i32
    scf.if %89 {
      %cst_111 = arith.constant 0.000000e+00 : f32
      %105 = vector.broadcast %cst_111 : f32 to vector<1x8x8xf32>
      %c0_112 = arith.constant 0 : index
      %c0_113 = arith.constant 0 : index
      %c0_114 = arith.constant 0 : index
      %106 = vector.load %arg7[%c0_112, %c0_113, %c0_114] : memref<1x8x8xf32, #tpu.memory_space<vmem>>, vector<1x8x8xf32>
      tpu.vector_store %arg7[%c0_112, %c0_113, %c0_114], %105 {strides = array<i32>} : memref<1x8x8xf32, #tpu.memory_space<vmem>>, vector<1x8x8xf32>,
      %cst_115 = arith.constant 0.000000e+00 : f32
      %107 = vector.broadcast %cst_115 : f32 to vector<1x8x8xf32>
      %c0_116 = arith.constant 0 : index
      %c0_117 = arith.constant 0 : index
      %c0_118 = arith.constant 0 : index
      %108 = vector.load %arg8[%c0_116, %c0_117, %c0_118] : memref<1x8x8xf32, #tpu.memory_space<vmem>>, vector<1x8x8xf32>
      tpu.vector_store %arg8[%c0_116, %c0_117, %c0_118], %107 {strides = array<i32>} : memref<1x8x8xf32, #tpu.memory_space<vmem>>, vector<1x8x8xf32>,
    } else {
    }
    %c0_97 = arith.constant 0 : index
    %c0_98 = arith.constant 0 : index
    %c0_99 = arith.constant 0 : index
    %90 = vector.load %arg7[%c0_97, %c0_98, %c0_99] : memref<1x8x8xf32, #tpu.memory_space<vmem>>, vector<1x8x8xf32>
    %cst_100 = arith.constant dense<0.000000e+00> : vector<8xf32>
    %91 = vector.multi_reduction <add>, %86, %cst_100 [0] : vector<80x8xf32> to vector<8xf32>
    %92 = vector.shape_cast %91 : vector<8xf32> to vector<1x8xf32>
    %93 = vector.shape_cast %92 : vector<1x8xf32> to vector<1x1x8xf32>
    %94 = vector.broadcast %93 : vector<1x1x8xf32> to vector<1x8x8xf32>
    %95 = arith.addf %90, %94 : vector<1x8x8xf32>
    %c0_101 = arith.constant 0 : index
    %c0_102 = arith.constant 0 : index
    %c0_103 = arith.constant 0 : index
    %96 = vector.load %arg7[%c0_101, %c0_102, %c0_103] : memref<1x8x8xf32, #tpu.memory_space<vmem>>, vector<1x8x8xf32>
    tpu.vector_store %arg7[%c0_101, %c0_102, %c0_103], %95 {strides = array<i32>} : memref<1x8x8xf32, #tpu.memory_space<vmem>>, vector<1x8x8xf32>,
    %c0_104 = arith.constant 0 : index
    %c0_105 = arith.constant 0 : index
    %c0_106 = arith.constant 0 : index
    %97 = vector.load %arg8[%c0_104, %c0_105, %c0_106] : memref<1x8x8xf32, #tpu.memory_space<vmem>>, vector<1x8x8xf32>
    %98 = arith.mulf %86, %86 : vector<80x8xf32>
    %cst_107 = arith.constant dense<0.000000e+00> : vector<8xf32>
    %99 = vector.multi_reduction <add>, %98, %cst_107 [0] : vector<80x8xf32> to vector<8xf32>
    %100 = vector.shape_cast %99 : vector<8xf32> to vector<1x8xf32>
    %101 = vector.shape_cast %100 : vector<1x8xf32> to vector<1x1x8xf32>
    %102 = vector.broadcast %101 : vector<1x1x8xf32> to vector<1x8x8xf32>
    %103 = arith.addf %97, %102 : vector<1x8x8xf32>
    %c0_108 = arith.constant 0 : index
    %c0_109 = arith.constant 0 : index
    %c0_110 = arith.constant 0 : index
    %104 = vector.load %arg8[%c0_108, %c0_109, %c0_110] : memref<1x8x8xf32, #tpu.memory_space<vmem>>, vector<1x8x8xf32>
    tpu.vector_store %arg8[%c0_108, %c0_109, %c0_110], %103 {strides = array<i32>} : memref<1x8x8xf32, #tpu.memory_space<vmem>>, vector<1x8x8xf32>,
    return
  }
  func.func @transform_0(%arg0: i32, %arg1: i32) -> (i32, i32, i32, i32) {
    %c1_i32 = arith.constant 1 : i32
    %0 = arith.subi %arg1, %c1_i32 : i32
    %c0_i32 = arith.constant 0 : i32
    %1 = arith.maxsi %0, %c0_i32 : i32
    %c0_i32_0 = arith.constant 0 : i32
    %c0_i32_1 = arith.constant 0 : i32
    %c0_i32_2 = arith.constant 0 : i32
    return %arg0, %1, %c0_i32_0, %c0_i32_1 : i32, i32, i32, i32
  }
  func.func @transform_1(%arg0: i32, %arg1: i32) -> (i32, i32, i32, i32) {
    %c0_i32 = arith.constant 0 : i32
    %c0_i32_0 = arith.constant 0 : i32
    %c0_i32_1 = arith.constant 0 : i32
    return %arg0, %arg1, %c0_i32, %c0_i32_0 : i32, i32, i32, i32
  }
  func.func @transform_2(%arg0: i32, %arg1: i32) -> (i32, i32, i32, i32) {
    %c1_i32 = arith.constant 1 : i32
    %0 = arith.addi %arg1, %c1_i32 : i32
    %c7_i32 = arith.constant 7 : i32
    %1 = arith.minsi %0, %c7_i32 : i32
    %c0_i32 = arith.constant 0 : i32
    %c0_i32_0 = arith.constant 0 : i32
    %c0_i32_1 = arith.constant 0 : i32
    return %arg0, %1, %c0_i32, %c0_i32_0 : i32, i32, i32, i32
  }
  func.func @transform_3(%arg0: i32, %arg1: i32) -> (i32, i32, i32, i32, i32) {
    %c0_i32 = arith.constant 0 : i32
    %c0_i32_0 = arith.constant 0 : i32
    %c0_i32_1 = arith.constant 0 : i32
    %c0_i32_2 = arith.constant 0 : i32
    %c0_i32_3 = arith.constant 0 : i32
    %c0_i32_4 = arith.constant 0 : i32
    return %c0_i32, %c0_i32_0, %c0_i32_1, %c0_i32_2, %c0_i32_3 : i32, i32, i32, i32, i32
  }
  func.func @transform_4(%arg0: i32, %arg1: i32) -> (i32, i32, i32, i32) {
    %c0_i32 = arith.constant 0 : i32
    %c0_i32_0 = arith.constant 0 : i32
    %c0_i32_1 = arith.constant 0 : i32
    return %arg0, %arg1, %c0_i32, %c0_i32_0 : i32, i32, i32, i32
  }
  func.func @transform_5(%arg0: i32, %arg1: i32) -> (i32, i32, i32) {
    %c0_i32 = arith.constant 0 : i32
    %c0_i32_0 = arith.constant 0 : i32
    %c0_i32_1 = arith.constant 0 : i32
    return %arg0, %c0_i32, %c0_i32_0 : i32, i32, i32
  }
  func.func @transform_6(%arg0: i32, %arg1: i32) -> (i32, i32, i32) {
    %c0_i32 = arith.constant 0 : i32
    %c0_i32_0 = arith.constant 0 : i32
    %c0_i32_1 = arith.constant 0 : i32
    return %arg0, %c0_i32, %c0_i32_0 : i32, i32, i32
  }
}

module attributes {stable_mosaic.version = 11 : i64} {
  func.func @kernel(%arg0: i32, %arg1: i32, %arg2: memref<1x1x8x10x8xf32, #tpu.memory_space<vmem>>, %arg3: memref<1x8xf32, #tpu.memory_space<vmem>>, %arg4: memref<1x8xf32, #tpu.memory_space<vmem>>, %arg5: memref<1x1x8x8x8xbf16, #tpu.memory_space<vmem>>) attributes {dimension_semantics = [#tpu.dimension_semantics<parallel>, #tpu.dimension_semantics<parallel>], iteration_bounds = array<i64: 2, 8>, scalar_prefetch = 0 : i64, scratch_operands = 0 : i64, tpu.core_type = #tpu.core_type<tc>, window_params = [{transform_indices = @transform_0, window_bounds = array<i64: 1, 1, 8, 10, 8>}, {pipeline_mode = #tpu.pipeline_mode<synchronous>, transform_indices = @transform_1, window_bounds = array<i64: 1, 8>}, {pipeline_mode = #tpu.pipeline_mode<synchronous>, transform_indices = @transform_2, window_bounds = array<i64: 1, 8>}, {transform_indices = @transform_3, window_bounds = array<i64: 1, 1, 8, 8, 8>}]} {
    %c0 = arith.constant 0 : index
    %c0_0 = arith.constant 0 : index
    %c0_1 = arith.constant 0 : index
    %c0_2 = arith.constant 0 : index
    %c0_3 = arith.constant 0 : index
    %0 = vector.load %arg2[%c0, %c0_0, %c0_1, %c0_2, %c0_3] : memref<1x1x8x10x8xf32, #tpu.memory_space<vmem>>, vector<1x1x8x8x8xf32>
    %1 = vector.shape_cast %0 : vector<1x1x8x8x8xf32> to vector<8x8x8xf32>
    %c0_4 = arith.constant 0 : index
    %c0_5 = arith.constant 0 : index
    %2 = vector.load %arg3[%c0_4, %c0_5] : memref<1x8xf32, #tpu.memory_space<vmem>>, vector<1x8xf32>
    %3 = vector.shape_cast %2 : vector<1x8xf32> to vector<1x1x8xf32>
    %4 = vector.broadcast %3 : vector<1x1x8xf32> to vector<8x8x8xf32>
    %5 = arith.mulf %1, %4 : vector<8x8x8xf32>
    %c0_6 = arith.constant 0 : index
    %c0_7 = arith.constant 0 : index
    %6 = vector.load %arg4[%c0_6, %c0_7] : memref<1x8xf32, #tpu.memory_space<vmem>>, vector<1x8xf32>
    %7 = vector.shape_cast %6 : vector<1x8xf32> to vector<1x1x8xf32>
    %8 = vector.broadcast %7 : vector<1x1x8xf32> to vector<8x8x8xf32>
    %9 = arith.addf %5, %8 : vector<8x8x8xf32>
    %cst = arith.constant 2.000000e-01 : f32
    %10 = vector.broadcast %cst : f32 to vector<8x8x8xf32>
    %11 = arith.mulf %10, %9 : vector<8x8x8xf32>
    %12 = arith.maximumf %9, %11 : vector<8x8x8xf32>
    %13 = arith.truncf %12 : vector<8x8x8xf32> to vector<8x8x8xbf16>
    %c0_8 = arith.constant 0 : index
    %c0_9 = arith.constant 0 : index
    %c0_10 = arith.constant 0 : index
    %c0_11 = arith.constant 0 : index
    %c0_12 = arith.constant 0 : index
    %14 = vector.load %arg5[%c0_8, %c0_9, %c0_10, %c0_11, %c0_12] : memref<1x1x8x8x8xbf16, #tpu.memory_space<vmem>>, vector<1x1x8x8x8xbf16>
    %15 = vector.shape_cast %14 : vector<1x1x8x8x8xbf16> to vector<8x8x8xbf16>
    %16 = vector.shape_cast %13 : vector<8x8x8xbf16> to vector<1x1x8x8x8xbf16>
    tpu.vector_store %arg5[%c0_8, %c0_9, %c0_10, %c0_11, %c0_12], %16 {strides = array<i32>} : memref<1x1x8x8x8xbf16, #tpu.memory_space<vmem>>, vector<1x1x8x8x8xbf16>,
    return
  }
  func.func @transform_0(%arg0: i32, %arg1: i32) -> (i32, i32, i32, i32, i32) {
    %c0_i32 = arith.constant 0 : i32
    %c0_i32_0 = arith.constant 0 : i32
    %c0_i32_1 = arith.constant 0 : i32
    %c0_i32_2 = arith.constant 0 : i32
    return %arg0, %arg1, %c0_i32, %c0_i32_0, %c0_i32_1 : i32, i32, i32, i32, i32
  }
  func.func @transform_1(%arg0: i32, %arg1: i32) -> (i32, i32) {
    %c0_i32 = arith.constant 0 : i32
    %c0_i32_0 = arith.constant 0 : i32
    %c0_i32_1 = arith.constant 0 : i32
    return %c0_i32, %c0_i32_0 : i32, i32
  }
  func.func @transform_2(%arg0: i32, %arg1: i32) -> (i32, i32) {
    %c0_i32 = arith.constant 0 : i32
    %c0_i32_0 = arith.constant 0 : i32
    %c0_i32_1 = arith.constant 0 : i32
    return %c0_i32, %c0_i32_0 : i32, i32
  }
  func.func @transform_3(%arg0: i32, %arg1: i32) -> (i32, i32, i32, i32, i32) {
    %c0_i32 = arith.constant 0 : i32
    %c0_i32_0 = arith.constant 0 : i32
    %c0_i32_1 = arith.constant 0 : i32
    %c0_i32_2 = arith.constant 0 : i32
    return %arg0, %arg1, %c0_i32, %c0_i32_0, %c0_i32_1 : i32, i32, i32, i32, i32
  }
}

module attributes {stable_mosaic.version = 11 : i64} {
  func.func @kernel(%arg0: i32, %arg1: i32, %arg2: memref<1x1x8x10x8xf32, #tpu.memory_space<vmem>>, %arg3: memref<1x8xf32, #tpu.memory_space<vmem>>, %arg4: memref<1x8xf32, #tpu.memory_space<vmem>>, %arg5: memref<1x1x8x8x8xf32, #tpu.memory_space<vmem>>) attributes {dimension_semantics = [#tpu.dimension_semantics<parallel>, #tpu.dimension_semantics<parallel>], iteration_bounds = array<i64: 2, 8>, scalar_prefetch = 0 : i64, scratch_operands = 0 : i64, tpu.core_type = #tpu.core_type<tc>, window_params = [{transform_indices = @transform_0, window_bounds = array<i64: 1, 1, 8, 10, 8>}, {pipeline_mode = #tpu.pipeline_mode<synchronous>, transform_indices = @transform_1, window_bounds = array<i64: 1, 8>}, {pipeline_mode = #tpu.pipeline_mode<synchronous>, transform_indices = @transform_2, window_bounds = array<i64: 1, 8>}, {transform_indices = @transform_3, window_bounds = array<i64: 1, 1, 8, 8, 8>}]} {
    %c0 = arith.constant 0 : index
    %c0_0 = arith.constant 0 : index
    %c0_1 = arith.constant 0 : index
    %c0_2 = arith.constant 0 : index
    %c0_3 = arith.constant 0 : index
    %0 = vector.load %arg2[%c0, %c0_0, %c0_1, %c0_2, %c0_3] : memref<1x1x8x10x8xf32, #tpu.memory_space<vmem>>, vector<1x1x8x8x8xf32>
    %1 = vector.shape_cast %0 : vector<1x1x8x8x8xf32> to vector<8x8x8xf32>
    %c0_4 = arith.constant 0 : index
    %c0_5 = arith.constant 0 : index
    %2 = vector.load %arg3[%c0_4, %c0_5] : memref<1x8xf32, #tpu.memory_space<vmem>>, vector<1x8xf32>
    %3 = vector.shape_cast %2 : vector<1x8xf32> to vector<1x1x8xf32>
    %4 = vector.broadcast %3 : vector<1x1x8xf32> to vector<8x8x8xf32>
    %5 = arith.mulf %1, %4 : vector<8x8x8xf32>
    %c0_6 = arith.constant 0 : index
    %c0_7 = arith.constant 0 : index
    %6 = vector.load %arg4[%c0_6, %c0_7] : memref<1x8xf32, #tpu.memory_space<vmem>>, vector<1x8xf32>
    %7 = vector.shape_cast %6 : vector<1x8xf32> to vector<1x1x8xf32>
    %8 = vector.broadcast %7 : vector<1x1x8xf32> to vector<8x8x8xf32>
    %9 = arith.addf %5, %8 : vector<8x8x8xf32>
    %cst = arith.constant 2.000000e-01 : f32
    %10 = vector.broadcast %cst : f32 to vector<8x8x8xf32>
    %11 = arith.mulf %10, %9 : vector<8x8x8xf32>
    %12 = arith.maximumf %9, %11 : vector<8x8x8xf32>
    %c0_8 = arith.constant 0 : index
    %c0_9 = arith.constant 0 : index
    %c0_10 = arith.constant 0 : index
    %c0_11 = arith.constant 0 : index
    %c0_12 = arith.constant 0 : index
    %13 = vector.load %arg5[%c0_8, %c0_9, %c0_10, %c0_11, %c0_12] : memref<1x1x8x8x8xf32, #tpu.memory_space<vmem>>, vector<1x1x8x8x8xf32>
    %14 = vector.shape_cast %13 : vector<1x1x8x8x8xf32> to vector<8x8x8xf32>
    %15 = vector.shape_cast %12 : vector<8x8x8xf32> to vector<1x1x8x8x8xf32>
    tpu.vector_store %arg5[%c0_8, %c0_9, %c0_10, %c0_11, %c0_12], %15 {strides = array<i32>} : memref<1x1x8x8x8xf32, #tpu.memory_space<vmem>>, vector<1x1x8x8x8xf32>,
    return
  }
  func.func @transform_0(%arg0: i32, %arg1: i32) -> (i32, i32, i32, i32, i32) {
    %c0_i32 = arith.constant 0 : i32
    %c0_i32_0 = arith.constant 0 : i32
    %c0_i32_1 = arith.constant 0 : i32
    %c0_i32_2 = arith.constant 0 : i32
    return %arg0, %arg1, %c0_i32, %c0_i32_0, %c0_i32_1 : i32, i32, i32, i32, i32
  }
  func.func @transform_1(%arg0: i32, %arg1: i32) -> (i32, i32) {
    %c0_i32 = arith.constant 0 : i32
    %c0_i32_0 = arith.constant 0 : i32
    %c0_i32_1 = arith.constant 0 : i32
    return %c0_i32, %c0_i32_0 : i32, i32
  }
  func.func @transform_2(%arg0: i32, %arg1: i32) -> (i32, i32) {
    %c0_i32 = arith.constant 0 : i32
    %c0_i32_0 = arith.constant 0 : i32
    %c0_i32_1 = arith.constant 0 : i32
    return %c0_i32, %c0_i32_0 : i32, i32
  }
  func.func @transform_3(%arg0: i32, %arg1: i32) -> (i32, i32, i32, i32, i32) {
    %c0_i32 = arith.constant 0 : i32
    %c0_i32_0 = arith.constant 0 : i32
    %c0_i32_1 = arith.constant 0 : i32
    %c0_i32_2 = arith.constant 0 : i32
    return %arg0, %arg1, %c0_i32, %c0_i32_0, %c0_i32_1 : i32, i32, i32, i32, i32
  }
}

</mosaic_0001>

<llo_original>
// kernel: tile.8
$region0: #{tile.8}
  #allocation0 [shape = 's32[1]{0}', space=sflag, size = 0x4, scoped, tag = 'scoped memory for tile.8']
  %s0 = inlined_call_operand.vmem [shape: f32[4], index: 0, kind: input, shape index: {}]
  %s1 = inlined_call_operand.vmem [shape: f32[8,4], index: 1, kind: output, shape index: {}]
  // Predicated region
  $region2: #{tile.8} parent=0 // pred_check
    _
  $region3: #{tile.8} parent=0 // pred_check_branch
    %3 = sbr.rel (0) target = $region5
  $region4: #{tile.8} parent=0 // pred_region
    _
  $region5: #{tile.8} parent=0 // pred_fallthru
    _
  %v4 = vld [vmem:[%s0] ss:$0 sm:$0xff]
  %5 = vst [vmem:[%s1] sm:$0xff] %v4

// kernel: tile.9
$region0: #{tile.9}
  %s0 = inlined_call_operand.vmem [shape: f32[8,4], index: 0, kind: input, shape index: {}]
  %s1 = inlined_call_operand.vmem [shape: f32[1,32], index: 1, kind: output, shape index: {}]
  $region1: #{tile.9} parent=0
    #allocation0 [shape = 'u8[4096]{0}', space=vmem, size = 0x1000, scoped, tag = 'scoped mem for output reshape']
    %v2 = vld [vmem:[%s0] sm:$0x1]
    %vm3 = vcmask 31744
    %4 = vst.msk [vmem:[#allocation0] sm:$0x1] %vm3, %v2
    %s5 = scalar_lea.vmem %s0, 7
    %v6 = vld [vmem:[%s5] sm:$0x1]
    %7 = vrot.lane.b32.xlu0 %v6, 28
    %v8 = vpop.permute.xlu0 %7
    %vm9 = vcmask 261344
    %10 = vst.msk [vmem:[#allocation0] sm:$0x1] %vm9, %v8
    %s11 = scalar_lea.vmem %s0, 6
    %v12 = vld [vmem:[%s11] sm:$0x1]
    %13 = vrot.lane.b32.xlu0 %v12, 24
    %v14 = vpop.permute.xlu0 %13
    %vm15 = vcmask 228544
    %16 = vst.msk [vmem:[#allocation0] sm:$0x1] %vm15, %v14
    %s17 = scalar_lea.vmem %s0, 5
    %v18 = vld [vmem:[%s17] sm:$0x1]
    %19 = vrot.lane.b32.xlu0 %v18, 20
    %v20 = vpop.permute.xlu0 %19
    %vm21 = vcmask 195744
    %22 = vst.msk [vmem:[#allocation0] sm:$0x1] %vm21, %v20
    %s23 = scalar_lea.vmem %s0, 4
    %v24 = vld [vmem:[%s23] sm:$0x1]
    %25 = vrot.lane.b32.xlu0 %v24, 16
    %v26 = vpop.permute.xlu0 %25
    %vm27 = vcmask 162944
    %28 = vst.msk [vmem:[#allocation0] sm:$0x1] %vm27, %v26
    %s29 = scalar_lea.vmem %s0, 3
    %v30 = vld [vmem:[%s29] sm:$0x1]
    %31 = vrot.lane.b32.xlu0 %v30, 12
    %v32 = vpop.permute.xlu0 %31
    %vm33 = vcmask 130144
    %34 = vst.msk [vmem:[#allocation0] sm:$0x1] %vm33, %v32
    %s35 = scalar_lea.vmem %s0, 2
    %v36 = vld [vmem:[%s35] sm:$0x1]
    %37 = vrot.lane.b32.xlu0 %v36, 8
    %v38 = vpop.permute.xlu0 %37
    %vm39 = vcmask 97344
    %40 = vst.msk [vmem:[#allocation0] sm:$0x1] %vm39, %v38
    %s41 = scalar_lea.vmem %s0, 1
    %v42 = vld [vmem:[%s41] sm:$0x1]
    %43 = vrot.lane.b32.xlu0 %v42, 4
    %v44 = vpop.permute.xlu0 %43
    %vm45 = vcmask 64544
    %46 = vst.msk [vmem:[#allocation0] sm:$0x1] %vm45, %v44
    %s48 = sshllo.u32 0, 1
    %v50 = vld [vmem:[#allocation0] sm:%s48]
    %s51 = sshllo.u32 0, 1
    %52 = vst [vmem:[%s1] sm:%s51] %v50

// kernel: up_block_forward.5
$region0: #{up_block_forward.5}
  #allocation0 [shape = 'u32[]', space=smem, size = 0x4, offset = 0x4, fixed_abs, tag = 'smem constant byte address 0x4 - core index']
  #allocation1 [shape = 'u32[144,128]{1,0:T(1,128)}', space=vmem, size = 0x12000, scoped, tag = 'internal scratch']
  %s0 = inlined_call_operand.vmem [shape: bf16[2,4,16,8], index: 0, kind: input, shape index: {}]
  %s1 = inlined_call_operand.vmem [shape: bf16[8,32], index: 1, kind: input, shape index: {}]
  %s2 = inlined_call_operand.vmem [shape: f32[1,32], index: 2, kind: input, shape index: {}]
  %s3 = inlined_call_operand.vmem [shape: bf16[2,4,16,32], index: 3, kind: output, shape index: {}]
  %s4 = sld [smem:[#allocation0]]
  $region45: #{up_block_forward.5} parent=0
    _
  %s6 = ssub.s32 1, %s4
  %s7 = scalar_select 0, %s6, %s4
  loop: start=0, step=1, limit=10
  $region2: #{up_block_forward.5} parent=0 // loop_pre_header
    _
  $region3: #{up_block_forward.5} parent=0 // loop_header
    %s9 = sphi 0, %s13
    %p10 = scmp.ge.s32.totalorder %s9, 10
    %s16 = sphi 0, %s28
    %s17 = sphi 0, %s24
    %s18 = sphi 0, %s16
    %s19 = sphi 0, %s17
    %s20 = sphi 0, %s18
    %s21 = sphi 0, %s19
    %s33 = sphi 0, %s35
    %s36 = sphi 0, %s33
    %s37 = sphi 0, %s36
    %s53 = sphi 0, %s37
    %s57 = sphi 0, %s57
    %s59 = sphi 0, %s57
    %s60 = sphi 0, %s59
    %s74 = sphi 0, %s60
    %s78 = sphi 0, %s78
    %s80 = sphi 0, %s78
    %s81 = sphi 0, %s80
    %s95 = sphi 0, %s81
    %s103 = sphi 0, %s105
    %s106 = sphi 0, %s103
    %s107 = sphi 0, %s106
    %s123 = sphi 0, %s107
  $region4: #{up_block_forward.5} parent=0 // loop_header_branch
    %12 = sbr.rel (%p10) target = $region8
  $region5: #{up_block_forward.5} parent=0 // loop_body
    %s14 = ssub.s32 %s9, 1
    %s15 = ssub.s32 %s9, 2
    %s22 = sadd.s32 1, %s17
    %p23 = scmp.ge.s32.totalorder %s22, 4
    %s24 = scalar_select %p23, 0, %s22
    %s25 = sadd.s32 1, %s16
    %s26 = scalar_select %p23, %s25, %s16
    %p27 = scmp.ge.s32.totalorder %s26, 2
    %s28 = scalar_select %p27, 0, %s26
    %s29 = ssub.s32 %s16, %s28
    %s30 = ssub.s32 %s17, %s24
    %s31 = sor.u32 %s29, %s30
    %p32 = scmp.eq.s32.totalorder %s31, 0
    %s34 = sadd.s32 %s33, 1
    %s35 = scalar_select %p32, %s33, %s34
    %p38 = pneg %p32
    %p39 = scmp.eq.s32.totalorder %s9, 7
    %p40 = por %p38, %p39
    %p41 = scmp.ne.s32.totalorder %s33, %s36
    %p42 = scmp.eq.s32.totalorder %s9, 0
    %p43 = por %p41, %p42
    %p44 = scmp.ne.s32.totalorder %s33, %s36
    %p45 = scmp.eq.s32.totalorder %s14, 7
    %p46 = por %p44, %p45
    %p47 = scmp.ne.s32.totalorder %s36, %s37
    %p48 = scmp.eq.s32.totalorder %s14, 0
    %p49 = por %p47, %p48
    %p50 = scmp.ne.s32.totalorder %s36, %s37
    %p51 = scmp.eq.s32.totalorder %s15, 7
    %p52 = por %p50, %p51
    %p54 = scmp.ne.s32.totalorder %s37, %s53
    %p55 = scmp.eq.s32.totalorder %s15, 0
    %p56 = por %p54, %p55
    %s58 = sadd.s32 %s57, 1
    %p61 = scmp.eq.s32.totalorder %s9, 7
    %p62 = scmp.ne.s32.totalorder %s57, %s59
    %p63 = scmp.eq.s32.totalorder %s9, 0
    %p64 = por %p62, %p63
    %p65 = scmp.ne.s32.totalorder %s57, %s59
    %p66 = scmp.eq.s32.totalorder %s14, 7
    %p67 = por %p65, %p66
    %p68 = scmp.ne.s32.totalorder %s59, %s60
    %p69 = scmp.eq.s32.totalorder %s14, 0
    %p70 = por %p68, %p69
    %p71 = scmp.ne.s32.totalorder %s59, %s60
    %p72 = scmp.eq.s32.totalorder %s15, 7
    %p73 = por %p71, %p72
    %p75 = scmp.ne.s32.totalorder %s60, %s74
    %p76 = scmp.eq.s32.totalorder %s15, 0
    %p77 = por %p75, %p76
    %s79 = sadd.s32 %s78, 1
    %p82 = scmp.eq.s32.totalorder %s9, 7
    %p83 = scmp.ne.s32.totalorder %s78, %s80
    %p84 = scmp.eq.s32.totalorder %s9, 0
    %p85 = por %p83, %p84
    %p86 = scmp.ne.s32.totalorder %s78, %s80
    %p87 = scmp.eq.s32.totalorder %s14, 7
    %p88 = por %p86, %p87
    %p89 = scmp.ne.s32.totalorder %s80, %s81
    %p90 = scmp.eq.s32.totalorder %s14, 0
    %p91 = por %p89, %p90
    %p92 = scmp.ne.s32.totalorder %s80, %s81
    %p93 = scmp.eq.s32.totalorder %s15, 7
    %p94 = por %p92, %p93
    %p96 = scmp.ne.s32.totalorder %s81, %s95
    %p97 = scmp.eq.s32.totalorder %s15, 0
    %p98 = por %p96, %p97
    %s99 = ssub.s32 %s16, %s28
    %s100 = ssub.s32 %s17, %s24
    %s101 = sor.u32 %s99, %s100
    %p102 = scmp.eq.s32.totalorder %s101, 0
    %s104 = sadd.s32 %s103, 1
    %s105 = scalar_select %p102, %s103, %s104
    %p108 = pneg %p102
    %p109 = scmp.eq.s32.totalorder %s9, 7
    %p110 = por %p108, %p109
    %p111 = scmp.ne.s32.totalorder %s103, %s106
    %p112 = scmp.eq.s32.totalorder %s9, 0
    %p113 = por %p111, %p112
    %p114 = scmp.ne.s32.totalorder %s103, %s106
    %p115 = scmp.eq.s32.totalorder %s14, 7
    %p116 = por %p114, %p115
    %p117 = scmp.ne.s32.totalorder %s106, %s107
    %p118 = scmp.eq.s32.totalorder %s14, 0
    %p119 = por %p117, %p118
    %p120 = scmp.ne.s32.totalorder %s106, %s107
    %p121 = scmp.eq.s32.totalorder %s15, 7
    %p122 = por %p120, %p121
    %p124 = scmp.ne.s32.totalorder %s107, %s123
    %p125 = scmp.eq.s32.totalorder %s15, 0
    %p126 = por %p124, %p125
    %p127 = scmp.le.s32.totalorder 1, %s9
    %p128 = scmp.lt.s32.totalorder %s9, 9
    %p129 = pnand %p127, %p128
    %p130 = pneg %p129
    // Predicated region
    $region9: #{up_block_forward.5} parent=5 // pred_check
      _
    $region10: #{up_block_forward.5} parent=5 // pred_check_branch
      %132 = sbr.rel (%p129) target = $region12
    $region11: #{up_block_forward.5} parent=5 // pred_region
      %s133 = ssub.s32 %s9, 1
      // Predicated region
      $region13: #{up_block_forward.5} parent=11 // pred_check
        %p134 = pneg %p70
      $region14: #{up_block_forward.5} parent=11 // pred_check_branch
        %136 = sbr.rel (%p134) target = $region16
      $region15: #{up_block_forward.5} parent=11 // pred_region
        _
      $region16: #{up_block_forward.5} parent=11 // pred_fallthru
        _
      // Predicated region
      $region17: #{up_block_forward.5} parent=11 // pred_check
        %p137 = pneg %p91
      $region18: #{up_block_forward.5} parent=11 // pred_check_branch
        %139 = sbr.rel (%p137) target = $region20
      $region19: #{up_block_forward.5} parent=11 // pred_region
        _
      $region20: #{up_block_forward.5} parent=11 // pred_fallthru
        _
    $region12: #{up_block_forward.5} parent=5 // pred_fallthru
      _
    %p140 = scmp.lt.s32.totalorder %s9, 8
    // Predicated region
    $region21: #{up_block_forward.5} parent=5 // pred_check
      %p141 = pneg %p140
    $region22: #{up_block_forward.5} parent=5 // pred_check_branch
      %143 = sbr.rel (%p141) target = $region24
    $region23: #{up_block_forward.5} parent=5 // pred_region
      // Predicated region
      $region25: #{up_block_forward.5} parent=23 // pred_check
        %p144 = pneg %p43
      $region26: #{up_block_forward.5} parent=23 // pred_check_branch
        %146 = sbr.rel (%p144) target = $region28
      $region27: #{up_block_forward.5} parent=23 // pred_region
        %p147 = scmp.lt.s32.totalorder %s16, 1
        %s148 = scalar_select %p147, %s16, 1
        %p149 = scmp.lt.s32.totalorder %s17, 3
        %s150 = scalar_select %p149, %s17, 3
        %s151 = smul.addr %s150, 2
        %s152 = smul.addr %s148, 8
        %s153 = sadd.s32 %s151, %s152
        %s154 = smul.addr %s153, 4
        %s155 = scalar_lea.vmem %s0, %s154
      $region28: #{up_block_forward.5} parent=23 // pred_fallthru
        _
    $region24: #{up_block_forward.5} parent=5 // pred_fallthru
      _
    %p156 = scmp.le.s32.totalorder 1, %s9
    %p157 = scmp.lt.s32.totalorder %s9, 9
    %p158 = pnand %p156, %p157
    %p159 = pneg %p158
    // Predicated region
    $region29: #{up_block_forward.5} parent=5 // pred_check
      _
    $region30: #{up_block_forward.5} parent=5 // pred_check_branch
      %161 = sbr.rel (%p158) target = $region32
    $region31: #{up_block_forward.5} parent=5 // pred_region
      %s162 = ssub.s32 %s9, 1
      %p163 = scmp.lt.s32.totalorder %s18, 1
      %s164 = scalar_select %p163, %s18, 1
      %p165 = scmp.lt.s32.totalorder %s19, 3
      %s166 = scalar_select %p165, %s19, 3
      %s167 = smul.addr %s166, 2
      %s168 = smul.addr %s164, 8
      %s169 = sadd.s32 %s167, %s168
      %s170 = smul.addr %s169, 4
      %s171 = scalar_lea.vmem %s0, %s170
      %p172 = pneg %p49
      %p173 = pneg %p46
      %p174 = pneg %p70
      %p175 = pneg %p67
      %p176 = pneg %p91
      %p177 = pneg %p88
      %p178 = pneg %p119
      %p179 = pneg %p116
      %p180 = scmp.lt.s32.totalorder %s18, 1
      %s181 = scalar_select %p180, %s18, 1
      %p182 = scmp.lt.s32.totalorder %s19, 3
      %s183 = scalar_select %p182, %s19, 3
      %s184 = smul.addr %s183, 2
      %s185 = smul.addr %s181, 8
      %s186 = sadd.s32 %s184, %s185
      %s187 = smul.addr %s186, 4
      %s188 = scalar_lea.vmem %s3, %s187
      %p189 = scmp.lt.s32.totalorder %s18, 1
      %s190 = scalar_select %p189, %s18, 1
      %p191 = scmp.lt.s32.totalorder %s19, 3
      %s192 = scalar_select %p191, %s19, 3
      %s193 = smul.addr %s192, 2
      %s194 = smul.addr %s190, 8
      %s195 = sadd.s32 %s193, %s194
      %s196 = smul.addr %s195, 4
      %s197 = scalar_lea.vmem %s0, %s196
      %p198 = scmp.lt.s32.totalorder %s18, 1
      %s199 = scalar_select %p198, %s18, 1
      %p200 = scmp.lt.s32.totalorder %s19, 3
      %s201 = scalar_select %p200, %s19, 3
      %s202 = smul.addr %s201, 2
      %s203 = smul.addr %s199, 8
      %s204 = sadd.s32 %s202, %s203
      %s205 = smul.addr %s204, 4
      %s206 = scalar_lea.vmem %s3, %s205
      %v208 = vld [vmem:[%s197] sm:$0xf]
      %v209 = vld [vmem:[%s197 + $0x4] sm:$0xf]
      %v210 = vld [vmem:[%s1] sm:$0xf]
      %v211 = vld [vmem:[%s2] sm:$0x1]
      %v213 = vlaneseq
      %v214 = vshrl.u32 %v213, 7
      %v215 = vsub.s32 0, %v214
      %v216 = vrot.slane %v211, %v215
      %v220 = vunpack.c.l.b16 %v208
      %v221 = vunpack.c.l.b16 %v209
      %v222 = vpack.c.b16 %v221, %v220
      %vm223 = vcmask 64512
      %v225 = vsel %vm223, %v222, 0
      %vm227 = vcmask 1043456
      %v229 = vsel %vm227, %v210, 0
      %231 = vmatprep.subr.bf16.mxu0 0
      %232 = vmatpush1.bf16.msra.mxu0 %v229
      %233 = vmatprep.subr.bf16.mxu0 0
      %234 = vmatpush1.bf16.msra.mxu0 0
      %235 = vmatprep.subr.bf16.mxu0 0
      %236 = vmatpush1.bf16.msra.mxu0 0
      %237 = vmatprep.subr.bf16.mxu0 0
      %238 = vmatpush1.bf16.msra.mxu0 0
      %239 = vmatprep.subr.bf16.mxu0 0
      %240 = vmatpush1.bf16.msra.mxu0 0
      %241 = vmatprep.subr.bf16.mxu0 0
      %242 = vmatpush1.bf16.msra.mxu0 0
      %243 = vmatprep.subr.bf16.mxu0 0
      %244 = vmatpush1.bf16.msra.mxu0 0
      %245 = vmatprep.subr.bf16.mxu0 0
      %246 = vmatpush1.bf16.msra.mxu0 0
      %247 = vmatprep.subr.bf16.mxu0 0
      %248 = vmatpush1.bf16.msra.mxu0 0
      %249 = vmatprep.subr.bf16.mxu0 0
      %250 = vmatpush1.bf16.msra.mxu0 0
      %251 = vmatprep.subr.bf16.mxu0 0
      %252 = vmatpush1.bf16.msra.mxu0 0
      %253 = vmatprep.subr.bf16.mxu0 0
      %254 = vmatpush1.bf16.msra.mxu0 0
      %255 = vmatprep.subr.bf16.mxu0 0
      %256 = vmatpush1.bf16.msra.mxu0 0
      %257 = vmatprep.subr.bf16.mxu0 0
      %258 = vmatpush1.bf16.msra.mxu0 0
      %259 = vmatprep.subr.bf16.mxu0 0
      %260 = vmatpush1.bf16.msra.mxu0 0
      %261 = vmatprep.subr.bf16.mxu0 0
      %262 = vmatpush1.bf16.msra.mxu0 0
      %263 = vmatprep.mubr.bf16.mxu0 0
      %264 = vmatmul.mubr.bf16.gmra.mrb[0].mxu0 %v225
      %v265 = vpop.f32.mrb[0].mxu0
      %v266 = vadd.f32 %v216, %v265
      %v267 = vpop.f32.mrb[0].mxu0
      %v268 = vpop.f32.mrb[0].mxu0
      %v269 = vadd.f32 %v216, %v268
      %v270 = vpop.f32.mrb[0].mxu0
      %271 = vdwg.mxu0
      %v272 = vpack.c.bf16 %v269, %v266
      %v274 = vunpack.c.l.b16 %v272
      %v275 = vunpack.c.h.b16 %v272
      %v276 = vpack.c.b16 %v274, %v274
      %v277 = vpack.c.b16 %v275, %v275
      %vm280 = vcmask 257024
      %281 = vst.msk [vmem:[%s206] sm:$0xf] %vm280, %v276
      %282 = vst.msk [vmem:[%s206 + $0x4] sm:$0xf] %vm280, %v277
      %p283 = scmp.lt.s32.totalorder %s18, 1
      %s284 = scalar_select %p283, %s18, 1
      %p285 = scmp.lt.s32.totalorder %s19, 3
      %s286 = scalar_select %p285, %s19, 3
      %s287 = smul.addr %s286, 2
      %s288 = smul.addr %s284, 8
      %s289 = sadd.s32 %s287, %s288
      %s290 = smul.addr %s289, 4
      %s291 = scalar_lea.vmem %s3, %s290
      // Predicated region
      $region33: #{up_block_forward.5} parent=31 // pred_check
        %p292 = pneg %p116
      $region34: #{up_block_forward.5} parent=31 // pred_check_branch
        %294 = sbr.rel (%p292) target = $region36
      $region35: #{up_block_forward.5} parent=31 // pred_region
        _
      $region36: #{up_block_forward.5} parent=31 // pred_fallthru
        _
    $region32: #{up_block_forward.5} parent=5 // pred_fallthru
      _
    %p295 = scmp.le.s32.totalorder 2, %s9
    // Predicated region
    $region37: #{up_block_forward.5} parent=5 // pred_check
      %p296 = pneg %p295
    $region38: #{up_block_forward.5} parent=5 // pred_check_branch
      %298 = sbr.rel (%p296) target = $region40
    $region39: #{up_block_forward.5} parent=5 // pred_region
      %s299 = ssub.s32 %s9, 2
      // Predicated region
      $region41: #{up_block_forward.5} parent=39 // pred_check
        %p300 = pneg %p122
      $region42: #{up_block_forward.5} parent=39 // pred_check_branch
        %302 = sbr.rel (%p300) target = $region44
      $region43: #{up_block_forward.5} parent=39 // pred_region
        %p303 = scmp.lt.s32.totalorder %s20, 1
        %s304 = scalar_select %p303, %s20, 1
        %p305 = scmp.lt.s32.totalorder %s21, 3
        %s306 = scalar_select %p305, %s21, 3
        %s307 = smul.addr %s306, 2
        %s308 = smul.addr %s304, 8
        %s309 = sadd.s32 %s307, %s308
        %s310 = smul.addr %s309, 4
        %s311 = scalar_lea.vmem %s3, %s310
      $region44: #{up_block_forward.5} parent=39 // pred_fallthru
        _
    $region40: #{up_block_forward.5} parent=5 // pred_fallthru
      _
  $region6: #{up_block_forward.5} parent=0 // loop_footer
    %s13 = sadd.s32 1, %s9
  $region7: #{up_block_forward.5} parent=0 // loop_footer_branch
    %8 = sbr.rel target = $region3
  $region8: #{up_block_forward.5} parent=0 // loop_exit
    _

// kernel: up_block_forward.7
$region0: #{up_block_forward.7}
  #allocation0 [shape = 'u32[]', space=smem, size = 0x4, offset = 0x4, fixed_abs, tag = 'smem constant byte address 0x4 - core index']
  #allocation1 [shape = 'u32[144,128]{1,0:T(1,128)}', space=vmem, size = 0x12000, scoped, tag = 'internal scratch']
  %s0 = inlined_call_operand.vmem [shape: f32[2,8,8,10,8], index: 0, kind: input, shape index: {}]
  %s1 = inlined_call_operand.vmem [shape: f32[1,8], index: 1, kind: input, shape index: {}]
  %s2 = inlined_call_operand.vmem [shape: f32[1,8], index: 2, kind: input, shape index: {}]
  %s3 = inlined_call_operand.vmem [shape: bf16[2,8,8,8,8], index: 3, kind: output, shape index: {}]
  %s4 = sld [smem:[#allocation0]]
  $region45: #{up_block_forward.7} parent=0
    _
  %s6 = ssub.s32 1, %s4
  %s7 = scalar_select 0, %s6, %s4
  loop: start=0, step=1, limit=18
  $region2: #{up_block_forward.7} parent=0 // loop_pre_header
    _
  $region3: #{up_block_forward.7} parent=0 // loop_header
    %s9 = sphi 0, %s13
    %p10 = scmp.ge.s32.totalorder %s9, 18
    %s16 = sphi 0, %s28
    %s17 = sphi 0, %s24
    %s18 = sphi 0, %s16
    %s19 = sphi 0, %s17
    %s20 = sphi 0, %s18
    %s21 = sphi 0, %s19
    %s33 = sphi 0, %s35
    %s36 = sphi 0, %s33
    %s37 = sphi 0, %s36
    %s53 = sphi 0, %s37
    %s57 = sphi 0, %s57
    %s59 = sphi 0, %s57
    %s60 = sphi 0, %s59
    %s74 = sphi 0, %s60
    %s78 = sphi 0, %s78
    %s80 = sphi 0, %s78
    %s81 = sphi 0, %s80
    %s95 = sphi 0, %s81
    %s103 = sphi 0, %s105
    %s106 = sphi 0, %s103
    %s107 = sphi 0, %s106
    %s123 = sphi 0, %s107
  $region4: #{up_block_forward.7} parent=0 // loop_header_branch
    %12 = sbr.rel (%p10) target = $region8
  $region5: #{up_block_forward.7} parent=0 // loop_body
    %s14 = ssub.s32 %s9, 1
    %s15 = ssub.s32 %s9, 2
    %s22 = sadd.s32 1, %s17
    %p23 = scmp.ge.s32.totalorder %s22, 8
    %s24 = scalar_select %p23, 0, %s22
    %s25 = sadd.s32 1, %s16
    %s26 = scalar_select %p23, %s25, %s16
    %p27 = scmp.ge.s32.totalorder %s26, 2
    %s28 = scalar_select %p27, 0, %s26
    %s29 = ssub.s32 %s16, %s28
    %s30 = ssub.s32 %s17, %s24
    %s31 = sor.u32 %s29, %s30
    %p32 = scmp.eq.s32.totalorder %s31, 0
    %s34 = sadd.s32 %s33, 1
    %s35 = scalar_select %p32, %s33, %s34
    %p38 = pneg %p32
    %p39 = scmp.eq.s32.totalorder %s9, 15
    %p40 = por %p38, %p39
    %p41 = scmp.ne.s32.totalorder %s33, %s36
    %p42 = scmp.eq.s32.totalorder %s9, 0
    %p43 = por %p41, %p42
    %p44 = scmp.ne.s32.totalorder %s33, %s36
    %p45 = scmp.eq.s32.totalorder %s14, 15
    %p46 = por %p44, %p45
    %p47 = scmp.ne.s32.totalorder %s36, %s37
    %p48 = scmp.eq.s32.totalorder %s14, 0
    %p49 = por %p47, %p48
    %p50 = scmp.ne.s32.totalorder %s36, %s37
    %p51 = scmp.eq.s32.totalorder %s15, 15
    %p52 = por %p50, %p51
    %p54 = scmp.ne.s32.totalorder %s37, %s53
    %p55 = scmp.eq.s32.totalorder %s15, 0
    %p56 = por %p54, %p55
    %s58 = sadd.s32 %s57, 1
    %p61 = scmp.eq.s32.totalorder %s9, 15
    %p62 = scmp.ne.s32.totalorder %s57, %s59
    %p63 = scmp.eq.s32.totalorder %s9, 0
    %p64 = por %p62, %p63
    %p65 = scmp.ne.s32.totalorder %s57, %s59
    %p66 = scmp.eq.s32.totalorder %s14, 15
    %p67 = por %p65, %p66
    %p68 = scmp.ne.s32.totalorder %s59, %s60
    %p69 = scmp.eq.s32.totalorder %s14, 0
    %p70 = por %p68, %p69
    %p71 = scmp.ne.s32.totalorder %s59, %s60
    %p72 = scmp.eq.s32.totalorder %s15, 15
    %p73 = por %p71, %p72
    %p75 = scmp.ne.s32.totalorder %s60, %s74
    %p76 = scmp.eq.s32.totalorder %s15, 0
    %p77 = por %p75, %p76
    %s79 = sadd.s32 %s78, 1
    %p82 = scmp.eq.s32.totalorder %s9, 15
    %p83 = scmp.ne.s32.totalorder %s78, %s80
    %p84 = scmp.eq.s32.totalorder %s9, 0
    %p85 = por %p83, %p84
    %p86 = scmp.ne.s32.totalorder %s78, %s80
    %p87 = scmp.eq.s32.totalorder %s14, 15
    %p88 = por %p86, %p87
    %p89 = scmp.ne.s32.totalorder %s80, %s81
    %p90 = scmp.eq.s32.totalorder %s14, 0
    %p91 = por %p89, %p90
    %p92 = scmp.ne.s32.totalorder %s80, %s81
    %p93 = scmp.eq.s32.totalorder %s15, 15
    %p94 = por %p92, %p93
    %p96 = scmp.ne.s32.totalorder %s81, %s95
    %p97 = scmp.eq.s32.totalorder %s15, 0
    %p98 = por %p96, %p97
    %s99 = ssub.s32 %s16, %s28
    %s100 = ssub.s32 %s17, %s24
    %s101 = sor.u32 %s99, %s100
    %p102 = scmp.eq.s32.totalorder %s101, 0
    %s104 = sadd.s32 %s103, 1
    %s105 = scalar_select %p102, %s103, %s104
    %p108 = pneg %p102
    %p109 = scmp.eq.s32.totalorder %s9, 15
    %p110 = por %p108, %p109
    %p111 = scmp.ne.s32.totalorder %s103, %s106
    %p112 = scmp.eq.s32.totalorder %s9, 0
    %p113 = por %p111, %p112
    %p114 = scmp.ne.s32.totalorder %s103, %s106
    %p115 = scmp.eq.s32.totalorder %s14, 15
    %p116 = por %p114, %p115
    %p117 = scmp.ne.s32.totalorder %s106, %s107
    %p118 = scmp.eq.s32.totalorder %s14, 0
    %p119 = por %p117, %p118
    %p120 = scmp.ne.s32.totalorder %s106, %s107
    %p121 = scmp.eq.s32.totalorder %s15, 15
    %p122 = por %p120, %p121
    %p124 = scmp.ne.s32.totalorder %s107, %s123
    %p125 = scmp.eq.s32.totalorder %s15, 0
    %p126 = por %p124, %p125
    %p127 = scmp.le.s32.totalorder 1, %s9
    %p128 = scmp.lt.s32.totalorder %s9, 17
    %p129 = pnand %p127, %p128
    %p130 = pneg %p129
    // Predicated region
    $region9: #{up_block_forward.7} parent=5 // pred_check
      _
    $region10: #{up_block_forward.7} parent=5 // pred_check_branch
      %132 = sbr.rel (%p129) target = $region12
    $region11: #{up_block_forward.7} parent=5 // pred_region
      %s133 = ssub.s32 %s9, 1
      // Predicated region
      $region13: #{up_block_forward.7} parent=11 // pred_check
        %p134 = pneg %p70
      $region14: #{up_block_forward.7} parent=11 // pred_check_branch
        %136 = sbr.rel (%p134) target = $region16
      $region15: #{up_block_forward.7} parent=11 // pred_region
        _
      $region16: #{up_block_forward.7} parent=11 // pred_fallthru
        _
      // Predicated region
      $region17: #{up_block_forward.7} parent=11 // pred_check
        %p137 = pneg %p91
      $region18: #{up_block_forward.7} parent=11 // pred_check_branch
        %139 = sbr.rel (%p137) target = $region20
      $region19: #{up_block_forward.7} parent=11 // pred_region
        _
      $region20: #{up_block_forward.7} parent=11 // pred_fallthru
        _
    $region12: #{up_block_forward.7} parent=5 // pred_fallthru
      _
    %p140 = scmp.lt.s32.totalorder %s9, 16
    // Predicated region
    $region21: #{up_block_forward.7} parent=5 // pred_check
      %p141 = pneg %p140
    $region22: #{up_block_forward.7} parent=5 // pred_check_branch
      %143 = sbr.rel (%p141) target = $region24
    $region23: #{up_block_forward.7} parent=5 // pred_region
      // Predicated region
      $region25: #{up_block_forward.7} parent=23 // pred_check
        %p144 = pneg %p43
      $region26: #{up_block_forward.7} parent=23 // pred_check_branch
        %146 = sbr.rel (%p144) target = $region28
      $region27: #{up_block_forward.7} parent=23 // pred_region
        %p147 = scmp.lt.s32.totalorder %s16, 1
        %s148 = scalar_select %p147, %s16, 1
        %p149 = scmp.lt.s32.totalorder %s17, 7
        %s150 = scalar_select %p149, %s17, 7
        %s151 = smul.addr %s150, 16
        %s152 = smul.addr %s148, 128
        %s153 = sadd.s32 %s151, %s152
        %s154 = smul.addr %s153, 8
        %s155 = scalar_lea.vmem %s0, %s154
      $region28: #{up_block_forward.7} parent=23 // pred_fallthru
        _
    $region24: #{up_block_forward.7} parent=5 // pred_fallthru
      _
    %p156 = scmp.le.s32.totalorder 1, %s9
    %p157 = scmp.lt.s32.totalorder %s9, 17
    %p158 = pnand %p156, %p157
    %p159 = pneg %p158
    // Predicated region
    $region29: #{up_block_forward.7} parent=5 // pred_check
      _
    $region30: #{up_block_forward.7} parent=5 // pred_check_branch
      %161 = sbr.rel (%p158) target = $region32
    $region31: #{up_block_forward.7} parent=5 // pred_region
      %s162 = ssub.s32 %s9, 1
      %p163 = scmp.lt.s32.totalorder %s18, 1
      %s164 = scalar_select %p163, %s18, 1
      %p165 = scmp.lt.s32.totalorder %s19, 7
      %s166 = scalar_select %p165, %s19, 7
      %s167 = smul.addr %s166, 16
      %s168 = smul.addr %s164, 128
      %s169 = sadd.s32 %s167, %s168
      %s170 = smul.addr %s169, 8
      %s171 = scalar_lea.vmem %s0, %s170
      %p172 = pneg %p49
      %p173 = pneg %p46
      %p174 = pneg %p70
      %p175 = pneg %p67
      %p176 = pneg %p91
      %p177 = pneg %p88
      %p178 = pneg %p119
      %p179 = pneg %p116
      %p180 = scmp.lt.s32.totalorder %s18, 1
      %s181 = scalar_select %p180, %s18, 1
      %p182 = scmp.lt.s32.totalorder %s19, 7
      %s183 = scalar_select %p182, %s19, 7
      %s184 = smul.addr %s183, 8
      %s185 = smul.addr %s181, 64
      %s186 = sadd.s32 %s184, %s185
      %s187 = smul.addr %s186, 4
      %s188 = scalar_lea.vmem %s3, %s187
      %p189 = scmp.lt.s32.totalorder %s18, 1
      %s190 = scalar_select %p189, %s18, 1
      %p191 = scmp.lt.s32.totalorder %s19, 7
      %s192 = scalar_select %p191, %s19, 7
      %s193 = smul.addr %s192, 16
      %s194 = smul.addr %s190, 128
      %s195 = sadd.s32 %s193, %s194
      %s196 = smul.addr %s195, 8
      %s197 = scalar_lea.vmem %s0, %s196
      %p198 = scmp.lt.s32.totalorder %s18, 1
      %s199 = scalar_select %p198, %s18, 1
      %p200 = scmp.lt.s32.totalorder %s19, 7
      %s201 = scalar_select %p200, %s19, 7
      %s202 = smul.addr %s201, 8
      %s203 = smul.addr %s199, 64
      %s204 = sadd.s32 %s202, %s203
      %s205 = smul.addr %s204, 4
      %s206 = scalar_lea.vmem %s3, %s205
      %v207 = vld [vmem:[%s197] sm:$0xff]
      %v208 = vld [vmem:[%s197 + $0x10] sm:$0xff]
      %v209 = vld [vmem:[%s197 + $0x20] sm:$0xff]
      %v210 = vld [vmem:[%s197 + $0x30] sm:$0xff]
      %v211 = vld [vmem:[%s197 + $0x40] sm:$0xff]
      %v212 = vld [vmem:[%s197 + $0x50] sm:$0xff]
      %v213 = vld [vmem:[%s197 + $0x60] sm:$0xff]
      %v214 = vld [vmem:[%s197 + $0x70] sm:$0xff]
      %v215 = vld [vmem:[%s1] sm:$0x1]
      %v217 = vlaneseq
      %v218 = vshrl.u32 %v217, 7
      %v219 = vsub.s32 0, %v218
      %v220 = vrot.slane %v215, %v219
      %v222 = vmul.f32 %v207, %v220
      %v223 = vmul.f32 %v208, %v220
      %v224 = vmul.f32 %v209, %v220
      %v225 = vmul.f32 %v210, %v220
      %v226 = vmul.f32 %v211, %v220
      %v227 = vmul.f32 %v212, %v220
      %v228 = vmul.f32 %v213, %v220
      %v229 = vmul.f32 %v214, %v220
      %v230 = vld [vmem:[%s2] sm:$0x1]
      %v232 = vlaneseq
      %v233 = vshrl.u32 %v232, 7
      %v234 = vsub.s32 0, %v233
      %v235 = vrot.slane %v230, %v234
      %v237 = vadd.f32 %v222, %v235
      %v238 = vadd.f32 %v223, %v235
      %v239 = vadd.f32 %v224, %v235
      %v240 = vadd.f32 %v225, %v235
      %v241 = vadd.f32 %v226, %v235
      %v242 = vadd.f32 %v227, %v235
      %v243 = vadd.f32 %v228, %v235
      %v244 = vadd.f32 %v229, %v235
      %v245 = vmul.f32 %v237, 0.2
      %v246 = vmul.f32 %v238, 0.2
      %v247 = vmul.f32 %v239, 0.2
      %v248 = vmul.f32 %v240, 0.2
      %v249 = vmul.f32 %v241, 0.2
      %v250 = vmul.f32 %v242, 0.2
      %v251 = vmul.f32 %v243, 0.2
      %v252 = vmul.f32 %v244, 0.2
      %v253 = vmax.f32 %v237, %v245
      %v254 = vmax.f32 %v238, %v246
      %v255 = vmax.f32 %v239, %v247
      %v256 = vmax.f32 %v240, %v248
      %v257 = vmax.f32 %v241, %v249
      %v258 = vmax.f32 %v242, %v250
      %v259 = vmax.f32 %v243, %v251
      %v260 = vmax.f32 %v244, %v252
      %v261 = vpack.c.bf16 %v253, %v253
      %v262 = vpack.c.bf16 %v254, %v254
      %v263 = vpack.c.bf16 %v255, %v255
      %v264 = vpack.c.bf16 %v256, %v256
      %v265 = vpack.c.bf16 %v257, %v257
      %v266 = vpack.c.bf16 %v258, %v258
      %v267 = vpack.c.bf16 %v259, %v259
      %v268 = vpack.c.bf16 %v260, %v260
      %vm269 = vcmask 60416
      %270 = vst.msk [vmem:[%s206] sm:$0xf] %vm269, %v261
      %271 = vst.msk [vmem:[%s206 + $0x4] sm:$0xf] %vm269, %v262
      %272 = vst.msk [vmem:[%s206 + $0x8] sm:$0xf] %vm269, %v263
      %273 = vst.msk [vmem:[%s206 + $0xc] sm:$0xf] %vm269, %v264
      %274 = vst.msk [vmem:[%s206 + $0x10] sm:$0xf] %vm269, %v265
      %275 = vst.msk [vmem:[%s206 + $0x14] sm:$0xf] %vm269, %v266
      %276 = vst.msk [vmem:[%s206 + $0x18] sm:$0xf] %vm269, %v267
      %277 = vst.msk [vmem:[%s206 + $0x1c] sm:$0xf] %vm269, %v268
      %p278 = scmp.lt.s32.totalorder %s18, 1
      %s279 = scalar_select %p278, %s18, 1
      %p280 = scmp.lt.s32.totalorder %s19, 7
      %s281 = scalar_select %p280, %s19, 7
      %s282 = smul.addr %s281, 8
      %s283 = smul.addr %s279, 64
      %s284 = sadd.s32 %s282, %s283
      %s285 = smul.addr %s284, 4
      %s286 = scalar_lea.vmem %s3, %s285
      // Predicated region
      $region33: #{up_block_forward.7} parent=31 // pred_check
        %p287 = pneg %p116
      $region34: #{up_block_forward.7} parent=31 // pred_check_branch
        %289 = sbr.rel (%p287) target = $region36
      $region35: #{up_block_forward.7} parent=31 // pred_region
        _
      $region36: #{up_block_forward.7} parent=31 // pred_fallthru
        _
    $region32: #{up_block_forward.7} parent=5 // pred_fallthru
      _
    %p290 = scmp.le.s32.totalorder 2, %s9
    // Predicated region
    $region37: #{up_block_forward.7} parent=5 // pred_check
      %p291 = pneg %p290
    $region38: #{up_block_forward.7} parent=5 // pred_check_branch
      %293 = sbr.rel (%p291) target = $region40
    $region39: #{up_block_forward.7} parent=5 // pred_region
      %s294 = ssub.s32 %s9, 2
      // Predicated region
      $region41: #{up_block_forward.7} parent=39 // pred_check
        %p295 = pneg %p122
      $region42: #{up_block_forward.7} parent=39 // pred_check_branch
        %297 = sbr.rel (%p295) target = $region44
      $region43: #{up_block_forward.7} parent=39 // pred_region
        %p298 = scmp.lt.s32.totalorder %s20, 1
        %s299 = scalar_select %p298, %s20, 1
        %p300 = scmp.lt.s32.totalorder %s21, 7
        %s301 = scalar_select %p300, %s21, 7
        %s302 = smul.addr %s301, 8
        %s303 = smul.addr %s299, 64
        %s304 = sadd.s32 %s302, %s303
        %s305 = smul.addr %s304, 4
        %s306 = scalar_lea.vmem %s3, %s305
      $region44: #{up_block_forward.7} parent=39 // pred_fallthru
        _
    $region40: #{up_block_forward.7} parent=5 // pred_fallthru
      _
  $region6: #{up_block_forward.7} parent=0 // loop_footer
    %s13 = sadd.s32 1, %s9
  $region7: #{up_block_forward.7} parent=0 // loop_footer_branch
    %8 = sbr.rel target = $region3
  $region8: #{up_block_forward.7} parent=0 // loop_exit
    _

// kernel: up_block_forward.9
$region0: #{up_block_forward.9}
  #allocation0 [shape = 'u32[]', space=smem, size = 0x4, offset = 0x4, fixed_abs, tag = 'smem constant byte address 0x4 - core index']
  #allocation1 [shape = 'u32[144,128]{1,0:T(1,128)}', space=vmem, size = 0x12000, scoped, tag = 'internal scratch']
  %s0 = inlined_call_operand.vmem [shape: f32[2,8,8,10,8], index: 0, kind: input, shape index: {}]
  %s1 = inlined_call_operand.vmem [shape: f32[1,8], index: 1, kind: input, shape index: {}]
  %s2 = inlined_call_operand.vmem [shape: f32[1,8], index: 2, kind: input, shape index: {}]
  %s3 = inlined_call_operand.vmem [shape: f32[2,8,8,8,8], index: 3, kind: output, shape index: {}]
  %s4 = sld [smem:[#allocation0]]
  $region45: #{up_block_forward.9} parent=0
    _
  %s6 = ssub.s32 1, %s4
  %s7 = scalar_select 0, %s6, %s4
  loop: start=0, step=1, limit=18
  $region2: #{up_block_forward.9} parent=0 // loop_pre_header
    _
  $region3: #{up_block_forward.9} parent=0 // loop_header
    %s9 = sphi 0, %s13
    %p10 = scmp.ge.s32.totalorder %s9, 18
    %s16 = sphi 0, %s28
    %s17 = sphi 0, %s24
    %s18 = sphi 0, %s16
    %s19 = sphi 0, %s17
    %s20 = sphi 0, %s18
    %s21 = sphi 0, %s19
    %s33 = sphi 0, %s35
    %s36 = sphi 0, %s33
    %s37 = sphi 0, %s36
    %s53 = sphi 0, %s37
    %s57 = sphi 0, %s57
    %s59 = sphi 0, %s57
    %s60 = sphi 0, %s59
    %s74 = sphi 0, %s60
    %s78 = sphi 0, %s78
    %s80 = sphi 0, %s78
    %s81 = sphi 0, %s80
    %s95 = sphi 0, %s81
    %s103 = sphi 0, %s105
    %s106 = sphi 0, %s103
    %s107 = sphi 0, %s106
    %s123 = sphi 0, %s107
  $region4: #{up_block_forward.9} parent=0 // loop_header_branch
    %12 = sbr.rel (%p10) target = $region8
  $region5: #{up_block_forward.9} parent=0 // loop_body
    %s14 = ssub.s32 %s9, 1
    %s15 = ssub.s32 %s9, 2
    %s22 = sadd.s32 1, %s17
    %p23 = scmp.ge.s32.totalorder %s22, 8
    %s24 = scalar_select %p23, 0, %s22
    %s25 = sadd.s32 1, %s16
    %s26 = scalar_select %p23, %s25, %s16
    %p27 = scmp.ge.s32.totalorder %s26, 2
    %s28 = scalar_select %p27, 0, %s26
    %s29 = ssub.s32 %s16, %s28
    %s30 = ssub.s32 %s17, %s24
    %s31 = sor.u32 %s29, %s30
    %p32 = scmp.eq.s32.totalorder %s31, 0
    %s34 = sadd.s32 %s33, 1
    %s35 = scalar_select %p32, %s33, %s34
    %p38 = pneg %p32
    %p39 = scmp.eq.s32.totalorder %s9, 15
    %p40 = por %p38, %p39
    %p41 = scmp.ne.s32.totalorder %s33, %s36
    %p42 = scmp.eq.s32.totalorder %s9, 0
    %p43 = por %p41, %p42
    %p44 = scmp.ne.s32.totalorder %s33, %s36
    %p45 = scmp.eq.s32.totalorder %s14, 15
    %p46 = por %p44, %p45
    %p47 = scmp.ne.s32.totalorder %s36, %s37
    %p48 = scmp.eq.s32.totalorder %s14, 0
    %p49 = por %p47, %p48
    %p50 = scmp.ne.s32.totalorder %s36, %s37
    %p51 = scmp.eq.s32.totalorder %s15, 15
    %p52 = por %p50, %p51
    %p54 = scmp.ne.s32.totalorder %s37, %s53
    %p55 = scmp.eq.s32.totalorder %s15, 0
    %p56 = por %p54, %p55
    %s58 = sadd.s32 %s57, 1
    %p61 = scmp.eq.s32.totalorder %s9, 15
    %p62 = scmp.ne.s32.totalorder %s57, %s59
    %p63 = scmp.eq.s32.totalorder %s9, 0
    %p64 = por %p62, %p63
    %p65 = scmp.ne.s32.totalorder %s57, %s59
    %p66 = scmp.eq.s32.totalorder %s14, 15
    %p67 = por %p65, %p66
    %p68 = scmp.ne.s32.totalorder %s59, %s60
    %p69 = scmp.eq.s32.totalorder %s14, 0
    %p70 = por %p68, %p69
    %p71 = scmp.ne.s32.totalorder %s59, %s60
    %p72 = scmp.eq.s32.totalorder %s15, 15
    %p73 = por %p71, %p72
    %p75 = scmp.ne.s32.totalorder %s60, %s74
    %p76 = scmp.eq.s32.totalorder %s15, 0
    %p77 = por %p75, %p76
    %s79 = sadd.s32 %s78, 1
    %p82 = scmp.eq.s32.totalorder %s9, 15
    %p83 = scmp.ne.s32.totalorder %s78, %s80
    %p84 = scmp.eq.s32.totalorder %s9, 0
    %p85 = por %p83, %p84
    %p86 = scmp.ne.s32.totalorder %s78, %s80
    %p87 = scmp.eq.s32.totalorder %s14, 15
    %p88 = por %p86, %p87
    %p89 = scmp.ne.s32.totalorder %s80, %s81
    %p90 = scmp.eq.s32.totalorder %s14, 0
    %p91 = por %p89, %p90
    %p92 = scmp.ne.s32.totalorder %s80, %s81
    %p93 = scmp.eq.s32.totalorder %s15, 15
    %p94 = por %p92, %p93
    %p96 = scmp.ne.s32.totalorder %s81, %s95
    %p97 = scmp.eq.s32.totalorder %s15, 0
    %p98 = por %p96, %p97
    %s99 = ssub.s32 %s16, %s28
    %s100 = ssub.s32 %s17, %s24
    %s101 = sor.u32 %s99, %s100
    %p102 = scmp.eq.s32.totalorder %s101, 0
    %s104 = sadd.s32 %s103, 1
    %s105 = scalar_select %p102, %s103, %s104
    %p108 = pneg %p102
    %p109 = scmp.eq.s32.totalorder %s9, 15
    %p110 = por %p108, %p109
    %p111 = scmp.ne.s32.totalorder %s103, %s106
    %p112 = scmp.eq.s32.totalorder %s9, 0
    %p113 = por %p111, %p112
    %p114 = scmp.ne.s32.totalorder %s103, %s106
    %p115 = scmp.eq.s32.totalorder %s14, 15
    %p116 = por %p114, %p115
    %p117 = scmp.ne.s32.totalorder %s106, %s107
    %p118 = scmp.eq.s32.totalorder %s14, 0
    %p119 = por %p117, %p118
    %p120 = scmp.ne.s32.totalorder %s106, %s107
    %p121 = scmp.eq.s32.totalorder %s15, 15
    %p122 = por %p120, %p121
    %p124 = scmp.ne.s32.totalorder %s107, %s123
    %p125 = scmp.eq.s32.totalorder %s15, 0
    %p126 = por %p124, %p125
    %p127 = scmp.le.s32.totalorder 1, %s9
    %p128 = scmp.lt.s32.totalorder %s9, 17
    %p129 = pnand %p127, %p128
    %p130 = pneg %p129
    // Predicated region
    $region9: #{up_block_forward.9} parent=5 // pred_check
      _
    $region10: #{up_block_forward.9} parent=5 // pred_check_branch
      %132 = sbr.rel (%p129) target = $region12
    $region11: #{up_block_forward.9} parent=5 // pred_region
      %s133 = ssub.s32 %s9, 1
      // Predicated region
      $region13: #{up_block_forward.9} parent=11 // pred_check
        %p134 = pneg %p70
      $region14: #{up_block_forward.9} parent=11 // pred_check_branch
        %136 = sbr.rel (%p134) target = $region16
      $region15: #{up_block_forward.9} parent=11 // pred_region
        _
      $region16: #{up_block_forward.9} parent=11 // pred_fallthru
        _
      // Predicated region
      $region17: #{up_block_forward.9} parent=11 // pred_check
        %p137 = pneg %p91
      $region18: #{up_block_forward.9} parent=11 // pred_check_branch
        %139 = sbr.rel (%p137) target = $region20
      $region19: #{up_block_forward.9} parent=11 // pred_region
        _
      $region20: #{up_block_forward.9} parent=11 // pred_fallthru
        _
    $region12: #{up_block_forward.9} parent=5 // pred_fallthru
      _
    %p140 = scmp.lt.s32.totalorder %s9, 16
    // Predicated region
    $region21: #{up_block_forward.9} parent=5 // pred_check
      %p141 = pneg %p140
    $region22: #{up_block_forward.9} parent=5 // pred_check_branch
      %143 = sbr.rel (%p141) target = $region24
    $region23: #{up_block_forward.9} parent=5 // pred_region
      // Predicated region
      $region25: #{up_block_forward.9} parent=23 // pred_check
        %p144 = pneg %p43
      $region26: #{up_block_forward.9} parent=23 // pred_check_branch
        %146 = sbr.rel (%p144) target = $region28
      $region27: #{up_block_forward.9} parent=23 // pred_region
        %p147 = scmp.lt.s32.totalorder %s16, 1
        %s148 = scalar_select %p147, %s16, 1
        %p149 = scmp.lt.s32.totalorder %s17, 7
        %s150 = scalar_select %p149, %s17, 7
        %s151 = smul.addr %s150, 16
        %s152 = smul.addr %s148, 128
        %s153 = sadd.s32 %s151, %s152
        %s154 = smul.addr %s153, 8
        %s155 = scalar_lea.vmem %s0, %s154
      $region28: #{up_block_forward.9} parent=23 // pred_fallthru
        _
    $region24: #{up_block_forward.9} parent=5 // pred_fallthru
      _
    %p156 = scmp.le.s32.totalorder 1, %s9
    %p157 = scmp.lt.s32.totalorder %s9, 17
    %p158 = pnand %p156, %p157
    %p159 = pneg %p158
    // Predicated region
    $region29: #{up_block_forward.9} parent=5 // pred_check
      _
    $region30: #{up_block_forward.9} parent=5 // pred_check_branch
      %161 = sbr.rel (%p158) target = $region32
    $region31: #{up_block_forward.9} parent=5 // pred_region
      %s162 = ssub.s32 %s9, 1
      %p163 = scmp.lt.s32.totalorder %s18, 1
      %s164 = scalar_select %p163, %s18, 1
      %p165 = scmp.lt.s32.totalorder %s19, 7
      %s166 = scalar_select %p165, %s19, 7
      %s167 = smul.addr %s166, 16
      %s168 = smul.addr %s164, 128
      %s169 = sadd.s32 %s167, %s168
      %s170 = smul.addr %s169, 8
      %s171 = scalar_lea.vmem %s0, %s170
      %p172 = pneg %p49
      %p173 = pneg %p46
      %p174 = pneg %p70
      %p175 = pneg %p67
      %p176 = pneg %p91
      %p177 = pneg %p88
      %p178 = pneg %p119
      %p179 = pneg %p116
      %p180 = scmp.lt.s32.totalorder %s18, 1
      %s181 = scalar_select %p180, %s18, 1
      %p182 = scmp.lt.s32.totalorder %s19, 7
      %s183 = scalar_select %p182, %s19, 7
      %s184 = smul.addr %s183, 8
      %s185 = smul.addr %s181, 64
      %s186 = sadd.s32 %s184, %s185
      %s187 = smul.addr %s186, 8
      %s188 = scalar_lea.vmem %s3, %s187
      %p189 = scmp.lt.s32.totalorder %s18, 1
      %s190 = scalar_select %p189, %s18, 1
      %p191 = scmp.lt.s32.totalorder %s19, 7
      %s192 = scalar_select %p191, %s19, 7
      %s193 = smul.addr %s192, 16
      %s194 = smul.addr %s190, 128
      %s195 = sadd.s32 %s193, %s194
      %s196 = smul.addr %s195, 8
      %s197 = scalar_lea.vmem %s0, %s196
      %p198 = scmp.lt.s32.totalorder %s18, 1
      %s199 = scalar_select %p198, %s18, 1
      %p200 = scmp.lt.s32.totalorder %s19, 7
      %s201 = scalar_select %p200, %s19, 7
      %s202 = smul.addr %s201, 8
      %s203 = smul.addr %s199, 64
      %s204 = sadd.s32 %s202, %s203
      %s205 = smul.addr %s204, 8
      %s206 = scalar_lea.vmem %s3, %s205
      %v207 = vld [vmem:[%s197] sm:$0xff]
      %v208 = vld [vmem:[%s197 + $0x10] sm:$0xff]
      %v209 = vld [vmem:[%s197 + $0x20] sm:$0xff]
      %v210 = vld [vmem:[%s197 + $0x30] sm:$0xff]
      %v211 = vld [vmem:[%s197 + $0x40] sm:$0xff]
      %v212 = vld [vmem:[%s197 + $0x50] sm:$0xff]
      %v213 = vld [vmem:[%s197 + $0x60] sm:$0xff]
      %v214 = vld [vmem:[%s197 + $0x70] sm:$0xff]
      %v215 = vld [vmem:[%s1] sm:$0x1]
      %v217 = vlaneseq
      %v218 = vshrl.u32 %v217, 7
      %v219 = vsub.s32 0, %v218
      %v220 = vrot.slane %v215, %v219
      %v222 = vmul.f32 %v207, %v220
      %v223 = vmul.f32 %v208, %v220
      %v224 = vmul.f32 %v209, %v220
      %v225 = vmul.f32 %v210, %v220
      %v226 = vmul.f32 %v211, %v220
      %v227 = vmul.f32 %v212, %v220
      %v228 = vmul.f32 %v213, %v220
      %v229 = vmul.f32 %v214, %v220
      %v230 = vld [vmem:[%s2] sm:$0x1]
      %v232 = vlaneseq
      %v233 = vshrl.u32 %v232, 7
      %v234 = vsub.s32 0, %v233
      %v235 = vrot.slane %v230, %v234
      %v237 = vadd.f32 %v222, %v235
      %v238 = vadd.f32 %v223, %v235
      %v239 = vadd.f32 %v224, %v235
      %v240 = vadd.f32 %v225, %v235
      %v241 = vadd.f32 %v226, %v235
      %v242 = vadd.f32 %v227, %v235
      %v243 = vadd.f32 %v228, %v235
      %v244 = vadd.f32 %v229, %v235
      %v245 = vmul.f32 %v237, 0.2
      %v246 = vmul.f32 %v238, 0.2
      %v247 = vmul.f32 %v239, 0.2
      %v248 = vmul.f32 %v240, 0.2
      %v249 = vmul.f32 %v241, 0.2
      %v250 = vmul.f32 %v242, 0.2
      %v251 = vmul.f32 %v243, 0.2
      %v252 = vmul.f32 %v244, 0.2
      %v253 = vmax.f32 %v237, %v245
      %v254 = vmax.f32 %v238, %v246
      %v255 = vmax.f32 %v239, %v247
      %v256 = vmax.f32 %v240, %v248
      %v257 = vmax.f32 %v241, %v249
      %v258 = vmax.f32 %v242, %v250
      %v259 = vmax.f32 %v243, %v251
      %v260 = vmax.f32 %v244, %v252
      %vm261 = vcmask 64512
      %262 = vst.msk [vmem:[%s206] sm:$0xff] %vm261, %v253
      %263 = vst.msk [vmem:[%s206 + $0x8] sm:$0xff] %vm261, %v254
      %264 = vst.msk [vmem:[%s206 + $0x10] sm:$0xff] %vm261, %v255
      %265 = vst.msk [vmem:[%s206 + $0x18] sm:$0xff] %vm261, %v256
      %266 = vst.msk [vmem:[%s206 + $0x20] sm:$0xff] %vm261, %v257
      %267 = vst.msk [vmem:[%s206 + $0x28] sm:$0xff] %vm261, %v258
      %268 = vst.msk [vmem:[%s206 + $0x30] sm:$0xff] %vm261, %v259
      %269 = vst.msk [vmem:[%s206 + $0x38] sm:$0xff] %vm261, %v260
      %p270 = scmp.lt.s32.totalorder %s18, 1
      %s271 = scalar_select %p270, %s18, 1
      %p272 = scmp.lt.s32.totalorder %s19, 7
      %s273 = scalar_select %p272, %s19, 7
      %s274 = smul.addr %s273, 8
      %s275 = smul.addr %s271, 64
      %s276 = sadd.s32 %s274, %s275
      %s277 = smul.addr %s276, 8
      %s278 = scalar_lea.vmem %s3, %s277
      // Predicated region
      $region33: #{up_block_forward.9} parent=31 // pred_check
        %p279 = pneg %p116
      $region34: #{up_block_forward.9} parent=31 // pred_check_branch
        %281 = sbr.rel (%p279) target = $region36
      $region35: #{up_block_forward.9} parent=31 // pred_region
        _
      $region36: #{up_block_forward.9} parent=31 // pred_fallthru
        _
    $region32: #{up_block_forward.9} parent=5 // pred_fallthru
      _
    %p282 = scmp.le.s32.totalorder 2, %s9
    // Predicated region
    $region37: #{up_block_forward.9} parent=5 // pred_check
      %p283 = pneg %p282
    $region38: #{up_block_forward.9} parent=5 // pred_check_branch
      %285 = sbr.rel (%p283) target = $region40
    $region39: #{up_block_forward.9} parent=5 // pred_region
      %s286 = ssub.s32 %s9, 2
      // Predicated region
      $region41: #{up_block_forward.9} parent=39 // pred_check
        %p287 = pneg %p122
      $region42: #{up_block_forward.9} parent=39 // pred_check_branch
        %289 = sbr.rel (%p287) target = $region44
      $region43: #{up_block_forward.9} parent=39 // pred_region
        %p290 = scmp.lt.s32.totalorder %s20, 1
        %s291 = scalar_select %p290, %s20, 1
        %p292 = scmp.lt.s32.totalorder %s21, 7
        %s293 = scalar_select %p292, %s21, 7
        %s294 = smul.addr %s293, 8
        %s295 = smul.addr %s291, 64
        %s296 = sadd.s32 %s294, %s295
        %s297 = smul.addr %s296, 8
        %s298 = scalar_lea.vmem %s3, %s297
      $region44: #{up_block_forward.9} parent=39 // pred_fallthru
        _
    $region40: #{up_block_forward.9} parent=5 // pred_fallthru
      _
  $region6: #{up_block_forward.9} parent=0 // loop_footer
    %s13 = sadd.s32 1, %s9
  $region7: #{up_block_forward.9} parent=0 // loop_footer_branch
    %8 = sbr.rel target = $region3
  $region8: #{up_block_forward.9} parent=0 // loop_exit
    _

// kernel: up_block_forward.6
$region0: #{up_block_forward.6}
  #allocation0 [shape = 'u32[]', space=smem, size = 0x4, offset = 0x4, fixed_abs, tag = 'smem constant byte address 0x4 - core index']
  #allocation1 [shape = 'u32[144,128]{1,0:T(1,128)}', space=vmem, size = 0x12000, scoped, tag = 'internal scratch']
  %s0 = inlined_call_operand.vmem [shape: bf16[2,8,108,8], index: 0, kind: input, shape index: {}, may-alias: {0,1,2}]
  %s1 = inlined_call_operand.vmem [shape: bf16[2,8,108,8], index: 1, kind: input, shape index: {}, may-alias: {0,1,2}]
  %s2 = inlined_call_operand.vmem [shape: bf16[2,8,108,8], index: 2, kind: input, shape index: {}, may-alias: {0,1,2}]
  %s3 = inlined_call_operand.vmem [shape: bf16[3,3,3,8,8], index: 3, kind: input, shape index: {}]
  %s4 = inlined_call_operand.vmem [shape: f32[2,8,80,8], index: 4, kind: output, shape index: {0}]
  %s5 = inlined_call_operand.vmem [shape: f32[2,8,8], index: 5, kind: output, shape index: {1}]
  %s6 = inlined_call_operand.vmem [shape: f32[2,8,8], index: 6, kind: output, shape index: {2}]
  %7 = xla_tuple %s4, %s5, %s6
  %s8 = sld [smem:[#allocation0]]
  $region77: #{up_block_forward.6} parent=0
    _
  %s10 = ssub.s32 1, %s8
  %s11 = scalar_select 0, %s10, %s8
  loop: start=0, step=1, limit=18
  $region2: #{up_block_forward.6} parent=0 // loop_pre_header
    _
  $region3: #{up_block_forward.6} parent=0 // loop_header
    %s13 = sphi 0, %s17
    %p14 = scmp.ge.s32.totalorder %s13, 18
    %s20 = sphi 0, %s32
    %s21 = sphi 0, %s28
    %s22 = sphi 0, %s20
    %s23 = sphi 0, %s21
    %s24 = sphi 0, %s22
    %s25 = sphi 0, %s23
    %s43 = sphi 0, %s45
    %s46 = sphi 0, %s43
    %s47 = sphi 0, %s46
    %s63 = sphi 0, %s47
    %s71 = sphi 0, %s73
    %s74 = sphi 0, %s71
    %s75 = sphi 0, %s74
    %s91 = sphi 0, %s75
    %s105 = sphi 0, %s107
    %s108 = sphi 0, %s105
    %s109 = sphi 0, %s108
    %s125 = sphi 0, %s109
    %s129 = sphi 0, %s129
    %s131 = sphi 0, %s129
    %s132 = sphi 0, %s131
    %s146 = sphi 0, %s132
    %s154 = sphi 0, %s156
    %s157 = sphi 0, %s154
    %s158 = sphi 0, %s157
    %s174 = sphi 0, %s158
    %s180 = sphi 0, %s182
    %s183 = sphi 0, %s180
    %s184 = sphi 0, %s183
    %s200 = sphi 0, %s184
    %s206 = sphi 0, %s208
    %s209 = sphi 0, %s206
    %s210 = sphi 0, %s209
    %s226 = sphi 0, %s210
  $region4: #{up_block_forward.6} parent=0 // loop_header_branch
    %16 = sbr.rel (%p14) target = $region8
  $region5: #{up_block_forward.6} parent=0 // loop_body
    %s18 = ssub.s32 %s13, 1
    %s19 = ssub.s32 %s13, 2
    %s26 = sadd.s32 1, %s21
    %p27 = scmp.ge.s32.totalorder %s26, 8
    %s28 = scalar_select %p27, 0, %s26
    %s29 = sadd.s32 1, %s20
    %s30 = scalar_select %p27, %s29, %s20
    %p31 = scmp.ge.s32.totalorder %s30, 2
    %s32 = scalar_select %p31, 0, %s30
    %s33 = ssub.s32 %s21, 1
    %p34 = scmp.gt.s32.totalorder %s33, 0
    %s35 = scalar_select %p34, %s33, 0
    %s36 = ssub.s32 %s28, 1
    %p37 = scmp.gt.s32.totalorder %s36, 0
    %s38 = scalar_select %p37, %s36, 0
    %s39 = ssub.s32 %s20, %s32
    %s40 = ssub.s32 %s35, %s38
    %s41 = sor.u32 %s39, %s40
    %p42 = scmp.eq.s32.totalorder %s41, 0
    %s44 = sadd.s32 %s43, 1
    %s45 = scalar_select %p42, %s43, %s44
    %p48 = pneg %p42
    %p49 = scmp.eq.s32.totalorder %s13, 15
    %p50 = por %p48, %p49
    %p51 = scmp.ne.s32.totalorder %s43, %s46
    %p52 = scmp.eq.s32.totalorder %s13, 0
    %p53 = por %p51, %p52
    %p54 = scmp.ne.s32.totalorder %s43, %s46
    %p55 = scmp.eq.s32.totalorder %s18, 15
    %p56 = por %p54, %p55
    %p57 = scmp.ne.s32.totalorder %s46, %s47
    %p58 = scmp.eq.s32.totalorder %s18, 0
    %p59 = por %p57, %p58
    %p60 = scmp.ne.s32.totalorder %s46, %s47
    %p61 = scmp.eq.s32.totalorder %s19, 15
    %p62 = por %p60, %p61
    %p64 = scmp.ne.s32.totalorder %s47, %s63
    %p65 = scmp.eq.s32.totalorder %s19, 0
    %p66 = por %p64, %p65
    %s67 = ssub.s32 %s20, %s32
    %s68 = ssub.s32 %s21, %s28
    %s69 = sor.u32 %s67, %s68
    %p70 = scmp.eq.s32.totalorder %s69, 0
    %s72 = sadd.s32 %s71, 1
    %s73 = scalar_select %p70, %s71, %s72
    %p76 = pneg %p70
    %p77 = scmp.eq.s32.totalorder %s13, 15
    %p78 = por %p76, %p77
    %p79 = scmp.ne.s32.totalorder %s71, %s74
    %p80 = scmp.eq.s32.totalorder %s13, 0
    %p81 = por %p79, %p80
    %p82 = scmp.ne.s32.totalorder %s71, %s74
    %p83 = scmp.eq.s32.totalorder %s18, 15
    %p84 = por %p82, %p83
    %p85 = scmp.ne.s32.totalorder %s74, %s75
    %p86 = scmp.eq.s32.totalorder %s18, 0
    %p87 = por %p85, %p86
    %p88 = scmp.ne.s32.totalorder %s74, %s75
    %p89 = scmp.eq.s32.totalorder %s19, 15
    %p90 = por %p88, %p89
    %p92 = scmp.ne.s32.totalorder %s75, %s91
    %p93 = scmp.eq.s32.totalorder %s19, 0
    %p94 = por %p92, %p93
    %s95 = sadd.s32 %s21, 1
    %p96 = scmp.lt.s32.totalorder %s95, 7
    %s97 = scalar_select %p96, %s95, 7
    %s98 = sadd.s32 %s28, 1
    %p99 = scmp.lt.s32.totalorder %s98, 7
    %s100 = scalar_select %p99, %s98, 7
    %s101 = ssub.s32 %s20, %s32
    %s102 = ssub.s32 %s97, %s100
    %s103 = sor.u32 %s101, %s102
    %p104 = scmp.eq.s32.totalorder %s103, 0
    %s106 = sadd.s32 %s105, 1
    %s107 = scalar_select %p104, %s105, %s106
    %p110 = pneg %p104
    %p111 = scmp.eq.s32.totalorder %s13, 15
    %p112 = por %p110, %p111
    %p113 = scmp.ne.s32.totalorder %s105, %s108
    %p114 = scmp.eq.s32.totalorder %s13, 0
    %p115 = por %p113, %p114
    %p116 = scmp.ne.s32.totalorder %s105, %s108
    %p117 = scmp.eq.s32.totalorder %s18, 15
    %p118 = por %p116, %p117
    %p119 = scmp.ne.s32.totalorder %s108, %s109
    %p120 = scmp.eq.s32.totalorder %s18, 0
    %p121 = por %p119, %p120
    %p122 = scmp.ne.s32.totalorder %s108, %s109
    %p123 = scmp.eq.s32.totalorder %s19, 15
    %p124 = por %p122, %p123
    %p126 = scmp.ne.s32.totalorder %s109, %s125
    %p127 = scmp.eq.s32.totalorder %s19, 0
    %p128 = por %p126, %p127
    %s130 = sadd.s32 %s129, 1
    %p133 = scmp.eq.s32.totalorder %s13, 15
    %p134 = scmp.ne.s32.totalorder %s129, %s131
    %p135 = scmp.eq.s32.totalorder %s13, 0
    %p136 = por %p134, %p135
    %p137 = scmp.ne.s32.totalorder %s129, %s131
    %p138 = scmp.eq.s32.totalorder %s18, 15
    %p139 = por %p137, %p138
    %p140 = scmp.ne.s32.totalorder %s131, %s132
    %p141 = scmp.eq.s32.totalorder %s18, 0
    %p142 = por %p140, %p141
    %p143 = scmp.ne.s32.totalorder %s131, %s132
    %p144 = scmp.eq.s32.totalorder %s19, 15
    %p145 = por %p143, %p144
    %p147 = scmp.ne.s32.totalorder %s132, %s146
    %p148 = scmp.eq.s32.totalorder %s19, 0
    %p149 = por %p147, %p148
    %s150 = ssub.s32 %s20, %s32
    %s151 = ssub.s32 %s21, %s28
    %s152 = sor.u32 %s150, %s151
    %p153 = scmp.eq.s32.totalorder %s152, 0
    %s155 = sadd.s32 %s154, 1
    %s156 = scalar_select %p153, %s154, %s155
    %p159 = pneg %p153
    %p160 = scmp.eq.s32.totalorder %s13, 15
    %p161 = por %p159, %p160
    %p162 = scmp.ne.s32.totalorder %s154, %s157
    %p163 = scmp.eq.s32.totalorder %s13, 0
    %p164 = por %p162, %p163
    %p165 = scmp.ne.s32.totalorder %s154, %s157
    %p166 = scmp.eq.s32.totalorder %s18, 15
    %p167 = por %p165, %p166
    %p168 = scmp.ne.s32.totalorder %s157, %s158
    %p169 = scmp.eq.s32.totalorder %s18, 0
    %p170 = por %p168, %p169
    %p171 = scmp.ne.s32.totalorder %s157, %s158
    %p172 = scmp.eq.s32.totalorder %s19, 15
    %p173 = por %p171, %p172
    %p175 = scmp.ne.s32.totalorder %s158, %s174
    %p176 = scmp.eq.s32.totalorder %s19, 0
    %p177 = por %p175, %p176
    %s178 = ssub.s32 %s20, %s32
    %p179 = scmp.eq.s32.totalorder %s178, 0
    %s181 = sadd.s32 %s180, 1
    %s182 = scalar_select %p179, %s180, %s181
    %p185 = pneg %p179
    %p186 = scmp.eq.s32.totalorder %s13, 15
    %p187 = por %p185, %p186
    %p188 = scmp.ne.s32.totalorder %s180, %s183
    %p189 = scmp.eq.s32.totalorder %s13, 0
    %p190 = por %p188, %p189
    %p191 = scmp.ne.s32.totalorder %s180, %s183
    %p192 = scmp.eq.s32.totalorder %s18, 15
    %p193 = por %p191, %p192
    %p194 = scmp.ne.s32.totalorder %s183, %s184
    %p195 = scmp.eq.s32.totalorder %s18, 0
    %p196 = por %p194, %p195
    %p197 = scmp.ne.s32.totalorder %s183, %s184
    %p198 = scmp.eq.s32.totalorder %s19, 15
    %p199 = por %p197, %p198
    %p201 = scmp.ne.s32.totalorder %s184, %s200
    %p202 = scmp.eq.s32.totalorder %s19, 0
    %p203 = por %p201, %p202
    %s204 = ssub.s32 %s20, %s32
    %p205 = scmp.eq.s32.totalorder %s204, 0
    %s207 = sadd.s32 %s206, 1
    %s208 = scalar_select %p205, %s206, %s207
    %p211 = pneg %p205
    %p212 = scmp.eq.s32.totalorder %s13, 15
    %p213 = por %p211, %p212
    %p214 = scmp.ne.s32.totalorder %s206, %s209
    %p215 = scmp.eq.s32.totalorder %s13, 0
    %p216 = por %p214, %p215
    %p217 = scmp.ne.s32.totalorder %s206, %s209
    %p218 = scmp.eq.s32.totalorder %s18, 15
    %p219 = por %p217, %p218
    %p220 = scmp.ne.s32.totalorder %s209, %s210
    %p221 = scmp.eq.s32.totalorder %s18, 0
    %p222 = por %p220, %p221
    %p223 = scmp.ne.s32.totalorder %s209, %s210
    %p224 = scmp.eq.s32.totalorder %s19, 15
    %p225 = por %p223, %p224
    %p227 = scmp.ne.s32.totalorder %s210, %s226
    %p228 = scmp.eq.s32.totalorder %s19, 0
    %p229 = por %p227, %p228
    %p230 = scmp.le.s32.totalorder 1, %s13
    %p231 = scmp.lt.s32.totalorder %s13, 17
    %p232 = pnand %p230, %p231
    %p233 = pneg %p232
    // Predicated region
    $region9: #{up_block_forward.6} parent=5 // pred_check
      _
    $region10: #{up_block_forward.6} parent=5 // pred_check_branch
      %235 = sbr.rel (%p232) target = $region12
    $region11: #{up_block_forward.6} parent=5 // pred_region
      %s236 = ssub.s32 %s13, 1
      // Predicated region
      $region13: #{up_block_forward.6} parent=11 // pred_check
        %p237 = pneg %p142
      $region14: #{up_block_forward.6} parent=11 // pred_check_branch
        %239 = sbr.rel (%p237) target = $region16
      $region15: #{up_block_forward.6} parent=11 // pred_region
        _
      $region16: #{up_block_forward.6} parent=11 // pred_fallthru
        _
    $region12: #{up_block_forward.6} parent=5 // pred_fallthru
      _
    %p240 = scmp.lt.s32.totalorder %s13, 16
    // Predicated region
    $region17: #{up_block_forward.6} parent=5 // pred_check
      %p241 = pneg %p240
    $region18: #{up_block_forward.6} parent=5 // pred_check_branch
      %243 = sbr.rel (%p241) target = $region20
    $region19: #{up_block_forward.6} parent=5 // pred_region
      // Predicated region
      $region21: #{up_block_forward.6} parent=19 // pred_check
        %p244 = pneg %p53
      $region22: #{up_block_forward.6} parent=19 // pred_check_branch
        %246 = sbr.rel (%p244) target = $region24
      $region23: #{up_block_forward.6} parent=19 // pred_region
        %s247 = ssub.s32 %s21, 1
        %p248 = scmp.gt.s32.totalorder %s247, 0
        %s249 = scalar_select %p248, %s247, 0
        %p250 = scmp.lt.s32.totalorder %s20, 1
        %s251 = scalar_select %p250, %s20, 1
        %p252 = scmp.lt.s32.totalorder %s249, 7
        %s253 = scalar_select %p252, %s249, 7
        %s254 = smul.addr %s253, 14
        %s255 = smul.addr %s251, 112
        %s256 = sadd.s32 %s254, %s255
        %s257 = smul.addr %s256, 4
        %s258 = scalar_lea.vmem %s0, %s257
        %s259 = ssub.s32 %s21, 1
        %p260 = scmp.gt.s32.totalorder %s259, 0
        %s261 = scalar_select %p260, %s259, 0
      $region24: #{up_block_forward.6} parent=19 // pred_fallthru
        _
      // Predicated region
      $region25: #{up_block_forward.6} parent=19 // pred_check
        %p262 = pneg %p81
      $region26: #{up_block_forward.6} parent=19 // pred_check_branch
        %264 = sbr.rel (%p262) target = $region28
      $region27: #{up_block_forward.6} parent=19 // pred_region
        %p265 = scmp.lt.s32.totalorder %s20, 1
        %s266 = scalar_select %p265, %s20, 1
        %p267 = scmp.lt.s32.totalorder %s21, 7
        %s268 = scalar_select %p267, %s21, 7
        %s269 = smul.addr %s268, 14
        %s270 = smul.addr %s266, 112
        %s271 = sadd.s32 %s269, %s270
        %s272 = smul.addr %s271, 4
        %s273 = scalar_lea.vmem %s1, %s272
      $region28: #{up_block_forward.6} parent=19 // pred_fallthru
        _
      // Predicated region
      $region29: #{up_block_forward.6} parent=19 // pred_check
        %p274 = pneg %p115
      $region30: #{up_block_forward.6} parent=19 // pred_check_branch
        %276 = sbr.rel (%p274) target = $region32
      $region31: #{up_block_forward.6} parent=19 // pred_region
        %s277 = sadd.s32 %s21, 1
        %p278 = scmp.lt.s32.totalorder %s277, 7
        %s279 = scalar_select %p278, %s277, 7
        %p280 = scmp.lt.s32.totalorder %s20, 1
        %s281 = scalar_select %p280, %s20, 1
        %p282 = scmp.lt.s32.totalorder %s279, 7
        %s283 = scalar_select %p282, %s279, 7
        %s284 = smul.addr %s283, 14
        %s285 = smul.addr %s281, 112
        %s286 = sadd.s32 %s284, %s285
        %s287 = smul.addr %s286, 4
        %s288 = scalar_lea.vmem %s2, %s287
        %s289 = sadd.s32 %s21, 1
        %p290 = scmp.lt.s32.totalorder %s289, 7
        %s291 = scalar_select %p290, %s289, 7
      $region32: #{up_block_forward.6} parent=19 // pred_fallthru
        _
    $region20: #{up_block_forward.6} parent=5 // pred_fallthru
      _
    %p292 = scmp.le.s32.totalorder 1, %s13
    %p293 = scmp.lt.s32.totalorder %s13, 17
    %p294 = pnand %p292, %p293
    %p295 = pneg %p294
    // Predicated region
    $region33: #{up_block_forward.6} parent=5 // pred_check
      _
    $region34: #{up_block_forward.6} parent=5 // pred_check_branch
      %297 = sbr.rel (%p294) target = $region36
    $region35: #{up_block_forward.6} parent=5 // pred_region
      %s298 = ssub.s32 %s13, 1
      %s299 = ssub.s32 %s23, 1
      %p300 = scmp.gt.s32.totalorder %s299, 0
      %s301 = scalar_select %p300, %s299, 0
      %p302 = scmp.lt.s32.totalorder %s22, 1
      %s303 = scalar_select %p302, %s22, 1
      %p304 = scmp.lt.s32.totalorder %s301, 7
      %s305 = scalar_select %p304, %s301, 7
      %s306 = smul.addr %s305, 14
      %s307 = smul.addr %s303, 112
      %s308 = sadd.s32 %s306, %s307
      %s309 = smul.addr %s308, 4
      %s310 = scalar_lea.vmem %s0, %s309
      %p311 = pneg %p59
      %p312 = pneg %p56
      %p313 = scmp.lt.s32.totalorder %s22, 1
      %s314 = scalar_select %p313, %s22, 1
      %p315 = scmp.lt.s32.totalorder %s23, 7
      %s316 = scalar_select %p315, %s23, 7
      %s317 = smul.addr %s316, 14
      %s318 = smul.addr %s314, 112
      %s319 = sadd.s32 %s317, %s318
      %s320 = smul.addr %s319, 4
      %s321 = scalar_lea.vmem %s1, %s320
      %p322 = pneg %p87
      %p323 = pneg %p84
      %s324 = sadd.s32 %s23, 1
      %p325 = scmp.lt.s32.totalorder %s324, 7
      %s326 = scalar_select %p325, %s324, 7
      %p327 = scmp.lt.s32.totalorder %s22, 1
      %s328 = scalar_select %p327, %s22, 1
      %p329 = scmp.lt.s32.totalorder %s326, 7
      %s330 = scalar_select %p329, %s326, 7
      %s331 = smul.addr %s330, 14
      %s332 = smul.addr %s328, 112
      %s333 = sadd.s32 %s331, %s332
      %s334 = smul.addr %s333, 4
      %s335 = scalar_lea.vmem %s2, %s334
      %p336 = pneg %p121
      %p337 = pneg %p118
      %p338 = pneg %p142
      %p339 = pneg %p139
      %p340 = pneg %p170
      %p341 = pneg %p167
      %p342 = scmp.lt.s32.totalorder %s22, 1
      %s343 = scalar_select %p342, %s22, 1
      %p344 = scmp.lt.s32.totalorder %s23, 7
      %s345 = scalar_select %p344, %s23, 7
      %s346 = smul.addr %s345, 10
      %s347 = smul.addr %s343, 80
      %s348 = sadd.s32 %s346, %s347
      %s349 = smul.addr %s348, 8
      %s350 = scalar_lea.vmem %s4, %s349
      %p351 = pneg %p196
      %p352 = pneg %p193
      %p353 = scmp.lt.s32.totalorder %s22, 1
      %s354 = scalar_select %p353, %s22, 1
      %s355 = smul.addr %s354, 8
      %s356 = scalar_lea.vmem %s5, %s355
      %p357 = pneg %p222
      %p358 = pneg %p219
      %p359 = scmp.lt.s32.totalorder %s22, 1
      %s360 = scalar_select %p359, %s22, 1
      %s361 = smul.addr %s360, 8
      %s362 = scalar_lea.vmem %s6, %s361
      %s363 = ssub.s32 %s23, 1
      %p364 = scmp.gt.s32.totalorder %s363, 0
      %s365 = scalar_select %p364, %s363, 0
      %p366 = scmp.lt.s32.totalorder %s22, 1
      %s367 = scalar_select %p366, %s22, 1
      %p368 = scmp.lt.s32.totalorder %s365, 7
      %s369 = scalar_select %p368, %s365, 7
      %s370 = smul.addr %s369, 14
      %s371 = smul.addr %s367, 112
      %s372 = sadd.s32 %s370, %s371
      %s373 = smul.addr %s372, 4
      %s374 = scalar_lea.vmem %s0, %s373
      %s375 = ssub.s32 %s23, 1
      %p376 = scmp.gt.s32.totalorder %s375, 0
      %s377 = scalar_select %p376, %s375, 0
      %p378 = scmp.lt.s32.totalorder %s22, 1
      %s379 = scalar_select %p378, %s22, 1
      %p380 = scmp.lt.s32.totalorder %s23, 7
      %s381 = scalar_select %p380, %s23, 7
      %s382 = smul.addr %s381, 14
      %s383 = smul.addr %s379, 112
      %s384 = sadd.s32 %s382, %s383
      %s385 = smul.addr %s384, 4
      %s386 = scalar_lea.vmem %s1, %s385
      %s387 = sadd.s32 %s23, 1
      %p388 = scmp.lt.s32.totalorder %s387, 7
      %s389 = scalar_select %p388, %s387, 7
      %p390 = scmp.lt.s32.totalorder %s22, 1
      %s391 = scalar_select %p390, %s22, 1
      %p392 = scmp.lt.s32.totalorder %s389, 7
      %s393 = scalar_select %p392, %s389, 7
      %s394 = smul.addr %s393, 14
      %s395 = smul.addr %s391, 112
      %s396 = sadd.s32 %s394, %s395
      %s397 = smul.addr %s396, 4
      %s398 = scalar_lea.vmem %s2, %s397
      %s399 = sadd.s32 %s23, 1
      %p400 = scmp.lt.s32.totalorder %s399, 7
      %s401 = scalar_select %p400, %s399, 7
      %p402 = scmp.lt.s32.totalorder %s22, 1
      %s403 = scalar_select %p402, %s22, 1
      %p404 = scmp.lt.s32.totalorder %s23, 7
      %s405 = scalar_select %p404, %s23, 7
      %s406 = smul.addr %s405, 10
      %s407 = smul.addr %s403, 80
      %s408 = sadd.s32 %s406, %s407
      %s409 = smul.addr %s408, 8
      %s410 = scalar_lea.vmem %s4, %s409
      %p411 = scmp.lt.s32.totalorder %s22, 1
      %s412 = scalar_select %p411, %s22, 1
      %s413 = smul.addr %s412, 8
      %s414 = scalar_lea.vmem %s5, %s413
      %p415 = scmp.lt.s32.totalorder %s22, 1
      %s416 = scalar_select %p415, %s22, 1
      %s417 = smul.addr %s416, 8
      %s418 = scalar_lea.vmem %s6, %s417
      %v420 = vld [vmem:[%s386] sm:$0xf]
      %v421 = vld [vmem:[%s386 + $0x4] sm:$0xf]
      %v422 = vld [vmem:[%s386 + $0x8] sm:$0xf]
      %v423 = vld [vmem:[%s386 + $0xc] sm:$0xf]
      %v424 = vld [vmem:[%s386 + $0x10] sm:$0xf]
      %v425 = vld [vmem:[%s386 + $0x14] sm:$0xf]
      %v426 = vld [vmem:[%s386 + $0x18] sm:$0xf]
      %v427 = vld [vmem:[%s386 + $0x1c] sm:$0xf]
      %v428 = vld [vmem:[%s386 + $0x20] sm:$0xf]
      %v429 = vld [vmem:[%s386 + $0x24] sm:$0xf]
      %s430 = scalar_lea.vmem %s3, 36
      %v431 = vld [vmem:[%s430] sm:$0xf]
      %v432 = vld [vmem:[%s386 + $0x28] sm:$0x1]
      %s433 = scalar_lea.vmem %s3, 40
      %v434 = vld [vmem:[%s433] sm:$0xf]
      %v446 = vunpack.c.l.b16 %v420
      %v447 = vunpack.c.l.b16 %v421
      %v448 = vunpack.c.l.b16 %v422
      %v449 = vunpack.c.l.b16 %v423
      %v450 = vunpack.c.l.b16 %v424
      %v451 = vunpack.c.l.b16 %v425
      %v452 = vunpack.c.l.b16 %v426
      %v453 = vunpack.c.l.b16 %v427
      %v454 = vunpack.c.l.b16 %v428
      %v455 = vunpack.c.l.b16 %v429
      %v456 = vunpack.c.l.b16 %v432
      %v457 = vpack.c.b16 %v447, %v446
      %v458 = vpack.c.b16 %v449, %v448
      %v459 = vpack.c.b16 %v451, %v450
      %v460 = vpack.c.b16 %v453, %v452
      %v461 = vpack.c.b16 %v455, %v454
      %v462 = vpack.c.b16 %v456, %v456
      %vm463 = vsmask.f32 7424
      %v465 = vshrl.u32 %v457, 16
      %v467 = vshll.u32 %v457, 16
      %v469 = vrot.slane %v467, 1
      %v470 = vor.u32 %v465, %v469
      %v472 = vshll.u32 %v458, 16
      %v474 = vrot.slane %v472, 1
      %v475 = vsel %vm463, %v470, %v474
      %v476 = vshrl.u32 %v458, 16
      %v478 = vor.u32 %v476, %v474
      %v480 = vshll.u32 %v459, 16
      %v482 = vrot.slane %v480, 1
      %v483 = vsel %vm463, %v478, %v482
      %v484 = vshrl.u32 %v459, 16
      %v486 = vor.u32 %v484, %v482
      %v488 = vshll.u32 %v460, 16
      %v490 = vrot.slane %v488, 1
      %v491 = vsel %vm463, %v486, %v490
      %v492 = vshrl.u32 %v460, 16
      %v494 = vor.u32 %v492, %v490
      %v496 = vshll.u32 %v461, 16
      %v498 = vrot.slane %v496, 1
      %v499 = vsel %vm463, %v494, %v498
      %v500 = vshrl.u32 %v461, 16
      %v502 = vor.u32 %v500, %v498
      %v504 = vshll.u32 %v462, 16
      %v506 = vrot.slane %v504, 1
      %v507 = vsel %vm463, %v502, %v506
      %vm508 = vcmask 64512
      %v510 = vsel %vm508, %v475, 0
      %v513 = vsel %vm508, %v483, 0
      %v516 = vsel %vm508, %v491, 0
      %v519 = vsel %vm508, %v499, 0
      %v522 = vsel %vm508, %v507, 0
      %vm524 = vcmask 1043456
      %v526 = vsel %vm524, %v434, 0
      %528 = vmatprep.subr.bf16.mxu0 0
      %529 = vmatpush1.bf16.msra.mxu0 %v526
      %530 = vmatprep.subr.bf16.mxu0 0
      %531 = vmatpush1.bf16.msra.mxu0 0
      %532 = vmatprep.subr.bf16.mxu0 0
      %533 = vmatpush1.bf16.msra.mxu0 0
      %534 = vmatprep.subr.bf16.mxu0 0
      %535 = vmatpush1.bf16.msra.mxu0 0
      %536 = vmatprep.subr.bf16.mxu0 0
      %537 = vmatpush1.bf16.msra.mxu0 0
      %538 = vmatprep.subr.bf16.mxu0 0
      %539 = vmatpush1.bf16.msra.mxu0 0
      %540 = vmatprep.subr.bf16.mxu0 0
      %541 = vmatpush1.bf16.msra.mxu0 0
      %542 = vmatprep.subr.bf16.mxu0 0
      %543 = vmatpush1.bf16.msra.mxu0 0
      %544 = vmatprep.subr.bf16.mxu0 0
      %545 = vmatpush1.bf16.msra.mxu0 0
      %546 = vmatprep.subr.bf16.mxu0 0
      %547 = vmatpush1.bf16.msra.mxu0 0
      %548 = vmatprep.subr.bf16.mxu0 0
      %549 = vmatpush1.bf16.msra.mxu0 0
      %550 = vmatprep.subr.bf16.mxu0 0
      %551 = vmatpush1.bf16.msra.mxu0 0
      %552 = vmatprep.subr.bf16.mxu0 0
      %553 = vmatpush1.bf16.msra.mxu0 0
      %554 = vmatprep.subr.bf16.mxu0 0
      %555 = vmatpush1.bf16.msra.mxu0 0
      %556 = vmatprep.subr.bf16.mxu0 0
      %557 = vmatpush1.bf16.msra.mxu0 0
      %558 = vmatprep.subr.bf16.mxu0 0
      %559 = vmatpush1.bf16.msra.mxu0 0
      %560 = vmatprep.mubr.bf16.mxu0 0
      %561 = vmatmul.mubr.bf16.gmra.mrb[0].mxu0 %v510
      %v562 = vpop.f32.mrb[0].mxu0
      %v563 = vadd.f32 0.0, %v562
      %v564 = vpop.f32.mrb[0].mxu0
      %v565 = vpop.f32.mrb[0].mxu0
      %v566 = vadd.f32 0.0, %v565
      %v567 = vpop.f32.mrb[0].mxu0
      %568 = vmatprep.mubr.bf16.mxu0 0
      %569 = vmatmul.mubr.bf16.gmra.mrb[0].mxu0 %v513
      %v570 = vpop.f32.mrb[0].mxu0
      %v571 = vadd.f32 0.0, %v570
      %v572 = vpop.f32.mrb[0].mxu0
      %v573 = vpop.f32.mrb[0].mxu0
      %v574 = vadd.f32 0.0, %v573
      %v575 = vpop.f32.mrb[0].mxu0
      %576 = vmatprep.mubr.bf16.mxu0 0
      %577 = vmatmul.mubr.bf16.gmra.mrb[0].mxu0 %v516
      %v578 = vpop.f32.mrb[0].mxu0
      %v579 = vadd.f32 0.0, %v578
      %v580 = vpop.f32.mrb[0].mxu0
      %v581 = vpop.f32.mrb[0].mxu0
      %v582 = vadd.f32 0.0, %v581
      %v583 = vpop.f32.mrb[0].mxu0
      %584 = vmatprep.mubr.bf16.mxu0 0
      %585 = vmatmul.mubr.bf16.gmra.mrb[0].mxu0 %v519
      %v586 = vpop.f32.mrb[0].mxu0
      %v587 = vadd.f32 0.0, %v586
      %v588 = vpop.f32.mrb[0].mxu0
      %v589 = vpop.f32.mrb[0].mxu0
      %v590 = vadd.f32 0.0, %v589
      %v591 = vpop.f32.mrb[0].mxu0
      %592 = vmatprep.mubr.bf16.mxu0 0
      %593 = vmatmul.mubr.bf16.gmra.mrb[0].mxu0 %v522
      %v594 = vpop.f32.mrb[0].mxu0
      %v595 = vadd.f32 0.0, %v594
      %v596 = vpop.f32.mrb[0].mxu0
      %v597 = vpop.f32.mrb[0].mxu0
      %v598 = vadd.f32 0.0, %v597
      %v599 = vpop.f32.mrb[0].mxu0
      %600 = vdwg.mxu0
      %v601 = vsel %vm508, %v457, 0
      %v603 = vsel %vm508, %v458, 0
      %v605 = vsel %vm508, %v459, 0
      %v607 = vsel %vm508, %v460, 0
      %v609 = vsel %vm508, %v461, 0
      %v612 = vsel %vm524, %v431, 0
      %614 = vmatprep.subr.bf16.mxu0 0
      %615 = vmatpush1.bf16.msra.mxu0 %v612
      %616 = vmatprep.subr.bf16.mxu0 0
      %617 = vmatpush1.bf16.msra.mxu0 0
      %618 = vmatprep.subr.bf16.mxu0 0
      %619 = vmatpush1.bf16.msra.mxu0 0
      %620 = vmatprep.subr.bf16.mxu0 0
      %621 = vmatpush1.bf16.msra.mxu0 0
      %622 = vmatprep.subr.bf16.mxu0 0
      %623 = vmatpush1.bf16.msra.mxu0 0
      %624 = vmatprep.subr.bf16.mxu0 0
      %625 = vmatpush1.bf16.msra.mxu0 0
      %626 = vmatprep.subr.bf16.mxu0 0
      %627 = vmatpush1.bf16.msra.mxu0 0
      %628 = vmatprep.subr.bf16.mxu0 0
      %629 = vmatpush1.bf16.msra.mxu0 0
      %630 = vmatprep.subr.bf16.mxu0 0
      %631 = vmatpush1.bf16.msra.mxu0 0
      %632 = vmatprep.subr.bf16.mxu0 0
      %633 = vmatpush1.bf16.msra.mxu0 0
      %634 = vmatprep.subr.bf16.mxu0 0
      %635 = vmatpush1.bf16.msra.mxu0 0
      %636 = vmatprep.subr.bf16.mxu0 0
      %637 = vmatpush1.bf16.msra.mxu0 0
      %638 = vmatprep.subr.bf16.mxu0 0
      %639 = vmatpush1.bf16.msra.mxu0 0
      %640 = vmatprep.subr.bf16.mxu0 0
      %641 = vmatpush1.bf16.msra.mxu0 0
      %642 = vmatprep.subr.bf16.mxu0 0
      %643 = vmatpush1.bf16.msra.mxu0 0
      %644 = vmatprep.subr.bf16.mxu0 0
      %645 = vmatpush1.bf16.msra.mxu0 0
      %646 = vmatprep.mubr.bf16.mxu0 0
      %647 = vmatmul.mubr.bf16.gmra.mrb[0].mxu0 %v601
      %v648 = vpop.f32.mrb[0].mxu0
      %v649 = vadd.f32 %v563, %v648
      %v650 = vpop.f32.mrb[0].mxu0
      %v651 = vpop.f32.mrb[0].mxu0
      %v652 = vadd.f32 %v566, %v651
      %v653 = vpop.f32.mrb[0].mxu0
      %654 = vmatprep.mubr.bf16.mxu0 0
      %655 = vmatmul.mubr.bf16.gmra.mrb[0].mxu0 %v603
      %v656 = vpop.f32.mrb[0].mxu0
      %v657 = vadd.f32 %v571, %v656
      %v658 = vpop.f32.mrb[0].mxu0
      %v659 = vpop.f32.mrb[0].mxu0
      %v660 = vadd.f32 %v574, %v659
      %v661 = vpop.f32.mrb[0].mxu0
      %662 = vmatprep.mubr.bf16.mxu0 0
      %663 = vmatmul.mubr.bf16.gmra.mrb[0].mxu0 %v605
      %v664 = vpop.f32.mrb[0].mxu0
      %v665 = vadd.f32 %v579, %v664
      %v666 = vpop.f32.mrb[0].mxu0
      %v667 = vpop.f32.mrb[0].mxu0
      %v668 = vadd.f32 %v582, %v667
      %v669 = vpop.f32.mrb[0].mxu0
      %670 = vmatprep.mubr.bf16.mxu0 0
      %671 = vmatmul.mubr.bf16.gmra.mrb[0].mxu0 %v607
      %v672 = vpop.f32.mrb[0].mxu0
      %v673 = vadd.f32 %v587, %v672
      %v674 = vpop.f32.mrb[0].mxu0
      %v675 = vpop.f32.mrb[0].mxu0
      %v676 = vadd.f32 %v590, %v675
      %v677 = vpop.f32.mrb[0].mxu0
      %678 = vmatprep.mubr.bf16.mxu0 0
      %679 = vmatmul.mubr.bf16.gmra.mrb[0].mxu0 %v609
      %v680 = vpop.f32.mrb[0].mxu0
      %v681 = vadd.f32 %v595, %v680
      %v682 = vpop.f32.mrb[0].mxu0
      %v683 = vpop.f32.mrb[0].mxu0
      %v684 = vadd.f32 %v598, %v683
      %v685 = vpop.f32.mrb[0].mxu0
      %686 = vdwg.mxu0
      %v687 = vld [vmem:[%s386] sm:$0xe]
      %s688 = scalar_lea.vmem %s3, 44
      %v689 = vld [vmem:[%s688] sm:$0xf]
      %v691 = vunpack.c.l.b16 %v687
      %v692 = vpack.c.b16 %v447, %v691
      %vm693 = vcmask 1046528
      %v694 = vrot.slane %v692, 1
      %v695 = vrot.slane %v458, 1
      %v696 = vsel %vm693, %v694, %v695
      %v697 = vrot.slane %v459, 1
      %v698 = vsel %vm693, %v695, %v697
      %v699 = vrot.slane %v460, 1
      %v700 = vsel %vm693, %v697, %v699
      %v701 = vrot.slane %v461, 1
      %v702 = vsel %vm693, %v699, %v701
      %v703 = vrot.slane %v462, 1
      %v704 = vsel %vm693, %v701, %v703
      %v706 = vsel %vm508, %v696, 0
      %v709 = vsel %vm508, %v698, 0
      %v712 = vsel %vm508, %v700, 0
      %v715 = vsel %vm508, %v702, 0
      %v718 = vsel %vm508, %v704, 0
      %v721 = vsel %vm524, %v689, 0
      %723 = vmatprep.subr.bf16.mxu0 0
      %724 = vmatpush1.bf16.msra.mxu0 %v721
      %725 = vmatprep.subr.bf16.mxu0 0
      %726 = vmatpush1.bf16.msra.mxu0 0
      %727 = vmatprep.subr.bf16.mxu0 0
      %728 = vmatpush1.bf16.msra.mxu0 0
      %729 = vmatprep.subr.bf16.mxu0 0
      %730 = vmatpush1.bf16.msra.mxu0 0
      %731 = vmatprep.subr.bf16.mxu0 0
      %732 = vmatpush1.bf16.msra.mxu0 0
      %733 = vmatprep.subr.bf16.mxu0 0
      %734 = vmatpush1.bf16.msra.mxu0 0
      %735 = vmatprep.subr.bf16.mxu0 0
      %736 = vmatpush1.bf16.msra.mxu0 0
      %737 = vmatprep.subr.bf16.mxu0 0
      %738 = vmatpush1.bf16.msra.mxu0 0
      %739 = vmatprep.subr.bf16.mxu0 0
      %740 = vmatpush1.bf16.msra.mxu0 0
      %741 = vmatprep.subr.bf16.mxu0 0
      %742 = vmatpush1.bf16.msra.mxu0 0
      %743 = vmatprep.subr.bf16.mxu0 0
      %744 = vmatpush1.bf16.msra.mxu0 0
      %745 = vmatprep.subr.bf16.mxu0 0
      %746 = vmatpush1.bf16.msra.mxu0 0
      %747 = vmatprep.subr.bf16.mxu0 0
      %748 = vmatpush1.bf16.msra.mxu0 0
      %749 = vmatprep.subr.bf16.mxu0 0
      %750 = vmatpush1.bf16.msra.mxu0 0
      %751 = vmatprep.subr.bf16.mxu0 0
      %752 = vmatpush1.bf16.msra.mxu0 0
      %753 = vmatprep.subr.bf16.mxu0 0
      %754 = vmatpush1.bf16.msra.mxu0 0
      %755 = vmatprep.mubr.bf16.mxu0 0
      %756 = vmatmul.mubr.bf16.gmra.mrb[0].mxu0 %v706
      %v757 = vpop.f32.mrb[0].mxu0
      %v758 = vadd.f32 0.0, %v757
      %v759 = vpop.f32.mrb[0].mxu0
      %v760 = vpop.f32.mrb[0].mxu0
      %v761 = vadd.f32 0.0, %v760
      %v762 = vpop.f32.mrb[0].mxu0
      %763 = vmatprep.mubr.bf16.mxu0 0
      %764 = vmatmul.mubr.bf16.gmra.mrb[0].mxu0 %v709
      %v765 = vpop.f32.mrb[0].mxu0
      %v766 = vadd.f32 0.0, %v765
      %v767 = vpop.f32.mrb[0].mxu0
      %v768 = vpop.f32.mrb[0].mxu0
      %v769 = vadd.f32 0.0, %v768
      %v770 = vpop.f32.mrb[0].mxu0
      %771 = vmatprep.mubr.bf16.mxu0 0
      %772 = vmatmul.mubr.bf16.gmra.mrb[0].mxu0 %v712
      %v773 = vpop.f32.mrb[0].mxu0
      %v774 = vadd.f32 0.0, %v773
      %v775 = vpop.f32.mrb[0].mxu0
      %v776 = vpop.f32.mrb[0].mxu0
      %v777 = vadd.f32 0.0, %v776
      %v778 = vpop.f32.mrb[0].mxu0
      %779 = vmatprep.mubr.bf16.mxu0 0
      %780 = vmatmul.mubr.bf16.gmra.mrb[0].mxu0 %v715
      %v781 = vpop.f32.mrb[0].mxu0
      %v782 = vadd.f32 0.0, %v781
      %v783 = vpop.f32.mrb[0].mxu0
      %v784 = vpop.f32.mrb[0].mxu0
      %v785 = vadd.f32 0.0, %v784
      %v786 = vpop.f32.mrb[0].mxu0
      %787 = vmatprep.mubr.bf16.mxu0 0
      %788 = vmatmul.mubr.bf16.gmra.mrb[0].mxu0 %v718
      %v789 = vpop.f32.mrb[0].mxu0
      %v790 = vadd.f32 0.0, %v789
      %v791 = vpop.f32.mrb[0].mxu0
      %v792 = vpop.f32.mrb[0].mxu0
      %v793 = vadd.f32 0.0, %v792
      %v794 = vpop.f32.mrb[0].mxu0
      %795 = vdwg.mxu0
      %v796 = vadd.f32 %v649, %v758
      %v797 = vadd.f32 %v652, %v761
      %v798 = vadd.f32 %v657, %v766
      %v799 = vadd.f32 %v660, %v769
      %v800 = vadd.f32 %v665, %v774
      %v801 = vadd.f32 %v668, %v777
      %v802 = vadd.f32 %v673, %v782
      %v803 = vadd.f32 %v676, %v785
      %v804 = vadd.f32 %v681, %v790
      %v805 = vadd.f32 %v684, %v793
      %v806 = vld [vmem:[%s386 + $0x4] sm:$0xe]
      %v807 = vld [vmem:[%s386 + $0x8] sm:$0xf]
      %v808 = vld [vmem:[%s386 + $0xc] sm:$0xf]
      %v809 = vld [vmem:[%s386 + $0x10] sm:$0xf]
      %v810 = vld [vmem:[%s386 + $0x14] sm:$0xf]
      %v811 = vld [vmem:[%s386 + $0x18] sm:$0xf]
      %v812 = vld [vmem:[%s386 + $0x1c] sm:$0xf]
      %v813 = vld [vmem:[%s386 + $0x20] sm:$0xf]
      %v814 = vld [vmem:[%s386 + $0x24] sm:$0xf]
      %v815 = vld [vmem:[%s386 + $0x28] sm:$0xf]
      %v816 = vld [vmem:[%s386 + $0x2c] sm:$0x1]
      %s817 = scalar_lea.vmem %s3, 48
      %v818 = vld [vmem:[%s817] sm:$0xf]
      %v830 = vunpack.c.l.b16 %v806
      %v831 = vunpack.c.l.b16 %v807
      %v832 = vunpack.c.l.b16 %v808
      %v833 = vunpack.c.l.b16 %v809
      %v834 = vunpack.c.l.b16 %v810
      %v835 = vunpack.c.l.b16 %v811
      %v836 = vunpack.c.l.b16 %v812
      %v837 = vunpack.c.l.b16 %v813
      %v838 = vunpack.c.l.b16 %v814
      %v839 = vunpack.c.l.b16 %v815
      %v840 = vunpack.c.l.b16 %v816
      %v841 = vpack.c.b16 %v831, %v830
      %v842 = vpack.c.b16 %v833, %v832
      %v843 = vpack.c.b16 %v835, %v834
      %v844 = vpack.c.b16 %v837, %v836
      %v845 = vpack.c.b16 %v839, %v838
      %v846 = vpack.c.b16 %v840, %v840
      %v847 = vrot.slane %v841, 1
      %v848 = vrot.slane %v842, 1
      %v849 = vsel %vm693, %v847, %v848
      %v850 = vrot.slane %v843, 1
      %v851 = vsel %vm693, %v848, %v850
      %v852 = vrot.slane %v844, 1
      %v853 = vsel %vm693, %v850, %v852
      %v854 = vrot.slane %v845, 1
      %v855 = vsel %vm693, %v852, %v854
      %v856 = vrot.slane %v846, 1
      %v857 = vsel %vm693, %v854, %v856
      %v859 = vsel %vm508, %v849, 0
      %v862 = vsel %vm508, %v851, 0
      %v865 = vsel %vm508, %v853, 0
      %v868 = vsel %vm508, %v855, 0
      %v871 = vsel %vm508, %v857, 0
      %v874 = vsel %vm524, %v818, 0
      %876 = vmatprep.subr.bf16.mxu0 0
      %877 = vmatpush1.bf16.msra.mxu0 %v874
      %878 = vmatprep.subr.bf16.mxu0 0
      %879 = vmatpush1.bf16.msra.mxu0 0
      %880 = vmatprep.subr.bf16.mxu0 0
      %881 = vmatpush1.bf16.msra.mxu0 0
      %882 = vmatprep.subr.bf16.mxu0 0
      %883 = vmatpush1.bf16.msra.mxu0 0
      %884 = vmatprep.subr.bf16.mxu0 0
      %885 = vmatpush1.bf16.msra.mxu0 0
      %886 = vmatprep.subr.bf16.mxu0 0
      %887 = vmatpush1.bf16.msra.mxu0 0
      %888 = vmatprep.subr.bf16.mxu0 0
      %889 = vmatpush1.bf16.msra.mxu0 0
      %890 = vmatprep.subr.bf16.mxu0 0
      %891 = vmatpush1.bf16.msra.mxu0 0
      %892 = vmatprep.subr.bf16.mxu0 0
      %893 = vmatpush1.bf16.msra.mxu0 0
      %894 = vmatprep.subr.bf16.mxu0 0
      %895 = vmatpush1.bf16.msra.mxu0 0
      %896 = vmatprep.subr.bf16.mxu0 0
      %897 = vmatpush1.bf16.msra.mxu0 0
      %898 = vmatprep.subr.bf16.mxu0 0
      %899 = vmatpush1.bf16.msra.mxu0 0
      %900 = vmatprep.subr.bf16.mxu0 0
      %901 = vmatpush1.bf16.msra.mxu0 0
      %902 = vmatprep.subr.bf16.mxu0 0
      %903 = vmatpush1.bf16.msra.mxu0 0
      %904 = vmatprep.subr.bf16.mxu0 0
      %905 = vmatpush1.bf16.msra.mxu0 0
      %906 = vmatprep.subr.bf16.mxu0 0
      %907 = vmatpush1.bf16.msra.mxu0 0
      %908 = vmatprep.mubr.bf16.mxu0 0
      %909 = vmatmul.mubr.bf16.gmra.mrb[0].mxu0 %v859
      %v910 = vpop.f32.mrb[0].mxu0
      %v911 = vadd.f32 0.0, %v910
      %v912 = vpop.f32.mrb[0].mxu0
      %v913 = vpop.f32.mrb[0].mxu0
      %v914 = vadd.f32 0.0, %v913
      %v915 = vpop.f32.mrb[0].mxu0
      %916 = vmatprep.mubr.bf16.mxu0 0
      %917 = vmatmul.mubr.bf16.gmra.mrb[0].mxu0 %v862
      %v918 = vpop.f32.mrb[0].mxu0
      %v919 = vadd.f32 0.0, %v918
      %v920 = vpop.f32.mrb[0].mxu0
      %v921 = vpop.f32.mrb[0].mxu0
      %v922 = vadd.f32 0.0, %v921
      %v923 = vpop.f32.mrb[0].mxu0
      %924 = vmatprep.mubr.bf16.mxu0 0
      %925 = vmatmul.mubr.bf16.gmra.mrb[0].mxu0 %v865
      %v926 = vpop.f32.mrb[0].mxu0
      %v927 = vadd.f32 0.0, %v926
      %v928 = vpop.f32.mrb[0].mxu0
      %v929 = vpop.f32.mrb[0].mxu0
      %v930 = vadd.f32 0.0, %v929
      %v931 = vpop.f32.mrb[0].mxu0
      %932 = vmatprep.mubr.bf16.mxu0 0
      %933 = vmatmul.mubr.bf16.gmra.mrb[0].mxu0 %v868
      %v934 = vpop.f32.mrb[0].mxu0
      %v935 = vadd.f32 0.0, %v934
      %v936 = vpop.f32.mrb[0].mxu0
      %v937 = vpop.f32.mrb[0].mxu0
      %v938 = vadd.f32 0.0, %v937
      %v939 = vpop.f32.mrb[0].mxu0
      %940 = vmatprep.mubr.bf16.mxu0 0
      %941 = vmatmul.mubr.bf16.gmra.mrb[0].mxu0 %v871
      %v942 = vpop.f32.mrb[0].mxu0
      %v943 = vadd.f32 0.0, %v942
      %v944 = vpop.f32.mrb[0].mxu0
      %v945 = vpop.f32.mrb[0].mxu0
      %v946 = vadd.f32 0.0, %v945
      %v947 = vpop.f32.mrb[0].mxu0
      %948 = vdwg.mxu0
      %v949 = vadd.f32 %v796, %v911
      %v950 = vadd.f32 %v797, %v914
      %v951 = vadd.f32 %v798, %v919
      %v952 = vadd.f32 %v799, %v922
      %v953 = vadd.f32 %v800, %v927
      %v954 = vadd.f32 %v801, %v930
      %v955 = vadd.f32 %v802, %v935
      %v956 = vadd.f32 %v803, %v938
      %v957 = vadd.f32 %v804, %v943
      %v958 = vadd.f32 %v805, %v946
      %v959 = vld [vmem:[%s386 + $0x2c] sm:$0x3]
      %s960 = scalar_lea.vmem %s3, 52
      %v961 = vld [vmem:[%s960] sm:$0xf]
      %v963 = vunpack.c.l.b16 %v959
      %v964 = vpack.c.b16 %v963, %v963
      %vm965 = vsmask.f32 6400
      %v967 = vshrl.u32 %v841, 16
      %v969 = vrot.slane %v967, 1
      %v970 = vshll.u32 %v841, 16
      %v972 = vrot.slane %v970, 2
      %v973 = vor.u32 %v969, %v972
      %v975 = vshrl.u32 %v842, 16
      %v977 = vrot.slane %v975, 1
      %v978 = vshll.u32 %v842, 16
      %v980 = vrot.slane %v978, 2
      %v981 = vor.u32 %v977, %v980
      %v982 = vsel %vm965, %v973, %v981
      %v984 = vshrl.u32 %v843, 16
      %v986 = vrot.slane %v984, 1
      %v987 = vshll.u32 %v843, 16
      %v989 = vrot.slane %v987, 2
      %v990 = vor.u32 %v986, %v989
      %v991 = vsel %vm965, %v981, %v990
      %v993 = vshrl.u32 %v844, 16
      %v995 = vrot.slane %v993, 1
      %v996 = vshll.u32 %v844, 16
      %v998 = vrot.slane %v996, 2
      %v999 = vor.u32 %v995, %v998
      %v1000 = vsel %vm965, %v990, %v999
      %v1002 = vshrl.u32 %v845, 16
      %v1004 = vrot.slane %v1002, 1
      %v1005 = vshll.u32 %v845, 16
      %v1007 = vrot.slane %v1005, 2
      %v1008 = vor.u32 %v1004, %v1007
      %v1009 = vsel %vm965, %v999, %v1008
      %v1011 = vshrl.u32 %v964, 16
      %v1013 = vrot.slane %v1011, 1
      %v1014 = vshll.u32 %v964, 16
      %v1016 = vrot.slane %v1014, 2
      %v1017 = vor.u32 %v1013, %v1016
      %v1018 = vsel %vm965, %v1008, %v1017
      %v1020 = vsel %vm508, %v982, 0
      %v1023 = vsel %vm508, %v991, 0
      %v1026 = vsel %vm508, %v1000, 0
      %v1029 = vsel %vm508, %v1009, 0
      %v1032 = vsel %vm508, %v1018, 0
      %v1035 = vsel %vm524, %v961, 0
      %1037 = vmatprep.subr.bf16.mxu0 0
      %1038 = vmatpush1.bf16.msra.mxu0 %v1035
      %1039 = vmatprep.subr.bf16.mxu0 0
      %1040 = vmatpush1.bf16.msra.mxu0 0
      %1041 = vmatprep.subr.bf16.mxu0 0
      %1042 = vmatpush1.bf16.msra.mxu0 0
      %1043 = vmatprep.subr.bf16.mxu0 0
      %1044 = vmatpush1.bf16.msra.mxu0 0
      %1045 = vmatprep.subr.bf16.mxu0 0
      %1046 = vmatpush1.bf16.msra.mxu0 0
      %1047 = vmatprep.subr.bf16.mxu0 0
      %1048 = vmatpush1.bf16.msra.mxu0 0
      %1049 = vmatprep.subr.bf16.mxu0 0
      %1050 = vmatpush1.bf16.msra.mxu0 0
      %1051 = vmatprep.subr.bf16.mxu0 0
      %1052 = vmatpush1.bf16.msra.mxu0 0
      %1053 = vmatprep.subr.bf16.mxu0 0
      %1054 = vmatpush1.bf16.msra.mxu0 0
      %1055 = vmatprep.subr.bf16.mxu0 0
      %1056 = vmatpush1.bf16.msra.mxu0 0
      %1057 = vmatprep.subr.bf16.mxu0 0
      %1058 = vmatpush1.bf16.msra.mxu0 0
      %1059 = vmatprep.subr.bf16.mxu0 0
      %1060 = vmatpush1.bf16.msra.mxu0 0
      %1061 = vmatprep.subr.bf16.mxu0 0
      %1062 = vmatpush1.bf16.msra.mxu0 0
      %1063 = vmatprep.subr.bf16.mxu0 0
      %1064 = vmatpush1.bf16.msra.mxu0 0
      %1065 = vmatprep.subr.bf16.mxu0 0
      %1066 = vmatpush1.bf16.msra.mxu0 0
      %1067 = vmatprep.subr.bf16.mxu0 0
      %1068 = vmatpush1.bf16.msra.mxu0 0
      %1069 = vmatprep.mubr.bf16.mxu0 0
      %1070 = vmatmul.mubr.bf16.gmra.mrb[0].mxu0 %v1020
      %v1071 = vpop.f32.mrb[0].mxu0
      %v1072 = vadd.f32 0.0, %v1071
      %v1073 = vpop.f32.mrb[0].mxu0
      %v1074 = vpop.f32.mrb[0].mxu0
      %v1075 = vadd.f32 0.0, %v1074
      %v1076 = vpop.f32.mrb[0].mxu0
      %1077 = vmatprep.mubr.bf16.mxu0 0
      %1078 = vmatmul.mubr.bf16.gmra.mrb[0].mxu0 %v1023
      %v1079 = vpop.f32.mrb[0].mxu0
      %v1080 = vadd.f32 0.0, %v1079
      %v1081 = vpop.f32.mrb[0].mxu0
      %v1082 = vpop.f32.mrb[0].mxu0
      %v1083 = vadd.f32 0.0, %v1082
      %v1084 = vpop.f32.mrb[0].mxu0
      %1085 = vmatprep.mubr.bf16.mxu0 0
      %1086 = vmatmul.mubr.bf16.gmra.mrb[0].mxu0 %v1026
      %v1087 = vpop.f32.mrb[0].mxu0
      %v1088 = vadd.f32 0.0, %v1087
      %v1089 = vpop.f32.mrb[0].mxu0
      %v1090 = vpop.f32.mrb[0].mxu0
      %v1091 = vadd.f32 0.0, %v1090
      %v1092 = vpop.f32.mrb[0].mxu0
      %1093 = vmatprep.mubr.bf16.mxu0 0
      %1094 = vmatmul.mubr.bf16.gmra.mrb[0].mxu0 %v1029
      %v1095 = vpop.f32.mrb[0].mxu0
      %v1096 = vadd.f32 0.0, %v1095
      %v1097 = vpop.f32.mrb[0].mxu0
      %v1098 = vpop.f32.mrb[0].mxu0
      %v1099 = vadd.f32 0.0, %v1098
      %v1100 = vpop.f32.mrb[0].mxu0
      %1101 = vmatprep.mubr.bf16.mxu0 0
      %1102 = vmatmul.mubr.bf16.gmra.mrb[0].mxu0 %v1032
      %v1103 = vpop.f32.mrb[0].mxu0
      %v1104 = vadd.f32 0.0, %v1103
      %v1105 = vpop.f32.mrb[0].mxu0
      %v1106 = vpop.f32.mrb[0].mxu0
      %v1107 = vadd.f32 0.0, %v1106
      %v1108 = vpop.f32.mrb[0].mxu0
      %1109 = vdwg.mxu0
      %v1110 = vadd.f32 %v949, %v1072
      %v1111 = vadd.f32 %v950, %v1075
      %v1112 = vadd.f32 %v951, %v1080
      %v1113 = vadd.f32 %v952, %v1083
      %v1114 = vadd.f32 %v953, %v1088
      %v1115 = vadd.f32 %v954, %v1091
      %v1116 = vadd.f32 %v955, %v1096
      %v1117 = vadd.f32 %v956, %v1099
      %v1118 = vadd.f32 %v957, %v1104
      %v1119 = vadd.f32 %v958, %v1107
      %v1120 = vld [vmem:[%s386 + $0x4] sm:$0xc]
      %s1121 = scalar_lea.vmem %s3, 56
      %v1122 = vld [vmem:[%s1121] sm:$0xf]
      %v1124 = vunpack.c.l.b16 %v1120
      %v1125 = vpack.c.b16 %v831, %v1124
      %vm1126 = vcmask 1045504
      %v1127 = vrot.slane %v1125, 2
      %v1128 = vrot.slane %v842, 2
      %v1129 = vsel %vm1126, %v1127, %v1128
      %v1130 = vrot.slane %v843, 2
      %v1131 = vsel %vm1126, %v1128, %v1130
      %v1132 = vrot.slane %v844, 2
      %v1133 = vsel %vm1126, %v1130, %v1132
      %v1134 = vrot.slane %v845, 2
      %v1135 = vsel %vm1126, %v1132, %v1134
      %v1136 = vrot.slane %v964, 2
      %v1137 = vsel %vm1126, %v1134, %v1136
      %v1139 = vsel %vm508, %v1129, 0
      %v1142 = vsel %vm508, %v1131, 0
      %v1145 = vsel %vm508, %v1133, 0
      %v1148 = vsel %vm508, %v1135, 0
      %v1151 = vsel %vm508, %v1137, 0
      %v1154 = vsel %vm524, %v1122, 0
      %1156 = vmatprep.subr.bf16.mxu0 0
      %1157 = vmatpush1.bf16.msra.mxu0 %v1154
      %1158 = vmatprep.subr.bf16.mxu0 0
      %1159 = vmatpush1.bf16.msra.mxu0 0
      %1160 = vmatprep.subr.bf16.mxu0 0
      %1161 = vmatpush1.bf16.msra.mxu0 0
      %1162 = vmatprep.subr.bf16.mxu0 0
      %1163 = vmatpush1.bf16.msra.mxu0 0
      %1164 = vmatprep.subr.bf16.mxu0 0
      %1165 = vmatpush1.bf16.msra.mxu0 0
      %1166 = vmatprep.subr.bf16.mxu0 0
      %1167 = vmatpush1.bf16.msra.mxu0 0
      %1168 = vmatprep.subr.bf16.mxu0 0
      %1169 = vmatpush1.bf16.msra.mxu0 0
      %1170 = vmatprep.subr.bf16.mxu0 0
      %1171 = vmatpush1.bf16.msra.mxu0 0
      %1172 = vmatprep.subr.bf16.mxu0 0
      %1173 = vmatpush1.bf16.msra.mxu0 0
      %1174 = vmatprep.subr.bf16.mxu0 0
      %1175 = vmatpush1.bf16.msra.mxu0 0
      %1176 = vmatprep.subr.bf16.mxu0 0
      %1177 = vmatpush1.bf16.msra.mxu0 0
      %1178 = vmatprep.subr.bf16.mxu0 0
      %1179 = vmatpush1.bf16.msra.mxu0 0
      %1180 = vmatprep.subr.bf16.mxu0 0
      %1181 = vmatpush1.bf16.msra.mxu0 0
      %1182 = vmatprep.subr.bf16.mxu0 0
      %1183 = vmatpush1.bf16.msra.mxu0 0
      %1184 = vmatprep.subr.bf16.mxu0 0
      %1185 = vmatpush1.bf16.msra.mxu0 0
      %1186 = vmatprep.subr.bf16.mxu0 0
      %1187 = vmatpush1.bf16.msra.mxu0 0
      %1188 = vmatprep.mubr.bf16.mxu0 0
      %1189 = vmatmul.mubr.bf16.gmra.mrb[0].mxu0 %v1139
      %v1190 = vpop.f32.mrb[0].mxu0
      %v1191 = vadd.f32 0.0, %v1190
      %v1192 = vpop.f32.mrb[0].mxu0
      %v1193 = vpop.f32.mrb[0].mxu0
      %v1194 = vadd.f32 0.0, %v1193
      %v1195 = vpop.f32.mrb[0].mxu0
      %1196 = vmatprep.mubr.bf16.mxu0 0
      %1197 = vmatmul.mubr.bf16.gmra.mrb[0].mxu0 %v1142
      %v1198 = vpop.f32.mrb[0].mxu0
      %v1199 = vadd.f32 0.0, %v1198
      %v1200 = vpop.f32.mrb[0].mxu0
      %v1201 = vpop.f32.mrb[0].mxu0
      %v1202 = vadd.f32 0.0, %v1201
      %v1203 = vpop.f32.mrb[0].mxu0
      %1204 = vmatprep.mubr.bf16.mxu0 0
      %1205 = vmatmul.mubr.bf16.gmra.mrb[0].mxu0 %v1145
      %v1206 = vpop.f32.mrb[0].mxu0
      %v1207 = vadd.f32 0.0, %v1206
      %v1208 = vpop.f32.mrb[0].mxu0
      %v1209 = vpop.f32.mrb[0].mxu0
      %v1210 = vadd.f32 0.0, %v1209
      %v1211 = vpop.f32.mrb[0].mxu0
      %1212 = vmatprep.mubr.bf16.mxu0 0
      %1213 = vmatmul.mubr.bf16.gmra.mrb[0].mxu0 %v1148
      %v1214 = vpop.f32.mrb[0].mxu0
      %v1215 = vadd.f32 0.0, %v1214
      %v1216 = vpop.f32.mrb[0].mxu0
      %v1217 = vpop.f32.mrb[0].mxu0
      %v1218 = vadd.f32 0.0, %v1217
      %v1219 = vpop.f32.mrb[0].mxu0
      %1220 = vmatprep.mubr.bf16.mxu0 0
      %1221 = vmatmul.mubr.bf16.gmra.mrb[0].mxu0 %v1151
      %v1222 = vpop.f32.mrb[0].mxu0
      %v1223 = vadd.f32 0.0, %v1222
      %v1224 = vpop.f32.mrb[0].mxu0
      %v1225 = vpop.f32.mrb[0].mxu0
      %v1226 = vadd.f32 0.0, %v1225
      %v1227 = vpop.f32.mrb[0].mxu0
      %1228 = vdwg.mxu0
      %v1229 = vadd.f32 %v1110, %v1191
      %v1230 = vadd.f32 %v1111, %v1194
      %v1231 = vadd.f32 %v1112, %v1199
      %v1232 = vadd.f32 %v1113, %v1202
      %v1233 = vadd.f32 %v1114, %v1207
      %v1234 = vadd.f32 %v1115, %v1210
      %v1235 = vadd.f32 %v1116, %v1215
      %v1236 = vadd.f32 %v1117, %v1218
      %v1237 = vadd.f32 %v1118, %v1223
      %v1238 = vadd.f32 %v1119, %v1226
      %v1239 = vld [vmem:[%s386 + $0x8] sm:$0xc]
      %v1240 = vld [vmem:[%s386 + $0xc] sm:$0xf]
      %v1241 = vld [vmem:[%s386 + $0x10] sm:$0xf]
      %v1242 = vld [vmem:[%s386 + $0x14] sm:$0xf]
      %v1243 = vld [vmem:[%s386 + $0x18] sm:$0xf]
      %v1244 = vld [vmem:[%s386 + $0x1c] sm:$0xf]
      %v1245 = vld [vmem:[%s386 + $0x20] sm:$0xf]
      %v1246 = vld [vmem:[%s386 + $0x24] sm:$0xf]
      %v1247 = vld [vmem:[%s386 + $0x28] sm:$0xf]
      %v1248 = vld [vmem:[%s386 + $0x2c] sm:$0xf]
      %v1249 = vld [vmem:[%s386 + $0x30] sm:$0x3]
      %s1250 = scalar_lea.vmem %s3, 60
      %v1251 = vld [vmem:[%s1250] sm:$0xf]
      %v1263 = vunpack.c.l.b16 %v1239
      %v1264 = vunpack.c.l.b16 %v1240
      %v1265 = vunpack.c.l.b16 %v1241
      %v1266 = vunpack.c.l.b16 %v1242
      %v1267 = vunpack.c.l.b16 %v1243
      %v1268 = vunpack.c.l.b16 %v1244
      %v1269 = vunpack.c.l.b16 %v1245
      %v1270 = vunpack.c.l.b16 %v1246
      %v1271 = vunpack.c.l.b16 %v1247
      %v1272 = vunpack.c.l.b16 %v1248
      %v1273 = vunpack.c.l.b16 %v1249
      %v1274 = vpack.c.b16 %v1264, %v1263
      %v1275 = vpack.c.b16 %v1266, %v1265
      %v1276 = vpack.c.b16 %v1268, %v1267
      %v1277 = vpack.c.b16 %v1270, %v1269
      %v1278 = vpack.c.b16 %v1272, %v1271
      %v1279 = vpack.c.b16 %v1273, %v1273
      %v1280 = vrot.slane %v1274, 2
      %v1281 = vrot.slane %v1275, 2
      %v1282 = vsel %vm1126, %v1280, %v1281
      %v1283 = vrot.slane %v1276, 2
      %v1284 = vsel %vm1126, %v1281, %v1283
      %v1285 = vrot.slane %v1277, 2
      %v1286 = vsel %vm1126, %v1283, %v1285
      %v1287 = vrot.slane %v1278, 2
      %v1288 = vsel %vm1126, %v1285, %v1287
      %v1289 = vrot.slane %v1279, 2
      %v1290 = vsel %vm1126, %v1287, %v1289
      %v1292 = vsel %vm508, %v1282, 0
      %v1295 = vsel %vm508, %v1284, 0
      %v1298 = vsel %vm508, %v1286, 0
      %v1301 = vsel %vm508, %v1288, 0
      %v1304 = vsel %vm508, %v1290, 0
      %v1307 = vsel %vm524, %v1251, 0
      %1309 = vmatprep.subr.bf16.mxu0 0
      %1310 = vmatpush1.bf16.msra.mxu0 %v1307
      %1311 = vmatprep.subr.bf16.mxu0 0
      %1312 = vmatpush1.bf16.msra.mxu0 0
      %1313 = vmatprep.subr.bf16.mxu0 0
      %1314 = vmatpush1.bf16.msra.mxu0 0
      %1315 = vmatprep.subr.bf16.mxu0 0
      %1316 = vmatpush1.bf16.msra.mxu0 0
      %1317 = vmatprep.subr.bf16.mxu0 0
      %1318 = vmatpush1.bf16.msra.mxu0 0
      %1319 = vmatprep.subr.bf16.mxu0 0
      %1320 = vmatpush1.bf16.msra.mxu0 0
      %1321 = vmatprep.subr.bf16.mxu0 0
      %1322 = vmatpush1.bf16.msra.mxu0 0
      %1323 = vmatprep.subr.bf16.mxu0 0
      %1324 = vmatpush1.bf16.msra.mxu0 0
      %1325 = vmatprep.subr.bf16.mxu0 0
      %1326 = vmatpush1.bf16.msra.mxu0 0
      %1327 = vmatprep.subr.bf16.mxu0 0
      %1328 = vmatpush1.bf16.msra.mxu0 0
      %1329 = vmatprep.subr.bf16.mxu0 0
      %1330 = vmatpush1.bf16.msra.mxu0 0
      %1331 = vmatprep.subr.bf16.mxu0 0
      %1332 = vmatpush1.bf16.msra.mxu0 0
      %1333 = vmatprep.subr.bf16.mxu0 0
      %1334 = vmatpush1.bf16.msra.mxu0 0
      %1335 = vmatprep.subr.bf16.mxu0 0
      %1336 = vmatpush1.bf16.msra.mxu0 0
      %1337 = vmatprep.subr.bf16.mxu0 0
      %1338 = vmatpush1.bf16.msra.mxu0 0
      %1339 = vmatprep.subr.bf16.mxu0 0
      %1340 = vmatpush1.bf16.msra.mxu0 0
      %1341 = vmatprep.mubr.bf16.mxu0 0
      %1342 = vmatmul.mubr.bf16.gmra.mrb[0].mxu0 %v1292
      %v1343 = vpop.f32.mrb[0].mxu0
      %v1344 = vadd.f32 0.0, %v1343
      %v1345 = vpop.f32.mrb[0].mxu0
      %v1346 = vpop.f32.mrb[0].mxu0
      %v1347 = vadd.f32 0.0, %v1346
      %v1348 = vpop.f32.mrb[0].mxu0
      %1349 = vmatprep.mubr.bf16.mxu0 0
      %1350 = vmatmul.mubr.bf16.gmra.mrb[0].mxu0 %v1295
      %v1351 = vpop.f32.mrb[0].mxu0
      %v1352 = vadd.f32 0.0, %v1351
      %v1353 = vpop.f32.mrb[0].mxu0
      %v1354 = vpop.f32.mrb[0].mxu0
      %v1355 = vadd.f32 0.0, %v1354
      %v1356 = vpop.f32.mrb[0].mxu0
      %1357 = vmatprep.mubr.bf16.mxu0 0
      %1358 = vmatmul.mubr.bf16.gmra.mrb[0].mxu0 %v1298
      %v1359 = vpop.f32.mrb[0].mxu0
      %v1360 = vadd.f32 0.0, %v1359
      %v1361 = vpop.f32.mrb[0].mxu0
      %v1362 = vpop.f32.mrb[0].mxu0
      %v1363 = vadd.f32 0.0, %v1362
      %v1364 = vpop.f32.mrb[0].mxu0
      %1365 = vmatprep.mubr.bf16.mxu0 0
      %1366 = vmatmul.mubr.bf16.gmra.mrb[0].mxu0 %v1301
      %v1367 = vpop.f32.mrb[0].mxu0
      %v1368 = vadd.f32 0.0, %v1367
      %v1369 = vpop.f32.mrb[0].mxu0
      %v1370 = vpop.f32.mrb[0].mxu0
      %v1371 = vadd.f32 0.0, %v1370
      %v1372 = vpop.f32.mrb[0].mxu0
      %1373 = vmatprep.mubr.bf16.mxu0 0
      %1374 = vmatmul.mubr.bf16.gmra.mrb[0].mxu0 %v1304
      %v1375 = vpop.f32.mrb[0].mxu0
      %v1376 = vadd.f32 0.0, %v1375
      %v1377 = vpop.f32.mrb[0].mxu0
      %v1378 = vpop.f32.mrb[0].mxu0
      %v1379 = vadd.f32 0.0, %v1378
      %v1380 = vpop.f32.mrb[0].mxu0
      %1381 = vdwg.mxu0
      %v1382 = vadd.f32 %v1229, %v1344
      %v1383 = vadd.f32 %v1230, %v1347
      %v1384 = vadd.f32 %v1231, %v1352
      %v1385 = vadd.f32 %v1232, %v1355
      %v1386 = vadd.f32 %v1233, %v1360
      %v1387 = vadd.f32 %v1234, %v1363
      %v1388 = vadd.f32 %v1235, %v1368
      %v1389 = vadd.f32 %v1236, %v1371
      %v1390 = vadd.f32 %v1237, %v1376
      %v1391 = vadd.f32 %v1238, %v1379
      %v1392 = vld [vmem:[%s386 + $0x30] sm:$0x7]
      %s1393 = scalar_lea.vmem %s3, 64
      %v1394 = vld [vmem:[%s1393] sm:$0xf]
      %v1396 = vunpack.c.l.b16 %v1392
      %v1397 = vpack.c.b16 %v1396, %v1396
      %vm1398 = vsmask.f32 5376
      %v1400 = vshrl.u32 %v1274, 16
      %v1402 = vrot.slane %v1400, 2
      %v1403 = vshll.u32 %v1274, 16
      %v1405 = vrot.slane %v1403, 3
      %v1406 = vor.u32 %v1402, %v1405
      %v1408 = vshrl.u32 %v1275, 16
      %v1410 = vrot.slane %v1408, 2
      %v1411 = vshll.u32 %v1275, 16
      %v1413 = vrot.slane %v1411, 3
      %v1414 = vor.u32 %v1410, %v1413
      %v1415 = vsel %vm1398, %v1406, %v1414
      %v1417 = vshrl.u32 %v1276, 16
      %v1419 = vrot.slane %v1417, 2
      %v1420 = vshll.u32 %v1276, 16
      %v1422 = vrot.slane %v1420, 3
      %v1423 = vor.u32 %v1419, %v1422
      %v1424 = vsel %vm1398, %v1414, %v1423
      %v1426 = vshrl.u32 %v1277, 16
      %v1428 = vrot.slane %v1426, 2
      %v1429 = vshll.u32 %v1277, 16
      %v1431 = vrot.slane %v1429, 3
      %v1432 = vor.u32 %v1428, %v1431
      %v1433 = vsel %vm1398, %v1423, %v1432
      %v1435 = vshrl.u32 %v1278, 16
      %v1437 = vrot.slane %v1435, 2
      %v1438 = vshll.u32 %v1278, 16
      %v1440 = vrot.slane %v1438, 3
      %v1441 = vor.u32 %v1437, %v1440
      %v1442 = vsel %vm1398, %v1432, %v1441
      %v1444 = vshrl.u32 %v1397, 16
      %v1446 = vrot.slane %v1444, 2
      %v1447 = vshll.u32 %v1397, 16
      %v1449 = vrot.slane %v1447, 3
      %v1450 = vor.u32 %v1446, %v1449
      %v1451 = vsel %vm1398, %v1441, %v1450
      %v1453 = vsel %vm508, %v1415, 0
      %v1456 = vsel %vm508, %v1424, 0
      %v1459 = vsel %vm508, %v1433, 0
      %v1462 = vsel %vm508, %v1442, 0
      %v1465 = vsel %vm508, %v1451, 0
      %v1468 = vsel %vm524, %v1394, 0
      %1470 = vmatprep.subr.bf16.mxu0 0
      %1471 = vmatpush1.bf16.msra.mxu0 %v1468
      %1472 = vmatprep.subr.bf16.mxu0 0
      %1473 = vmatpush1.bf16.msra.mxu0 0
      %1474 = vmatprep.subr.bf16.mxu0 0
      %1475 = vmatpush1.bf16.msra.mxu0 0
      %1476 = vmatprep.subr.bf16.mxu0 0
      %1477 = vmatpush1.bf16.msra.mxu0 0
      %1478 = vmatprep.subr.bf16.mxu0 0
      %1479 = vmatpush1.bf16.msra.mxu0 0
      %1480 = vmatprep.subr.bf16.mxu0 0
      %1481 = vmatpush1.bf16.msra.mxu0 0
      %1482 = vmatprep.subr.bf16.mxu0 0
      %1483 = vmatpush1.bf16.msra.mxu0 0
      %1484 = vmatprep.subr.bf16.mxu0 0
      %1485 = vmatpush1.bf16.msra.mxu0 0
      %1486 = vmatprep.subr.bf16.mxu0 0
      %1487 = vmatpush1.bf16.msra.mxu0 0
      %1488 = vmatprep.subr.bf16.mxu0 0
      %1489 = vmatpush1.bf16.msra.mxu0 0
      %1490 = vmatprep.subr.bf16.mxu0 0
      %1491 = vmatpush1.bf16.msra.mxu0 0
      %1492 = vmatprep.subr.bf16.mxu0 0
      %1493 = vmatpush1.bf16.msra.mxu0 0
      %1494 = vmatprep.subr.bf16.mxu0 0
      %1495 = vmatpush1.bf16.msra.mxu0 0
      %1496 = vmatprep.subr.bf16.mxu0 0
      %1497 = vmatpush1.bf16.msra.mxu0 0
      %1498 = vmatprep.subr.bf16.mxu0 0
      %1499 = vmatpush1.bf16.msra.mxu0 0
      %1500 = vmatprep.subr.bf16.mxu0 0
      %1501 = vmatpush1.bf16.msra.mxu0 0
      %1502 = vmatprep.mubr.bf16.mxu0 0
      %1503 = vmatmul.mubr.bf16.gmra.mrb[0].mxu0 %v1453
      %v1504 = vpop.f32.mrb[0].mxu0
      %v1505 = vadd.f32 0.0, %v1504
      %v1506 = vpop.f32.mrb[0].mxu0
      %v1507 = vpop.f32.mrb[0].mxu0
      %v1508 = vadd.f32 0.0, %v1507
      %v1509 = vpop.f32.mrb[0].mxu0
      %1510 = vmatprep.mubr.bf16.mxu0 0
      %1511 = vmatmul.mubr.bf16.gmra.mrb[0].mxu0 %v1456
      %v1512 = vpop.f32.mrb[0].mxu0
      %v1513 = vadd.f32 0.0, %v1512
      %v1514 = vpop.f32.mrb[0].mxu0
      %v1515 = vpop.f32.mrb[0].mxu0
      %v1516 = vadd.f32 0.0, %v1515
      %v1517 = vpop.f32.mrb[0].mxu0
      %1518 = vmatprep.mubr.bf16.mxu0 0
      %1519 = vmatmul.mubr.bf16.gmra.mrb[0].mxu0 %v1459
      %v1520 = vpop.f32.mrb[0].mxu0
      %v1521 = vadd.f32 0.0, %v1520
      %v1522 = vpop.f32.mrb[0].mxu0
      %v1523 = vpop.f32.mrb[0].mxu0
      %v1524 = vadd.f32 0.0, %v1523
      %v1525 = vpop.f32.mrb[0].mxu0
      %1526 = vmatprep.mubr.bf16.mxu0 0
      %1527 = vmatmul.mubr.bf16.gmra.mrb[0].mxu0 %v1462
      %v1528 = vpop.f32.mrb[0].mxu0
      %v1529 = vadd.f32 0.0, %v1528
      %v1530 = vpop.f32.mrb[0].mxu0
      %v1531 = vpop.f32.mrb[0].mxu0
      %v1532 = vadd.f32 0.0, %v1531
      %v1533 = vpop.f32.mrb[0].mxu0
      %1534 = vmatprep.mubr.bf16.mxu0 0
      %1535 = vmatmul.mubr.bf16.gmra.mrb[0].mxu0 %v1465
      %v1536 = vpop.f32.mrb[0].mxu0
      %v1537 = vadd.f32 0.0, %v1536
      %v1538 = vpop.f32.mrb[0].mxu0
      %v1539 = vpop.f32.mrb[0].mxu0
      %v1540 = vadd.f32 0.0, %v1539
      %v1541 = vpop.f32.mrb[0].mxu0
      %1542 = vdwg.mxu0
      %v1543 = vadd.f32 %v1382, %v1505
      %v1544 = vadd.f32 %v1383, %v1508
      %v1545 = vadd.f32 %v1384, %v1513
      %v1546 = vadd.f32 %v1385, %v1516
      %v1547 = vadd.f32 %v1386, %v1521
      %v1548 = vadd.f32 %v1387, %v1524
      %v1549 = vadd.f32 %v1388, %v1529
      %v1550 = vadd.f32 %v1389, %v1532
      %v1551 = vadd.f32 %v1390, %v1537
      %v1552 = vadd.f32 %v1391, %v1540
      %v1553 = vld [vmem:[%s386 + $0x8] sm:$0x8]
      %s1554 = scalar_lea.vmem %s3, 68
      %v1555 = vld [vmem:[%s1554] sm:$0xf]
      %v1557 = vunpack.c.l.b16 %v1553
      %v1558 = vpack.c.b16 %v1264, %v1557
      %vm1559 = vcmask 1044480
      %v1560 = vrot.slane %v1558, 3
      %v1561 = vrot.slane %v1275, 3
      %v1562 = vsel %vm1559, %v1560, %v1561
      %v1563 = vrot.slane %v1276, 3
      %v1564 = vsel %vm1559, %v1561, %v1563
      %v1565 = vrot.slane %v1277, 3
      %v1566 = vsel %vm1559, %v1563, %v1565
      %v1567 = vrot.slane %v1278, 3
      %v1568 = vsel %vm1559, %v1565, %v1567
      %v1569 = vrot.slane %v1397, 3
      %v1570 = vsel %vm1559, %v1567, %v1569
      %v1572 = vsel %vm508, %v1562, 0
      %v1575 = vsel %vm508, %v1564, 0
      %v1578 = vsel %vm508, %v1566, 0
      %v1581 = vsel %vm508, %v1568, 0
      %v1584 = vsel %vm508, %v1570, 0
      %v1587 = vsel %vm524, %v1555, 0
      %1589 = vmatprep.subr.bf16.mxu0 0
      %1590 = vmatpush1.bf16.msra.mxu0 %v1587
      %1591 = vmatprep.subr.bf16.mxu0 0
      %1592 = vmatpush1.bf16.msra.mxu0 0
      %1593 = vmatprep.subr.bf16.mxu0 0
      %1594 = vmatpush1.bf16.msra.mxu0 0
      %1595 = vmatprep.subr.bf16.mxu0 0
      %1596 = vmatpush1.bf16.msra.mxu0 0
      %1597 = vmatprep.subr.bf16.mxu0 0
      %1598 = vmatpush1.bf16.msra.mxu0 0
      %1599 = vmatprep.subr.bf16.mxu0 0
      %1600 = vmatpush1.bf16.msra.mxu0 0
      %1601 = vmatprep.subr.bf16.mxu0 0
      %1602 = vmatpush1.bf16.msra.mxu0 0
      %1603 = vmatprep.subr.bf16.mxu0 0
      %1604 = vmatpush1.bf16.msra.mxu0 0
      %1605 = vmatprep.subr.bf16.mxu0 0
      %1606 = vmatpush1.bf16.msra.mxu0 0
      %1607 = vmatprep.subr.bf16.mxu0 0
      %1608 = vmatpush1.bf16.msra.mxu0 0
      %1609 = vmatprep.subr.bf16.mxu0 0
      %1610 = vmatpush1.bf16.msra.mxu0 0
      %1611 = vmatprep.subr.bf16.mxu0 0
      %1612 = vmatpush1.bf16.msra.mxu0 0
      %1613 = vmatprep.subr.bf16.mxu0 0
      %1614 = vmatpush1.bf16.msra.mxu0 0
      %1615 = vmatprep.subr.bf16.mxu0 0
      %1616 = vmatpush1.bf16.msra.mxu0 0
      %1617 = vmatprep.subr.bf16.mxu0 0
      %1618 = vmatpush1.bf16.msra.mxu0 0
      %1619 = vmatprep.subr.bf16.mxu0 0
      %1620 = vmatpush1.bf16.msra.mxu0 0
      %1621 = vmatprep.mubr.bf16.mxu0 0
      %1622 = vmatmul.mubr.bf16.gmra.mrb[0].mxu0 %v1572
      %v1623 = vpop.f32.mrb[0].mxu0
      %v1624 = vadd.f32 0.0, %v1623
      %v1625 = vpop.f32.mrb[0].mxu0
      %v1626 = vpop.f32.mrb[0].mxu0
      %v1627 = vadd.f32 0.0, %v1626
      %v1628 = vpop.f32.mrb[0].mxu0
      %1629 = vmatprep.mubr.bf16.mxu0 0
      %1630 = vmatmul.mubr.bf16.gmra.mrb[0].mxu0 %v1575
      %v1631 = vpop.f32.mrb[0].mxu0
      %v1632 = vadd.f32 0.0, %v1631
      %v1633 = vpop.f32.mrb[0].mxu0
      %v1634 = vpop.f32.mrb[0].mxu0
      %v1635 = vadd.f32 0.0, %v1634
      %v1636 = vpop.f32.mrb[0].mxu0
      %1637 = vmatprep.mubr.bf16.mxu0 0
      %1638 = vmatmul.mubr.bf16.gmra.mrb[0].mxu0 %v1578
      %v1639 = vpop.f32.mrb[0].mxu0
      %v1640 = vadd.f32 0.0, %v1639
      %v1641 = vpop.f32.mrb[0].mxu0
      %v1642 = vpop.f32.mrb[0].mxu0
      %v1643 = vadd.f32 0.0, %v1642
      %v1644 = vpop.f32.mrb[0].mxu0
      %1645 = vmatprep.mubr.bf16.mxu0 0
      %1646 = vmatmul.mubr.bf16.gmra.mrb[0].mxu0 %v1581
      %v1647 = vpop.f32.mrb[0].mxu0
      %v1648 = vadd.f32 0.0, %v1647
      %v1649 = vpop.f32.mrb[0].mxu0
      %v1650 = vpop.f32.mrb[0].mxu0
      %v1651 = vadd.f32 0.0, %v1650
      %v1652 = vpop.f32.mrb[0].mxu0
      %1653 = vmatprep.mubr.bf16.mxu0 0
      %1654 = vmatmul.mubr.bf16.gmra.mrb[0].mxu0 %v1584
      %v1655 = vpop.f32.mrb[0].mxu0
      %v1656 = vadd.f32 0.0, %v1655
      %v1657 = vpop.f32.mrb[0].mxu0
      %v1658 = vpop.f32.mrb[0].mxu0
      %v1659 = vadd.f32 0.0, %v1658
      %v1660 = vpop.f32.mrb[0].mxu0
      %1661 = vdwg.mxu0
      %v1662 = vadd.f32 %v1543, %v1624
      %v1663 = vadd.f32 %v1544, %v1627
      %v1664 = vadd.f32 %v1545, %v1632
      %v1665 = vadd.f32 %v1546, %v1635
      %v1666 = vadd.f32 %v1547, %v1640
      %v1667 = vadd.f32 %v1548, %v1643
      %v1668 = vadd.f32 %v1549, %v1648
      %v1669 = vadd.f32 %v1550, %v1651
      %v1670 = vadd.f32 %v1551, %v1656
      %v1671 = vadd.f32 %v1552, %v1659
      %1672 = vst.msk [vmem:[%s410] sm:$0xff] %vm508, %v1662
      %1673 = vst.msk [vmem:[%s410 + $0x8] sm:$0xff] %vm508, %v1663
      %1674 = vst.msk [vmem:[%s410 + $0x10] sm:$0xff] %vm508, %v1664
      %1675 = vst.msk [vmem:[%s410 + $0x18] sm:$0xff] %vm508, %v1665
      %1676 = vst.msk [vmem:[%s410 + $0x20] sm:$0xff] %vm508, %v1666
      %1677 = vst.msk [vmem:[%s410 + $0x28] sm:$0xff] %vm508, %v1667
      %1678 = vst.msk [vmem:[%s410 + $0x30] sm:$0xff] %vm508, %v1668
      %1679 = vst.msk [vmem:[%s410 + $0x38] sm:$0xff] %vm508, %v1669
      %1680 = vst.msk [vmem:[%s410 + $0x40] sm:$0xff] %vm508, %v1670
      %1681 = vst.msk [vmem:[%s410 + $0x48] sm:$0xff] %vm508, %v1671
      %p1682 = scmp.gt.s32.totalorder %s23, 0
      // Predicated region
      $region37: #{up_block_forward.6} parent=35 // pred_check
        %p1683 = pneg %p1682
      $region38: #{up_block_forward.6} parent=35 // pred_check_branch
        %1685 = sbr.rel (%p1683) target = $region40
      $region39: #{up_block_forward.6} parent=35 // pred_region
        %v1686 = vld [vmem:[%s410] sm:$0xff]
        %v1687 = vld [vmem:[%s410 + $0x8] sm:$0xff]
        %v1688 = vld [vmem:[%s410 + $0x10] sm:$0xff]
        %v1689 = vld [vmem:[%s410 + $0x18] sm:$0xff]
        %v1690 = vld [vmem:[%s410 + $0x20] sm:$0xff]
        %v1691 = vld [vmem:[%s410 + $0x28] sm:$0xff]
        %v1692 = vld [vmem:[%s410 + $0x30] sm:$0xff]
        %v1693 = vld [vmem:[%s410 + $0x38] sm:$0xff]
        %v1694 = vld [vmem:[%s410 + $0x40] sm:$0xff]
        %v1695 = vld [vmem:[%s410 + $0x48] sm:$0xff]
        %v1696 = vld [vmem:[%s374] sm:$0xf]
        %v1697 = vld [vmem:[%s374 + $0x4] sm:$0xf]
        %v1698 = vld [vmem:[%s374 + $0x8] sm:$0xf]
        %v1699 = vld [vmem:[%s374 + $0xc] sm:$0xf]
        %v1700 = vld [vmem:[%s374 + $0x10] sm:$0xf]
        %v1701 = vld [vmem:[%s374 + $0x14] sm:$0xf]
        %v1702 = vld [vmem:[%s374 + $0x18] sm:$0xf]
        %v1703 = vld [vmem:[%s374 + $0x1c] sm:$0xf]
        %v1704 = vld [vmem:[%s374 + $0x20] sm:$0xf]
        %v1705 = vld [vmem:[%s374 + $0x24] sm:$0xf]
        %v1706 = vld [vmem:[%s3] sm:$0xf]
        %v1707 = vld [vmem:[%s374 + $0x28] sm:$0x1]
        %s1708 = scalar_lea.vmem %s3, 4
        %v1709 = vld [vmem:[%s1708] sm:$0xf]
        %v1721 = vunpack.c.l.b16 %v1696
        %v1722 = vunpack.c.l.b16 %v1697
        %v1723 = vunpack.c.l.b16 %v1698
        %v1724 = vunpack.c.l.b16 %v1699
        %v1725 = vunpack.c.l.b16 %v1700
        %v1726 = vunpack.c.l.b16 %v1701
        %v1727 = vunpack.c.l.b16 %v1702
        %v1728 = vunpack.c.l.b16 %v1703
        %v1729 = vunpack.c.l.b16 %v1704
        %v1730 = vunpack.c.l.b16 %v1705
        %v1731 = vunpack.c.l.b16 %v1707
        %v1732 = vpack.c.b16 %v1722, %v1721
        %v1733 = vpack.c.b16 %v1724, %v1723
        %v1734 = vpack.c.b16 %v1726, %v1725
        %v1735 = vpack.c.b16 %v1728, %v1727
        %v1736 = vpack.c.b16 %v1730, %v1729
        %v1737 = vpack.c.b16 %v1731, %v1731
        %v1739 = vshrl.u32 %v1732, 16
        %v1741 = vshll.u32 %v1732, 16
        %v1743 = vrot.slane %v1741, 1
        %v1744 = vor.u32 %v1739, %v1743
        %v1746 = vshll.u32 %v1733, 16
        %v1748 = vrot.slane %v1746, 1
        %v1749 = vsel %vm463, %v1744, %v1748
        %v1750 = vshrl.u32 %v1733, 16
        %v1752 = vor.u32 %v1750, %v1748
        %v1754 = vshll.u32 %v1734, 16
        %v1756 = vrot.slane %v1754, 1
        %v1757 = vsel %vm463, %v1752, %v1756
        %v1758 = vshrl.u32 %v1734, 16
        %v1760 = vor.u32 %v1758, %v1756
        %v1762 = vshll.u32 %v1735, 16
        %v1764 = vrot.slane %v1762, 1
        %v1765 = vsel %vm463, %v1760, %v1764
        %v1766 = vshrl.u32 %v1735, 16
        %v1768 = vor.u32 %v1766, %v1764
        %v1770 = vshll.u32 %v1736, 16
        %v1772 = vrot.slane %v1770, 1
        %v1773 = vsel %vm463, %v1768, %v1772
        %v1774 = vshrl.u32 %v1736, 16
        %v1776 = vor.u32 %v1774, %v1772
        %v1778 = vshll.u32 %v1737, 16
        %v1780 = vrot.slane %v1778, 1
        %v1781 = vsel %vm463, %v1776, %v1780
        %v1783 = vsel %vm508, %v1749, 0
        %v1786 = vsel %vm508, %v1757, 0
        %v1789 = vsel %vm508, %v1765, 0
        %v1792 = vsel %vm508, %v1773, 0
        %v1795 = vsel %vm508, %v1781, 0
        %v1798 = vsel %vm524, %v1709, 0
        %1800 = vmatprep.subr.bf16.mxu0 0
        %1801 = vmatpush1.bf16.msra.mxu0 %v1798
        %1802 = vmatprep.subr.bf16.mxu0 0
        %1803 = vmatpush1.bf16.msra.mxu0 0
        %1804 = vmatprep.subr.bf16.mxu0 0
        %1805 = vmatpush1.bf16.msra.mxu0 0
        %1806 = vmatprep.subr.bf16.mxu0 0
        %1807 = vmatpush1.bf16.msra.mxu0 0
        %1808 = vmatprep.subr.bf16.mxu0 0
        %1809 = vmatpush1.bf16.msra.mxu0 0
        %1810 = vmatprep.subr.bf16.mxu0 0
        %1811 = vmatpush1.bf16.msra.mxu0 0
        %1812 = vmatprep.subr.bf16.mxu0 0
        %1813 = vmatpush1.bf16.msra.mxu0 0
        %1814 = vmatprep.subr.bf16.mxu0 0
        %1815 = vmatpush1.bf16.msra.mxu0 0
        %1816 = vmatprep.subr.bf16.mxu0 0
        %1817 = vmatpush1.bf16.msra.mxu0 0
        %1818 = vmatprep.subr.bf16.mxu0 0
        %1819 = vmatpush1.bf16.msra.mxu0 0
        %1820 = vmatprep.subr.bf16.mxu0 0
        %1821 = vmatpush1.bf16.msra.mxu0 0
        %1822 = vmatprep.subr.bf16.mxu0 0
        %1823 = vmatpush1.bf16.msra.mxu0 0
        %1824 = vmatprep.subr.bf16.mxu0 0
        %1825 = vmatpush1.bf16.msra.mxu0 0
        %1826 = vmatprep.subr.bf16.mxu0 0
        %1827 = vmatpush1.bf16.msra.mxu0 0
        %1828 = vmatprep.subr.bf16.mxu0 0
        %1829 = vmatpush1.bf16.msra.mxu0 0
        %1830 = vmatprep.subr.bf16.mxu0 0
        %1831 = vmatpush1.bf16.msra.mxu0 0
        %1832 = vmatprep.mubr.bf16.mxu0 0
        %1833 = vmatmul.mubr.bf16.gmra.mrb[0].mxu0 %v1783
        %v1834 = vpop.f32.mrb[0].mxu0
        %v1835 = vadd.f32 0.0, %v1834
        %v1836 = vpop.f32.mrb[0].mxu0
        %v1837 = vpop.f32.mrb[0].mxu0
        %v1838 = vadd.f32 0.0, %v1837
        %v1839 = vpop.f32.mrb[0].mxu0
        %1840 = vmatprep.mubr.bf16.mxu0 0
        %1841 = vmatmul.mubr.bf16.gmra.mrb[0].mxu0 %v1786
        %v1842 = vpop.f32.mrb[0].mxu0
        %v1843 = vadd.f32 0.0, %v1842
        %v1844 = vpop.f32.mrb[0].mxu0
        %v1845 = vpop.f32.mrb[0].mxu0
        %v1846 = vadd.f32 0.0, %v1845
        %v1847 = vpop.f32.mrb[0].mxu0
        %1848 = vmatprep.mubr.bf16.mxu0 0
        %1849 = vmatmul.mubr.bf16.gmra.mrb[0].mxu0 %v1789
        %v1850 = vpop.f32.mrb[0].mxu0
        %v1851 = vadd.f32 0.0, %v1850
        %v1852 = vpop.f32.mrb[0].mxu0
        %v1853 = vpop.f32.mrb[0].mxu0
        %v1854 = vadd.f32 0.0, %v1853
        %v1855 = vpop.f32.mrb[0].mxu0
        %1856 = vmatprep.mubr.bf16.mxu0 0
        %1857 = vmatmul.mubr.bf16.gmra.mrb[0].mxu0 %v1792
        %v1858 = vpop.f32.mrb[0].mxu0
        %v1859 = vadd.f32 0.0, %v1858
        %v1860 = vpop.f32.mrb[0].mxu0
        %v1861 = vpop.f32.mrb[0].mxu0
        %v1862 = vadd.f32 0.0, %v1861
        %v1863 = vpop.f32.mrb[0].mxu0
        %1864 = vmatprep.mubr.bf16.mxu0 0
        %1865 = vmatmul.mubr.bf16.gmra.mrb[0].mxu0 %v1795
        %v1866 = vpop.f32.mrb[0].mxu0
        %v1867 = vadd.f32 0.0, %v1866
        %v1868 = vpop.f32.mrb[0].mxu0
        %v1869 = vpop.f32.mrb[0].mxu0
        %v1870 = vadd.f32 0.0, %v1869
        %v1871 = vpop.f32.mrb[0].mxu0
        %1872 = vdwg.mxu0
        %v1873 = vsel %vm508, %v1732, 0
        %v1875 = vsel %vm508, %v1733, 0
        %v1877 = vsel %vm508, %v1734, 0
        %v1879 = vsel %vm508, %v1735, 0
        %v1881 = vsel %vm508, %v1736, 0
        %v1884 = vsel %vm524, %v1706, 0
        %1886 = vmatprep.subr.bf16.mxu0 0
        %1887 = vmatpush1.bf16.msra.mxu0 %v1884
        %1888 = vmatprep.subr.bf16.mxu0 0
        %1889 = vmatpush1.bf16.msra.mxu0 0
        %1890 = vmatprep.subr.bf16.mxu0 0
        %1891 = vmatpush1.bf16.msra.mxu0 0
        %1892 = vmatprep.subr.bf16.mxu0 0
        %1893 = vmatpush1.bf16.msra.mxu0 0
        %1894 = vmatprep.subr.bf16.mxu0 0
        %1895 = vmatpush1.bf16.msra.mxu0 0
        %1896 = vmatprep.subr.bf16.mxu0 0
        %1897 = vmatpush1.bf16.msra.mxu0 0
        %1898 = vmatprep.subr.bf16.mxu0 0
        %1899 = vmatpush1.bf16.msra.mxu0 0
        %1900 = vmatprep.subr.bf16.mxu0 0
        %1901 = vmatpush1.bf16.msra.mxu0 0
        %1902 = vmatprep.subr.bf16.mxu0 0
        %1903 = vmatpush1.bf16.msra.mxu0 0
        %1904 = vmatprep.subr.bf16.mxu0 0
        %1905 = vmatpush1.bf16.msra.mxu0 0
        %1906 = vmatprep.subr.bf16.mxu0 0
        %1907 = vmatpush1.bf16.msra.mxu0 0
        %1908 = vmatprep.subr.bf16.mxu0 0
        %1909 = vmatpush1.bf16.msra.mxu0 0
        %1910 = vmatprep.subr.bf16.mxu0 0
        %1911 = vmatpush1.bf16.msra.mxu0 0
        %1912 = vmatprep.subr.bf16.mxu0 0
        %1913 = vmatpush1.bf16.msra.mxu0 0
        %1914 = vmatprep.subr.bf16.mxu0 0
        %1915 = vmatpush1.bf16.msra.mxu0 0
        %1916 = vmatprep.subr.bf16.mxu0 0
        %1917 = vmatpush1.bf16.msra.mxu0 0
        %1918 = vmatprep.mubr.bf16.mxu0 0
        %1919 = vmatmul.mubr.bf16.gmra.mrb[0].mxu0 %v1873
        %v1920 = vpop.f32.mrb[0].mxu0
        %v1921 = vadd.f32 %v1835, %v1920
        %v1922 = vpop.f32.mrb[0].mxu0
        %v1923 = vpop.f32.mrb[0].mxu0
        %v1924 = vadd.f32 %v1838, %v1923
        %v1925 = vpop.f32.mrb[0].mxu0
        %1926 = vmatprep.mubr.bf16.mxu0 0
        %1927 = vmatmul.mubr.bf16.gmra.mrb[0].mxu0 %v1875
        %v1928 = vpop.f32.mrb[0].mxu0
        %v1929 = vadd.f32 %v1843, %v1928
        %v1930 = vpop.f32.mrb[0].mxu0
        %v1931 = vpop.f32.mrb[0].mxu0
        %v1932 = vadd.f32 %v1846, %v1931
        %v1933 = vpop.f32.mrb[0].mxu0
        %1934 = vmatprep.mubr.bf16.mxu0 0
        %1935 = vmatmul.mubr.bf16.gmra.mrb[0].mxu0 %v1877
        %v1936 = vpop.f32.mrb[0].mxu0
        %v1937 = vadd.f32 %v1851, %v1936
        %v1938 = vpop.f32.mrb[0].mxu0
        %v1939 = vpop.f32.mrb[0].mxu0
        %v1940 = vadd.f32 %v1854, %v1939
        %v1941 = vpop.f32.mrb[0].mxu0
        %1942 = vmatprep.mubr.bf16.mxu0 0
        %1943 = vmatmul.mubr.bf16.gmra.mrb[0].mxu0 %v1879
        %v1944 = vpop.f32.mrb[0].mxu0
        %v1945 = vadd.f32 %v1859, %v1944
        %v1946 = vpop.f32.mrb[0].mxu0
        %v1947 = vpop.f32.mrb[0].mxu0
        %v1948 = vadd.f32 %v1862, %v1947
        %v1949 = vpop.f32.mrb[0].mxu0
        %1950 = vmatprep.mubr.bf16.mxu0 0
        %1951 = vmatmul.mubr.bf16.gmra.mrb[0].mxu0 %v1881
        %v1952 = vpop.f32.mrb[0].mxu0
        %v1953 = vadd.f32 %v1867, %v1952
        %v1954 = vpop.f32.mrb[0].mxu0
        %v1955 = vpop.f32.mrb[0].mxu0
        %v1956 = vadd.f32 %v1870, %v1955
        %v1957 = vpop.f32.mrb[0].mxu0
        %1958 = vdwg.mxu0
        %v1959 = vld [vmem:[%s374] sm:$0xe]
        %s1960 = scalar_lea.vmem %s3, 8
        %v1961 = vld [vmem:[%s1960] sm:$0xf]
        %v1963 = vunpack.c.l.b16 %v1959
        %v1964 = vpack.c.b16 %v1722, %v1963
        %v1965 = vrot.slane %v1964, 1
        %v1966 = vrot.slane %v1733, 1
        %v1967 = vsel %vm693, %v1965, %v1966
        %v1968 = vrot.slane %v1734, 1
        %v1969 = vsel %vm693, %v1966, %v1968
        %v1970 = vrot.slane %v1735, 1
        %v1971 = vsel %vm693, %v1968, %v1970
        %v1972 = vrot.slane %v1736, 1
        %v1973 = vsel %vm693, %v1970, %v1972
        %v1974 = vrot.slane %v1737, 1
        %v1975 = vsel %vm693, %v1972, %v1974
        %v1977 = vsel %vm508, %v1967, 0
        %v1980 = vsel %vm508, %v1969, 0
        %v1983 = vsel %vm508, %v1971, 0
        %v1986 = vsel %vm508, %v1973, 0
        %v1989 = vsel %vm508, %v1975, 0
        %v1992 = vsel %vm524, %v1961, 0
        %1994 = vmatprep.subr.bf16.mxu0 0
        %1995 = vmatpush1.bf16.msra.mxu0 %v1992
        %1996 = vmatprep.subr.bf16.mxu0 0
        %1997 = vmatpush1.bf16.msra.mxu0 0
        %1998 = vmatprep.subr.bf16.mxu0 0
        %1999 = vmatpush1.bf16.msra.mxu0 0
        %2000 = vmatprep.subr.bf16.mxu0 0
        %2001 = vmatpush1.bf16.msra.mxu0 0
        %2002 = vmatprep.subr.bf16.mxu0 0
        %2003 = vmatpush1.bf16.msra.mxu0 0
        %2004 = vmatprep.subr.bf16.mxu0 0
        %2005 = vmatpush1.bf16.msra.mxu0 0
        %2006 = vmatprep.subr.bf16.mxu0 0
        %2007 = vmatpush1.bf16.msra.mxu0 0
        %2008 = vmatprep.subr.bf16.mxu0 0
        %2009 = vmatpush1.bf16.msra.mxu0 0
        %2010 = vmatprep.subr.bf16.mxu0 0
        %2011 = vmatpush1.bf16.msra.mxu0 0
        %2012 = vmatprep.subr.bf16.mxu0 0
        %2013 = vmatpush1.bf16.msra.mxu0 0
        %2014 = vmatprep.subr.bf16.mxu0 0
        %2015 = vmatpush1.bf16.msra.mxu0 0
        %2016 = vmatprep.subr.bf16.mxu0 0
        %2017 = vmatpush1.bf16.msra.mxu0 0
        %2018 = vmatprep.subr.bf16.mxu0 0
        %2019 = vmatpush1.bf16.msra.mxu0 0
        %2020 = vmatprep.subr.bf16.mxu0 0
        %2021 = vmatpush1.bf16.msra.mxu0 0
        %2022 = vmatprep.subr.bf16.mxu0 0
        %2023 = vmatpush1.bf16.msra.mxu0 0
        %2024 = vmatprep.subr.bf16.mxu0 0
        %2025 = vmatpush1.bf16.msra.mxu0 0
        %2026 = vmatprep.mubr.bf16.mxu0 0
        %2027 = vmatmul.mubr.bf16.gmra.mrb[0].mxu0 %v1977
        %v2028 = vpop.f32.mrb[0].mxu0
        %v2029 = vadd.f32 0.0, %v2028
        %v2030 = vpop.f32.mrb[0].mxu0
        %v2031 = vpop.f32.mrb[0].mxu0
        %v2032 = vadd.f32 0.0, %v2031
        %v2033 = vpop.f32.mrb[0].mxu0
        %2034 = vmatprep.mubr.bf16.mxu0 0
        %2035 = vmatmul.mubr.bf16.gmra.mrb[0].mxu0 %v1980
        %v2036 = vpop.f32.mrb[0].mxu0
        %v2037 = vadd.f32 0.0, %v2036
        %v2038 = vpop.f32.mrb[0].mxu0
        %v2039 = vpop.f32.mrb[0].mxu0
        %v2040 = vadd.f32 0.0, %v2039
        %v2041 = vpop.f32.mrb[0].mxu0
        %2042 = vmatprep.mubr.bf16.mxu0 0
        %2043 = vmatmul.mubr.bf16.gmra.mrb[0].mxu0 %v1983
        %v2044 = vpop.f32.mrb[0].mxu0
        %v2045 = vadd.f32 0.0, %v2044
        %v2046 = vpop.f32.mrb[0].mxu0
        %v2047 = vpop.f32.mrb[0].mxu0
        %v2048 = vadd.f32 0.0, %v2047
        %v2049 = vpop.f32.mrb[0].mxu0
        %2050 = vmatprep.mubr.bf16.mxu0 0
        %2051 = vmatmul.mubr.bf16.gmra.mrb[0].mxu0 %v1986
        %v2052 = vpop.f32.mrb[0].mxu0
        %v2053 = vadd.f32 0.0, %v2052
        %v2054 = vpop.f32.mrb[0].mxu0
        %v2055 = vpop.f32.mrb[0].mxu0
        %v2056 = vadd.f32 0.0, %v2055
        %v2057 = vpop.f32.mrb[0].mxu0
        %2058 = vmatprep.mubr.bf16.mxu0 0
        %2059 = vmatmul.mubr.bf16.gmra.mrb[0].mxu0 %v1989
        %v2060 = vpop.f32.mrb[0].mxu0
        %v2061 = vadd.f32 0.0, %v2060
        %v2062 = vpop.f32.mrb[0].mxu0
        %v2063 = vpop.f32.mrb[0].mxu0
        %v2064 = vadd.f32 0.0, %v2063
        %v2065 = vpop.f32.mrb[0].mxu0
        %2066 = vdwg.mxu0
        %v2067 = vadd.f32 %v1921, %v2029
        %v2068 = vadd.f32 %v1924, %v2032
        %v2069 = vadd.f32 %v1929, %v2037
        %v2070 = vadd.f32 %v1932, %v2040
        %v2071 = vadd.f32 %v1937, %v2045
        %v2072 = vadd.f32 %v1940, %v2048
        %v2073 = vadd.f32 %v1945, %v2053
        %v2074 = vadd.f32 %v1948, %v2056
        %v2075 = vadd.f32 %v1953, %v2061
        %v2076 = vadd.f32 %v1956, %v2064
        %v2077 = vld [vmem:[%s374 + $0x4] sm:$0xe]
        %v2078 = vld [vmem:[%s374 + $0x8] sm:$0xf]
        %v2079 = vld [vmem:[%s374 + $0xc] sm:$0xf]
        %v2080 = vld [vmem:[%s374 + $0x10] sm:$0xf]
        %v2081 = vld [vmem:[%s374 + $0x14] sm:$0xf]
        %v2082 = vld [vmem:[%s374 + $0x18] sm:$0xf]
        %v2083 = vld [vmem:[%s374 + $0x1c] sm:$0xf]
        %v2084 = vld [vmem:[%s374 + $0x20] sm:$0xf]
        %v2085 = vld [vmem:[%s374 + $0x24] sm:$0xf]
        %v2086 = vld [vmem:[%s374 + $0x28] sm:$0xf]
        %v2087 = vld [vmem:[%s374 + $0x2c] sm:$0x1]
        %s2088 = scalar_lea.vmem %s3, 12
        %v2089 = vld [vmem:[%s2088] sm:$0xf]
        %v2101 = vunpack.c.l.b16 %v2077
        %v2102 = vunpack.c.l.b16 %v2078
        %v2103 = vunpack.c.l.b16 %v2079
        %v2104 = vunpack.c.l.b16 %v2080
        %v2105 = vunpack.c.l.b16 %v2081
        %v2106 = vunpack.c.l.b16 %v2082
        %v2107 = vunpack.c.l.b16 %v2083
        %v2108 = vunpack.c.l.b16 %v2084
        %v2109 = vunpack.c.l.b16 %v2085
        %v2110 = vunpack.c.l.b16 %v2086
        %v2111 = vunpack.c.l.b16 %v2087
        %v2112 = vpack.c.b16 %v2102, %v2101
        %v2113 = vpack.c.b16 %v2104, %v2103
        %v2114 = vpack.c.b16 %v2106, %v2105
        %v2115 = vpack.c.b16 %v2108, %v2107
        %v2116 = vpack.c.b16 %v2110, %v2109
        %v2117 = vpack.c.b16 %v2111, %v2111
        %v2118 = vrot.slane %v2112, 1
        %v2119 = vrot.slane %v2113, 1
        %v2120 = vsel %vm693, %v2118, %v2119
        %v2121 = vrot.slane %v2114, 1
        %v2122 = vsel %vm693, %v2119, %v2121
        %v2123 = vrot.slane %v2115, 1
        %v2124 = vsel %vm693, %v2121, %v2123
        %v2125 = vrot.slane %v2116, 1
        %v2126 = vsel %vm693, %v2123, %v2125
        %v2127 = vrot.slane %v2117, 1
        %v2128 = vsel %vm693, %v2125, %v2127
        %v2130 = vsel %vm508, %v2120, 0
        %v2133 = vsel %vm508, %v2122, 0
        %v2136 = vsel %vm508, %v2124, 0
        %v2139 = vsel %vm508, %v2126, 0
        %v2142 = vsel %vm508, %v2128, 0
        %v2145 = vsel %vm524, %v2089, 0
        %2147 = vmatprep.subr.bf16.mxu0 0
        %2148 = vmatpush1.bf16.msra.mxu0 %v2145
        %2149 = vmatprep.subr.bf16.mxu0 0
        %2150 = vmatpush1.bf16.msra.mxu0 0
        %2151 = vmatprep.subr.bf16.mxu0 0
        %2152 = vmatpush1.bf16.msra.mxu0 0
        %2153 = vmatprep.subr.bf16.mxu0 0
        %2154 = vmatpush1.bf16.msra.mxu0 0
        %2155 = vmatprep.subr.bf16.mxu0 0
        %2156 = vmatpush1.bf16.msra.mxu0 0
        %2157 = vmatprep.subr.bf16.mxu0 0
        %2158 = vmatpush1.bf16.msra.mxu0 0
        %2159 = vmatprep.subr.bf16.mxu0 0
        %2160 = vmatpush1.bf16.msra.mxu0 0
        %2161 = vmatprep.subr.bf16.mxu0 0
        %2162 = vmatpush1.bf16.msra.mxu0 0
        %2163 = vmatprep.subr.bf16.mxu0 0
        %2164 = vmatpush1.bf16.msra.mxu0 0
        %2165 = vmatprep.subr.bf16.mxu0 0
        %2166 = vmatpush1.bf16.msra.mxu0 0
        %2167 = vmatprep.subr.bf16.mxu0 0
        %2168 = vmatpush1.bf16.msra.mxu0 0
        %2169 = vmatprep.subr.bf16.mxu0 0
        %2170 = vmatpush1.bf16.msra.mxu0 0
        %2171 = vmatprep.subr.bf16.mxu0 0
        %2172 = vmatpush1.bf16.msra.mxu0 0
        %2173 = vmatprep.subr.bf16.mxu0 0
        %2174 = vmatpush1.bf16.msra.mxu0 0
        %2175 = vmatprep.subr.bf16.mxu0 0
        %2176 = vmatpush1.bf16.msra.mxu0 0
        %2177 = vmatprep.subr.bf16.mxu0 0
        %2178 = vmatpush1.bf16.msra.mxu0 0
        %2179 = vmatprep.mubr.bf16.mxu0 0
        %2180 = vmatmul.mubr.bf16.gmra.mrb[0].mxu0 %v2130
        %v2181 = vpop.f32.mrb[0].mxu0
        %v2182 = vadd.f32 0.0, %v2181
        %v2183 = vpop.f32.mrb[0].mxu0
        %v2184 = vpop.f32.mrb[0].mxu0
        %v2185 = vadd.f32 0.0, %v2184
        %v2186 = vpop.f32.mrb[0].mxu0
        %2187 = vmatprep.mubr.bf16.mxu0 0
        %2188 = vmatmul.mubr.bf16.gmra.mrb[0].mxu0 %v2133
        %v2189 = vpop.f32.mrb[0].mxu0
        %v2190 = vadd.f32 0.0, %v2189
        %v2191 = vpop.f32.mrb[0].mxu0
        %v2192 = vpop.f32.mrb[0].mxu0
        %v2193 = vadd.f32 0.0, %v2192
        %v2194 = vpop.f32.mrb[0].mxu0
        %2195 = vmatprep.mubr.bf16.mxu0 0
        %2196 = vmatmul.mubr.bf16.gmra.mrb[0].mxu0 %v2136
        %v2197 = vpop.f32.mrb[0].mxu0
        %v2198 = vadd.f32 0.0, %v2197
        %v2199 = vpop.f32.mrb[0].mxu0
        %v2200 = vpop.f32.mrb[0].mxu0
        %v2201 = vadd.f32 0.0, %v2200
        %v2202 = vpop.f32.mrb[0].mxu0
        %2203 = vmatprep.mubr.bf16.mxu0 0
        %2204 = vmatmul.mubr.bf16.gmra.mrb[0].mxu0 %v2139
        %v2205 = vpop.f32.mrb[0].mxu0
        %v2206 = vadd.f32 0.0, %v2205
        %v2207 = vpop.f32.mrb[0].mxu0
        %v2208 = vpop.f32.mrb[0].mxu0
        %v2209 = vadd.f32 0.0, %v2208
        %v2210 = vpop.f32.mrb[0].mxu0
        %2211 = vmatprep.mubr.bf16.mxu0 0
        %2212 = vmatmul.mubr.bf16.gmra.mrb[0].mxu0 %v2142
        %v2213 = vpop.f32.mrb[0].mxu0
        %v2214 = vadd.f32 0.0, %v2213
        %v2215 = vpop.f32.mrb[0].mxu0
        %v2216 = vpop.f32.mrb[0].mxu0
        %v2217 = vadd.f32 0.0, %v2216
        %v2218 = vpop.f32.mrb[0].mxu0
        %2219 = vdwg.mxu0
        %v2220 = vadd.f32 %v2067, %v2182
        %v2221 = vadd.f32 %v2068, %v2185
        %v2222 = vadd.f32 %v2069, %v2190
        %v2223 = vadd.f32 %v2070, %v2193
        %v2224 = vadd.f32 %v2071, %v2198
        %v2225 = vadd.f32 %v2072, %v2201
        %v2226 = vadd.f32 %v2073, %v2206
        %v2227 = vadd.f32 %v2074, %v2209
        %v2228 = vadd.f32 %v2075, %v2214
        %v2229 = vadd.f32 %v2076, %v2217
        %v2230 = vld [vmem:[%s374 + $0x2c] sm:$0x3]
        %s2231 = scalar_lea.vmem %s3, 16
        %v2232 = vld [vmem:[%s2231] sm:$0xf]
        %v2234 = vunpack.c.l.b16 %v2230
        %v2235 = vpack.c.b16 %v2234, %v2234
        %v2237 = vshrl.u32 %v2112, 16
        %v2239 = vrot.slane %v2237, 1
        %v2240 = vshll.u32 %v2112, 16
        %v2242 = vrot.slane %v2240, 2
        %v2243 = vor.u32 %v2239, %v2242
        %v2245 = vshrl.u32 %v2113, 16
        %v2247 = vrot.slane %v2245, 1
        %v2248 = vshll.u32 %v2113, 16
        %v2250 = vrot.slane %v2248, 2
        %v2251 = vor.u32 %v2247, %v2250
        %v2252 = vsel %vm965, %v2243, %v2251
        %v2254 = vshrl.u32 %v2114, 16
        %v2256 = vrot.slane %v2254, 1
        %v2257 = vshll.u32 %v2114, 16
        %v2259 = vrot.slane %v2257, 2
        %v2260 = vor.u32 %v2256, %v2259
        %v2261 = vsel %vm965, %v2251, %v2260
        %v2263 = vshrl.u32 %v2115, 16
        %v2265 = vrot.slane %v2263, 1
        %v2266 = vshll.u32 %v2115, 16
        %v2268 = vrot.slane %v2266, 2
        %v2269 = vor.u32 %v2265, %v2268
        %v2270 = vsel %vm965, %v2260, %v2269
        %v2272 = vshrl.u32 %v2116, 16
        %v2274 = vrot.slane %v2272, 1
        %v2275 = vshll.u32 %v2116, 16
        %v2277 = vrot.slane %v2275, 2
        %v2278 = vor.u32 %v2274, %v2277
        %v2279 = vsel %vm965, %v2269, %v2278
        %v2281 = vshrl.u32 %v2235, 16
        %v2283 = vrot.slane %v2281, 1
        %v2284 = vshll.u32 %v2235, 16
        %v2286 = vrot.slane %v2284, 2
        %v2287 = vor.u32 %v2283, %v2286
        %v2288 = vsel %vm965, %v2278, %v2287
        %v2290 = vsel %vm508, %v2252, 0
        %v2293 = vsel %vm508, %v2261, 0
        %v2296 = vsel %vm508, %v2270, 0
        %v2299 = vsel %vm508, %v2279, 0
        %v2302 = vsel %vm508, %v2288, 0
        %v2305 = vsel %vm524, %v2232, 0
        %2307 = vmatprep.subr.bf16.mxu0 0
        %2308 = vmatpush1.bf16.msra.mxu0 %v2305
        %2309 = vmatprep.subr.bf16.mxu0 0
        %2310 = vmatpush1.bf16.msra.mxu0 0
        %2311 = vmatprep.subr.bf16.mxu0 0
        %2312 = vmatpush1.bf16.msra.mxu0 0
        %2313 = vmatprep.subr.bf16.mxu0 0
        %2314 = vmatpush1.bf16.msra.mxu0 0
        %2315 = vmatprep.subr.bf16.mxu0 0
        %2316 = vmatpush1.bf16.msra.mxu0 0
        %2317 = vmatprep.subr.bf16.mxu0 0
        %2318 = vmatpush1.bf16.msra.mxu0 0
        %2319 = vmatprep.subr.bf16.mxu0 0
        %2320 = vmatpush1.bf16.msra.mxu0 0
        %2321 = vmatprep.subr.bf16.mxu0 0
        %2322 = vmatpush1.bf16.msra.mxu0 0
        %2323 = vmatprep.subr.bf16.mxu0 0
        %2324 = vmatpush1.bf16.msra.mxu0 0
        %2325 = vmatprep.subr.bf16.mxu0 0
        %2326 = vmatpush1.bf16.msra.mxu0 0
        %2327 = vmatprep.subr.bf16.mxu0 0
        %2328 = vmatpush1.bf16.msra.mxu0 0
        %2329 = vmatprep.subr.bf16.mxu0 0
        %2330 = vmatpush1.bf16.msra.mxu0 0
        %2331 = vmatprep.subr.bf16.mxu0 0
        %2332 = vmatpush1.bf16.msra.mxu0 0
        %2333 = vmatprep.subr.bf16.mxu0 0
        %2334 = vmatpush1.bf16.msra.mxu0 0
        %2335 = vmatprep.subr.bf16.mxu0 0
        %2336 = vmatpush1.bf16.msra.mxu0 0
        %2337 = vmatprep.subr.bf16.mxu0 0
        %2338 = vmatpush1.bf16.msra.mxu0 0
        %2339 = vmatprep.mubr.bf16.mxu0 0
        %2340 = vmatmul.mubr.bf16.gmra.mrb[0].mxu0 %v2290
        %v2341 = vpop.f32.mrb[0].mxu0
        %v2342 = vadd.f32 0.0, %v2341
        %v2343 = vpop.f32.mrb[0].mxu0
        %v2344 = vpop.f32.mrb[0].mxu0
        %v2345 = vadd.f32 0.0, %v2344
        %v2346 = vpop.f32.mrb[0].mxu0
        %2347 = vmatprep.mubr.bf16.mxu0 0
        %2348 = vmatmul.mubr.bf16.gmra.mrb[0].mxu0 %v2293
        %v2349 = vpop.f32.mrb[0].mxu0
        %v2350 = vadd.f32 0.0, %v2349
        %v2351 = vpop.f32.mrb[0].mxu0
        %v2352 = vpop.f32.mrb[0].mxu0
        %v2353 = vadd.f32 0.0, %v2352
        %v2354 = vpop.f32.mrb[0].mxu0
        %2355 = vmatprep.mubr.bf16.mxu0 0
        %2356 = vmatmul.mubr.bf16.gmra.mrb[0].mxu0 %v2296
        %v2357 = vpop.f32.mrb[0].mxu0
        %v2358 = vadd.f32 0.0, %v2357
        %v2359 = vpop.f32.mrb[0].mxu0
        %v2360 = vpop.f32.mrb[0].mxu0
        %v2361 = vadd.f32 0.0, %v2360
        %v2362 = vpop.f32.mrb[0].mxu0
        %2363 = vmatprep.mubr.bf16.mxu0 0
        %2364 = vmatmul.mubr.bf16.gmra.mrb[0].mxu0 %v2299
        %v2365 = vpop.f32.mrb[0].mxu0
        %v2366 = vadd.f32 0.0, %v2365
        %v2367 = vpop.f32.mrb[0].mxu0
        %v2368 = vpop.f32.mrb[0].mxu0
        %v2369 = vadd.f32 0.0, %v2368
        %v2370 = vpop.f32.mrb[0].mxu0
        %2371 = vmatprep.mubr.bf16.mxu0 0
        %2372 = vmatmul.mubr.bf16.gmra.mrb[0].mxu0 %v2302
        %v2373 = vpop.f32.mrb[0].mxu0
        %v2374 = vadd.f32 0.0, %v2373
        %v2375 = vpop.f32.mrb[0].mxu0
        %v2376 = vpop.f32.mrb[0].mxu0
        %v2377 = vadd.f32 0.0, %v2376
        %v2378 = vpop.f32.mrb[0].mxu0
        %2379 = vdwg.mxu0
        %v2380 = vadd.f32 %v2220, %v2342
        %v2381 = vadd.f32 %v2221, %v2345
        %v2382 = vadd.f32 %v2222, %v2350
        %v2383 = vadd.f32 %v2223, %v2353
        %v2384 = vadd.f32 %v2224, %v2358
        %v2385 = vadd.f32 %v2225, %v2361
        %v2386 = vadd.f32 %v2226, %v2366
        %v2387 = vadd.f32 %v2227, %v2369
        %v2388 = vadd.f32 %v2228, %v2374
        %v2389 = vadd.f32 %v2229, %v2377
        %v2390 = vld [vmem:[%s374 + $0x4] sm:$0xc]
        %s2391 = scalar_lea.vmem %s3, 20
        %v2392 = vld [vmem:[%s2391] sm:$0xf]
        %v2394 = vunpack.c.l.b16 %v2390
        %v2395 = vpack.c.b16 %v2102, %v2394
        %v2396 = vrot.slane %v2395, 2
        %v2397 = vrot.slane %v2113, 2
        %v2398 = vsel %vm1126, %v2396, %v2397
        %v2399 = vrot.slane %v2114, 2
        %v2400 = vsel %vm1126, %v2397, %v2399
        %v2401 = vrot.slane %v2115, 2
        %v2402 = vsel %vm1126, %v2399, %v2401
        %v2403 = vrot.slane %v2116, 2
        %v2404 = vsel %vm1126, %v2401, %v2403
        %v2405 = vrot.slane %v2235, 2
        %v2406 = vsel %vm1126, %v2403, %v2405
        %v2408 = vsel %vm508, %v2398, 0
        %v2411 = vsel %vm508, %v2400, 0
        %v2414 = vsel %vm508, %v2402, 0
        %v2417 = vsel %vm508, %v2404, 0
        %v2420 = vsel %vm508, %v2406, 0
        %v2423 = vsel %vm524, %v2392, 0
        %2425 = vmatprep.subr.bf16.mxu0 0
        %2426 = vmatpush1.bf16.msra.mxu0 %v2423
        %2427 = vmatprep.subr.bf16.mxu0 0
        %2428 = vmatpush1.bf16.msra.mxu0 0
        %2429 = vmatprep.subr.bf16.mxu0 0
        %2430 = vmatpush1.bf16.msra.mxu0 0
        %2431 = vmatprep.subr.bf16.mxu0 0
        %2432 = vmatpush1.bf16.msra.mxu0 0
        %2433 = vmatprep.subr.bf16.mxu0 0
        %2434 = vmatpush1.bf16.msra.mxu0 0
        %2435 = vmatprep.subr.bf16.mxu0 0
        %2436 = vmatpush1.bf16.msra.mxu0 0
        %2437 = vmatprep.subr.bf16.mxu0 0
        %2438 = vmatpush1.bf16.msra.mxu0 0
        %2439 = vmatprep.subr.bf16.mxu0 0
        %2440 = vmatpush1.bf16.msra.mxu0 0
        %2441 = vmatprep.subr.bf16.mxu0 0
        %2442 = vmatpush1.bf16.msra.mxu0 0
        %2443 = vmatprep.subr.bf16.mxu0 0
        %2444 = vmatpush1.bf16.msra.mxu0 0
        %2445 = vmatprep.subr.bf16.mxu0 0
        %2446 = vmatpush1.bf16.msra.mxu0 0
        %2447 = vmatprep.subr.bf16.mxu0 0
        %2448 = vmatpush1.bf16.msra.mxu0 0
        %2449 = vmatprep.subr.bf16.mxu0 0
        %2450 = vmatpush1.bf16.msra.mxu0 0
        %2451 = vmatprep.subr.bf16.mxu0 0
        %2452 = vmatpush1.bf16.msra.mxu0 0
        %2453 = vmatprep.subr.bf16.mxu0 0
        %2454 = vmatpush1.bf16.msra.mxu0 0
        %2455 = vmatprep.subr.bf16.mxu0 0
        %2456 = vmatpush1.bf16.msra.mxu0 0
        %2457 = vmatprep.mubr.bf16.mxu0 0
        %2458 = vmatmul.mubr.bf16.gmra.mrb[0].mxu0 %v2408
        %v2459 = vpop.f32.mrb[0].mxu0
        %v2460 = vadd.f32 0.0, %v2459
        %v2461 = vpop.f32.mrb[0].mxu0
        %v2462 = vpop.f32.mrb[0].mxu0
        %v2463 = vadd.f32 0.0, %v2462
        %v2464 = vpop.f32.mrb[0].mxu0
        %2465 = vmatprep.mubr.bf16.mxu0 0
        %2466 = vmatmul.mubr.bf16.gmra.mrb[0].mxu0 %v2411
        %v2467 = vpop.f32.mrb[0].mxu0
        %v2468 = vadd.f32 0.0, %v2467
        %v2469 = vpop.f32.mrb[0].mxu0
        %v2470 = vpop.f32.mrb[0].mxu0
        %v2471 = vadd.f32 0.0, %v2470
        %v2472 = vpop.f32.mrb[0].mxu0
        %2473 = vmatprep.mubr.bf16.mxu0 0
        %2474 = vmatmul.mubr.bf16.gmra.mrb[0].mxu0 %v2414
        %v2475 = vpop.f32.mrb[0].mxu0
        %v2476 = vadd.f32 0.0, %v2475
        %v2477 = vpop.f32.mrb[0].mxu0
        %v2478 = vpop.f32.mrb[0].mxu0
        %v2479 = vadd.f32 0.0, %v2478
        %v2480 = vpop.f32.mrb[0].mxu0
        %2481 = vmatprep.mubr.bf16.mxu0 0
        %2482 = vmatmul.mubr.bf16.gmra.mrb[0].mxu0 %v2417
        %v2483 = vpop.f32.mrb[0].mxu0
        %v2484 = vadd.f32 0.0, %v2483
        %v2485 = vpop.f32.mrb[0].mxu0
        %v2486 = vpop.f32.mrb[0].mxu0
        %v2487 = vadd.f32 0.0, %v2486
        %v2488 = vpop.f32.mrb[0].mxu0
        %2489 = vmatprep.mubr.bf16.mxu0 0
        %2490 = vmatmul.mubr.bf16.gmra.mrb[0].mxu0 %v2420
        %v2491 = vpop.f32.mrb[0].mxu0
        %v2492 = vadd.f32 0.0, %v2491
        %v2493 = vpop.f32.mrb[0].mxu0
        %v2494 = vpop.f32.mrb[0].mxu0
        %v2495 = vadd.f32 0.0, %v2494
        %v2496 = vpop.f32.mrb[0].mxu0
        %2497 = vdwg.mxu0
        %v2498 = vadd.f32 %v2380, %v2460
        %v2499 = vadd.f32 %v2381, %v2463
        %v2500 = vadd.f32 %v2382, %v2468
        %v2501 = vadd.f32 %v2383, %v2471
        %v2502 = vadd.f32 %v2384, %v2476
        %v2503 = vadd.f32 %v2385, %v2479
        %v2504 = vadd.f32 %v2386, %v2484
        %v2505 = vadd.f32 %v2387, %v2487
        %v2506 = vadd.f32 %v2388, %v2492
        %v2507 = vadd.f32 %v2389, %v2495
        %v2508 = vld [vmem:[%s374 + $0x8] sm:$0xc]
        %v2509 = vld [vmem:[%s374 + $0xc] sm:$0xf]
        %v2510 = vld [vmem:[%s374 + $0x10] sm:$0xf]
        %v2511 = vld [vmem:[%s374 + $0x14] sm:$0xf]
        %v2512 = vld [vmem:[%s374 + $0x18] sm:$0xf]
        %v2513 = vld [vmem:[%s374 + $0x1c] sm:$0xf]
        %v2514 = vld [vmem:[%s374 + $0x20] sm:$0xf]
        %v2515 = vld [vmem:[%s374 + $0x24] sm:$0xf]
        %v2516 = vld [vmem:[%s374 + $0x28] sm:$0xf]
        %v2517 = vld [vmem:[%s374 + $0x2c] sm:$0xf]
        %v2518 = vld [vmem:[%s374 + $0x30] sm:$0x3]
        %s2519 = scalar_lea.vmem %s3, 24
        %v2520 = vld [vmem:[%s2519] sm:$0xf]
        %v2532 = vunpack.c.l.b16 %v2508
        %v2533 = vunpack.c.l.b16 %v2509
        %v2534 = vunpack.c.l.b16 %v2510
        %v2535 = vunpack.c.l.b16 %v2511
        %v2536 = vunpack.c.l.b16 %v2512
        %v2537 = vunpack.c.l.b16 %v2513
        %v2538 = vunpack.c.l.b16 %v2514
        %v2539 = vunpack.c.l.b16 %v2515
        %v2540 = vunpack.c.l.b16 %v2516
        %v2541 = vunpack.c.l.b16 %v2517
        %v2542 = vunpack.c.l.b16 %v2518
        %v2543 = vpack.c.b16 %v2533, %v2532
        %v2544 = vpack.c.b16 %v2535, %v2534
        %v2545 = vpack.c.b16 %v2537, %v2536
        %v2546 = vpack.c.b16 %v2539, %v2538
        %v2547 = vpack.c.b16 %v2541, %v2540
        %v2548 = vpack.c.b16 %v2542, %v2542
        %v2549 = vrot.slane %v2543, 2
        %v2550 = vrot.slane %v2544, 2
        %v2551 = vsel %vm1126, %v2549, %v2550
        %v2552 = vrot.slane %v2545, 2
        %v2553 = vsel %vm1126, %v2550, %v2552
        %v2554 = vrot.slane %v2546, 2
        %v2555 = vsel %vm1126, %v2552, %v2554
        %v2556 = vrot.slane %v2547, 2
        %v2557 = vsel %vm1126, %v2554, %v2556
        %v2558 = vrot.slane %v2548, 2
        %v2559 = vsel %vm1126, %v2556, %v2558
        %v2561 = vsel %vm508, %v2551, 0
        %v2564 = vsel %vm508, %v2553, 0
        %v2567 = vsel %vm508, %v2555, 0
        %v2570 = vsel %vm508, %v2557, 0
        %v2573 = vsel %vm508, %v2559, 0
        %v2576 = vsel %vm524, %v2520, 0
        %2578 = vmatprep.subr.bf16.mxu0 0
        %2579 = vmatpush1.bf16.msra.mxu0 %v2576
        %2580 = vmatprep.subr.bf16.mxu0 0
        %2581 = vmatpush1.bf16.msra.mxu0 0
        %2582 = vmatprep.subr.bf16.mxu0 0
        %2583 = vmatpush1.bf16.msra.mxu0 0
        %2584 = vmatprep.subr.bf16.mxu0 0
        %2585 = vmatpush1.bf16.msra.mxu0 0
        %2586 = vmatprep.subr.bf16.mxu0 0
        %2587 = vmatpush1.bf16.msra.mxu0 0
        %2588 = vmatprep.subr.bf16.mxu0 0
        %2589 = vmatpush1.bf16.msra.mxu0 0
        %2590 = vmatprep.subr.bf16.mxu0 0
        %2591 = vmatpush1.bf16.msra.mxu0 0
        %2592 = vmatprep.subr.bf16.mxu0 0
        %2593 = vmatpush1.bf16.msra.mxu0 0
        %2594 = vmatprep.subr.bf16.mxu0 0
        %2595 = vmatpush1.bf16.msra.mxu0 0
        %2596 = vmatprep.subr.bf16.mxu0 0
        %2597 = vmatpush1.bf16.msra.mxu0 0
        %2598 = vmatprep.subr.bf16.mxu0 0
        %2599 = vmatpush1.bf16.msra.mxu0 0
        %2600 = vmatprep.subr.bf16.mxu0 0
        %2601 = vmatpush1.bf16.msra.mxu0 0
        %2602 = vmatprep.subr.bf16.mxu0 0
        %2603 = vmatpush1.bf16.msra.mxu0 0
        %2604 = vmatprep.subr.bf16.mxu0 0
        %2605 = vmatpush1.bf16.msra.mxu0 0
        %2606 = vmatprep.subr.bf16.mxu0 0
        %2607 = vmatpush1.bf16.msra.mxu0 0
        %2608 = vmatprep.subr.bf16.mxu0 0
        %2609 = vmatpush1.bf16.msra.mxu0 0
        %2610 = vmatprep.mubr.bf16.mxu0 0
        %2611 = vmatmul.mubr.bf16.gmra.mrb[0].mxu0 %v2561
        %v2612 = vpop.f32.mrb[0].mxu0
        %v2613 = vadd.f32 0.0, %v2612
        %v2614 = vpop.f32.mrb[0].mxu0
        %v2615 = vpop.f32.mrb[0].mxu0
        %v2616 = vadd.f32 0.0, %v2615
        %v2617 = vpop.f32.mrb[0].mxu0
        %2618 = vmatprep.mubr.bf16.mxu0 0
        %2619 = vmatmul.mubr.bf16.gmra.mrb[0].mxu0 %v2564
        %v2620 = vpop.f32.mrb[0].mxu0
        %v2621 = vadd.f32 0.0, %v2620
        %v2622 = vpop.f32.mrb[0].mxu0
        %v2623 = vpop.f32.mrb[0].mxu0
        %v2624 = vadd.f32 0.0, %v2623
        %v2625 = vpop.f32.mrb[0].mxu0
        %2626 = vmatprep.mubr.bf16.mxu0 0
        %2627 = vmatmul.mubr.bf16.gmra.mrb[0].mxu0 %v2567
        %v2628 = vpop.f32.mrb[0].mxu0
        %v2629 = vadd.f32 0.0, %v2628
        %v2630 = vpop.f32.mrb[0].mxu0
        %v2631 = vpop.f32.mrb[0].mxu0
        %v2632 = vadd.f32 0.0, %v2631
        %v2633 = vpop.f32.mrb[0].mxu0
        %2634 = vmatprep.mubr.bf16.mxu0 0
        %2635 = vmatmul.mubr.bf16.gmra.mrb[0].mxu0 %v2570
        %v2636 = vpop.f32.mrb[0].mxu0
        %v2637 = vadd.f32 0.0, %v2636
        %v2638 = vpop.f32.mrb[0].mxu0
        %v2639 = vpop.f32.mrb[0].mxu0
        %v2640 = vadd.f32 0.0, %v2639
        %v2641 = vpop.f32.mrb[0].mxu0
        %2642 = vmatprep.mubr.bf16.mxu0 0
        %2643 = vmatmul.mubr.bf16.gmra.mrb[0].mxu0 %v2573
        %v2644 = vpop.f32.mrb[0].mxu0
        %v2645 = vadd.f32 0.0, %v2644
        %v2646 = vpop.f32.mrb[0].mxu0
        %v2647 = vpop.f32.mrb[0].mxu0
        %v2648 = vadd.f32 0.0, %v2647
        %v2649 = vpop.f32.mrb[0].mxu0
        %2650 = vdwg.mxu0
        %v2651 = vadd.f32 %v2498, %v2613
        %v2652 = vadd.f32 %v2499, %v2616
        %v2653 = vadd.f32 %v2500, %v2621
        %v2654 = vadd.f32 %v2501, %v2624
        %v2655 = vadd.f32 %v2502, %v2629
        %v2656 = vadd.f32 %v2503, %v2632
        %v2657 = vadd.f32 %v2504, %v2637
        %v2658 = vadd.f32 %v2505, %v2640
        %v2659 = vadd.f32 %v2506, %v2645
        %v2660 = vadd.f32 %v2507, %v2648
        %v2661 = vld [vmem:[%s374 + $0x30] sm:$0x7]
        %s2662 = scalar_lea.vmem %s3, 28
        %v2663 = vld [vmem:[%s2662] sm:$0xf]
        %v2665 = vunpack.c.l.b16 %v2661
        %v2666 = vpack.c.b16 %v2665, %v2665
        %v2668 = vshrl.u32 %v2543, 16
        %v2670 = vrot.slane %v2668, 2
        %v2671 = vshll.u32 %v2543, 16
        %v2673 = vrot.slane %v2671, 3
        %v2674 = vor.u32 %v2670, %v2673
        %v2676 = vshrl.u32 %v2544, 16
        %v2678 = vrot.slane %v2676, 2
        %v2679 = vshll.u32 %v2544, 16
        %v2681 = vrot.slane %v2679, 3
        %v2682 = vor.u32 %v2678, %v2681
        %v2683 = vsel %vm1398, %v2674, %v2682
        %v2685 = vshrl.u32 %v2545, 16
        %v2687 = vrot.slane %v2685, 2
        %v2688 = vshll.u32 %v2545, 16
        %v2690 = vrot.slane %v2688, 3
        %v2691 = vor.u32 %v2687, %v2690
        %v2692 = vsel %vm1398, %v2682, %v2691
        %v2694 = vshrl.u32 %v2546, 16
        %v2696 = vrot.slane %v2694, 2
        %v2697 = vshll.u32 %v2546, 16
        %v2699 = vrot.slane %v2697, 3
        %v2700 = vor.u32 %v2696, %v2699
        %v2701 = vsel %vm1398, %v2691, %v2700
        %v2703 = vshrl.u32 %v2547, 16
        %v2705 = vrot.slane %v2703, 2
        %v2706 = vshll.u32 %v2547, 16
        %v2708 = vrot.slane %v2706, 3
        %v2709 = vor.u32 %v2705, %v2708
        %v2710 = vsel %vm1398, %v2700, %v2709
        %v2712 = vshrl.u32 %v2666, 16
        %v2714 = vrot.slane %v2712, 2
        %v2715 = vshll.u32 %v2666, 16
        %v2717 = vrot.slane %v2715, 3
        %v2718 = vor.u32 %v2714, %v2717
        %v2719 = vsel %vm1398, %v2709, %v2718
        %v2721 = vsel %vm508, %v2683, 0
        %v2724 = vsel %vm508, %v2692, 0
        %v2727 = vsel %vm508, %v2701, 0
        %v2730 = vsel %vm508, %v2710, 0
        %v2733 = vsel %vm508, %v2719, 0
        %v2736 = vsel %vm524, %v2663, 0
        %2738 = vmatprep.subr.bf16.mxu0 0
        %2739 = vmatpush1.bf16.msra.mxu0 %v2736
        %2740 = vmatprep.subr.bf16.mxu0 0
        %2741 = vmatpush1.bf16.msra.mxu0 0
        %2742 = vmatprep.subr.bf16.mxu0 0
        %2743 = vmatpush1.bf16.msra.mxu0 0
        %2744 = vmatprep.subr.bf16.mxu0 0
        %2745 = vmatpush1.bf16.msra.mxu0 0
        %2746 = vmatprep.subr.bf16.mxu0 0
        %2747 = vmatpush1.bf16.msra.mxu0 0
        %2748 = vmatprep.subr.bf16.mxu0 0
        %2749 = vmatpush1.bf16.msra.mxu0 0
        %2750 = vmatprep.subr.bf16.mxu0 0
        %2751 = vmatpush1.bf16.msra.mxu0 0
        %2752 = vmatprep.subr.bf16.mxu0 0
        %2753 = vmatpush1.bf16.msra.mxu0 0
        %2754 = vmatprep.subr.bf16.mxu0 0
        %2755 = vmatpush1.bf16.msra.mxu0 0
        %2756 = vmatprep.subr.bf16.mxu0 0
        %2757 = vmatpush1.bf16.msra.mxu0 0
        %2758 = vmatprep.subr.bf16.mxu0 0
        %2759 = vmatpush1.bf16.msra.mxu0 0
        %2760 = vmatprep.subr.bf16.mxu0 0
        %2761 = vmatpush1.bf16.msra.mxu0 0
        %2762 = vmatprep.subr.bf16.mxu0 0
        %2763 = vmatpush1.bf16.msra.mxu0 0
        %2764 = vmatprep.subr.bf16.mxu0 0
        %2765 = vmatpush1.bf16.msra.mxu0 0
        %2766 = vmatprep.subr.bf16.mxu0 0
        %2767 = vmatpush1.bf16.msra.mxu0 0
        %2768 = vmatprep.subr.bf16.mxu0 0
        %2769 = vmatpush1.bf16.msra.mxu0 0
        %2770 = vmatprep.mubr.bf16.mxu0 0
        %2771 = vmatmul.mubr.bf16.gmra.mrb[0].mxu0 %v2721
        %v2772 = vpop.f32.mrb[0].mxu0
        %v2773 = vadd.f32 0.0, %v2772
        %v2774 = vpop.f32.mrb[0].mxu0
        %v2775 = vpop.f32.mrb[0].mxu0
        %v2776 = vadd.f32 0.0, %v2775
        %v2777 = vpop.f32.mrb[0].mxu0
        %2778 = vmatprep.mubr.bf16.mxu0 0
        %2779 = vmatmul.mubr.bf16.gmra.mrb[0].mxu0 %v2724
        %v2780 = vpop.f32.mrb[0].mxu0
        %v2781 = vadd.f32 0.0, %v2780
        %v2782 = vpop.f32.mrb[0].mxu0
        %v2783 = vpop.f32.mrb[0].mxu0
        %v2784 = vadd.f32 0.0, %v2783
        %v2785 = vpop.f32.mrb[0].mxu0
        %2786 = vmatprep.mubr.bf16.mxu0 0
        %2787 = vmatmul.mubr.bf16.gmra.mrb[0].mxu0 %v2727
        %v2788 = vpop.f32.mrb[0].mxu0
        %v2789 = vadd.f32 0.0, %v2788
        %v2790 = vpop.f32.mrb[0].mxu0
        %v2791 = vpop.f32.mrb[0].mxu0
        %v2792 = vadd.f32 0.0, %v2791
        %v2793 = vpop.f32.mrb[0].mxu0
        %2794 = vmatprep.mubr.bf16.mxu0 0
        %2795 = vmatmul.mubr.bf16.gmra.mrb[0].mxu0 %v2730
        %v2796 = vpop.f32.mrb[0].mxu0
        %v2797 = vadd.f32 0.0, %v2796
        %v2798 = vpop.f32.mrb[0].mxu0
        %v2799 = vpop.f32.mrb[0].mxu0
        %v2800 = vadd.f32 0.0, %v2799
        %v2801 = vpop.f32.mrb[0].mxu0
        %2802 = vmatprep.mubr.bf16.mxu0 0
        %2803 = vmatmul.mubr.bf16.gmra.mrb[0].mxu0 %v2733
        %v2804 = vpop.f32.mrb[0].mxu0
        %v2805 = vadd.f32 0.0, %v2804
        %v2806 = vpop.f32.mrb[0].mxu0
        %v2807 = vpop.f32.mrb[0].mxu0
        %v2808 = vadd.f32 0.0, %v2807
        %v2809 = vpop.f32.mrb[0].mxu0
        %2810 = vdwg.mxu0
        %v2811 = vadd.f32 %v2651, %v2773
        %v2812 = vadd.f32 %v2652, %v2776
        %v2813 = vadd.f32 %v2653, %v2781
        %v2814 = vadd.f32 %v2654, %v2784
        %v2815 = vadd.f32 %v2655, %v2789
        %v2816 = vadd.f32 %v2656, %v2792
        %v2817 = vadd.f32 %v2657, %v2797
        %v2818 = vadd.f32 %v2658, %v2800
        %v2819 = vadd.f32 %v2659, %v2805
        %v2820 = vadd.f32 %v2660, %v2808
        %v2821 = vld [vmem:[%s374 + $0x8] sm:$0x8]
        %s2822 = scalar_lea.vmem %s3, 32
        %v2823 = vld [vmem:[%s2822] sm:$0xf]
        %v2825 = vunpack.c.l.b16 %v2821
        %v2826 = vpack.c.b16 %v2533, %v2825
        %v2827 = vrot.slane %v2826, 3
        %v2828 = vrot.slane %v2544, 3
        %v2829 = vsel %vm1559, %v2827, %v2828
        %v2830 = vrot.slane %v2545, 3
        %v2831 = vsel %vm1559, %v2828, %v2830
        %v2832 = vrot.slane %v2546, 3
        %v2833 = vsel %vm1559, %v2830, %v2832
        %v2834 = vrot.slane %v2547, 3
        %v2835 = vsel %vm1559, %v2832, %v2834
        %v2836 = vrot.slane %v2666, 3
        %v2837 = vsel %vm1559, %v2834, %v2836
        %v2839 = vsel %vm508, %v2829, 0
        %v2842 = vsel %vm508, %v2831, 0
        %v2845 = vsel %vm508, %v2833, 0
        %v2848 = vsel %vm508, %v2835, 0
        %v2851 = vsel %vm508, %v2837, 0
        %v2854 = vsel %vm524, %v2823, 0
        %2856 = vmatprep.subr.bf16.mxu0 0
        %2857 = vmatpush1.bf16.msra.mxu0 %v2854
        %2858 = vmatprep.subr.bf16.mxu0 0
        %2859 = vmatpush1.bf16.msra.mxu0 0
        %2860 = vmatprep.subr.bf16.mxu0 0
        %2861 = vmatpush1.bf16.msra.mxu0 0
        %2862 = vmatprep.subr.bf16.mxu0 0
        %2863 = vmatpush1.bf16.msra.mxu0 0
        %2864 = vmatprep.subr.bf16.mxu0 0
        %2865 = vmatpush1.bf16.msra.mxu0 0
        %2866 = vmatprep.subr.bf16.mxu0 0
        %2867 = vmatpush1.bf16.msra.mxu0 0
        %2868 = vmatprep.subr.bf16.mxu0 0
        %2869 = vmatpush1.bf16.msra.mxu0 0
        %2870 = vmatprep.subr.bf16.mxu0 0
        %2871 = vmatpush1.bf16.msra.mxu0 0
        %2872 = vmatprep.subr.bf16.mxu0 0
        %2873 = vmatpush1.bf16.msra.mxu0 0
        %2874 = vmatprep.subr.bf16.mxu0 0
        %2875 = vmatpush1.bf16.msra.mxu0 0
        %2876 = vmatprep.subr.bf16.mxu0 0
        %2877 = vmatpush1.bf16.msra.mxu0 0
        %2878 = vmatprep.subr.bf16.mxu0 0
        %2879 = vmatpush1.bf16.msra.mxu0 0
        %2880 = vmatprep.subr.bf16.mxu0 0
        %2881 = vmatpush1.bf16.msra.mxu0 0
        %2882 = vmatprep.subr.bf16.mxu0 0
        %2883 = vmatpush1.bf16.msra.mxu0 0
        %2884 = vmatprep.subr.bf16.mxu0 0
        %2885 = vmatpush1.bf16.msra.mxu0 0
        %2886 = vmatprep.subr.bf16.mxu0 0
        %2887 = vmatpush1.bf16.msra.mxu0 0
        %2888 = vmatprep.mubr.bf16.mxu0 0
        %2889 = vmatmul.mubr.bf16.gmra.mrb[0].mxu0 %v2839
        %v2890 = vpop.f32.mrb[0].mxu0
        %v2891 = vadd.f32 0.0, %v2890
        %v2892 = vpop.f32.mrb[0].mxu0
        %v2893 = vpop.f32.mrb[0].mxu0
        %v2894 = vadd.f32 0.0, %v2893
        %v2895 = vpop.f32.mrb[0].mxu0
        %2896 = vmatprep.mubr.bf16.mxu0 0
        %2897 = vmatmul.mubr.bf16.gmra.mrb[0].mxu0 %v2842
        %v2898 = vpop.f32.mrb[0].mxu0
        %v2899 = vadd.f32 0.0, %v2898
        %v2900 = vpop.f32.mrb[0].mxu0
        %v2901 = vpop.f32.mrb[0].mxu0
        %v2902 = vadd.f32 0.0, %v2901
        %v2903 = vpop.f32.mrb[0].mxu0
        %2904 = vmatprep.mubr.bf16.mxu0 0
        %2905 = vmatmul.mubr.bf16.gmra.mrb[0].mxu0 %v2845
        %v2906 = vpop.f32.mrb[0].mxu0
        %v2907 = vadd.f32 0.0, %v2906
        %v2908 = vpop.f32.mrb[0].mxu0
        %v2909 = vpop.f32.mrb[0].mxu0
        %v2910 = vadd.f32 0.0, %v2909
        %v2911 = vpop.f32.mrb[0].mxu0
        %2912 = vmatprep.mubr.bf16.mxu0 0
        %2913 = vmatmul.mubr.bf16.gmra.mrb[0].mxu0 %v2848
        %v2914 = vpop.f32.mrb[0].mxu0
        %v2915 = vadd.f32 0.0, %v2914
        %v2916 = vpop.f32.mrb[0].mxu0
        %v2917 = vpop.f32.mrb[0].mxu0
        %v2918 = vadd.f32 0.0, %v2917
        %v2919 = vpop.f32.mrb[0].mxu0
        %2920 = vmatprep.mubr.bf16.mxu0 0
        %2921 = vmatmul.mubr.bf16.gmra.mrb[0].mxu0 %v2851
        %v2922 = vpop.f32.mrb[0].mxu0
        %v2923 = vadd.f32 0.0, %v2922
        %v2924 = vpop.f32.mrb[0].mxu0
        %v2925 = vpop.f32.mrb[0].mxu0
        %v2926 = vadd.f32 0.0, %v2925
        %v2927 = vpop.f32.mrb[0].mxu0
        %2928 = vdwg.mxu0
        %v2929 = vadd.f32 %v2811, %v2891
        %v2930 = vadd.f32 %v2812, %v2894
        %v2931 = vadd.f32 %v2813, %v2899
        %v2932 = vadd.f32 %v2814, %v2902
        %v2933 = vadd.f32 %v2815, %v2907
        %v2934 = vadd.f32 %v2816, %v2910
        %v2935 = vadd.f32 %v2817, %v2915
        %v2936 = vadd.f32 %v2818, %v2918
        %v2937 = vadd.f32 %v2819, %v2923
        %v2938 = vadd.f32 %v2820, %v2926
        %v2939 = vadd.f32 %v1686, %v2929
        %v2940 = vadd.f32 %v1687, %v2930
        %v2941 = vadd.f32 %v1688, %v2931
        %v2942 = vadd.f32 %v1689, %v2932
        %v2943 = vadd.f32 %v1690, %v2933
        %v2944 = vadd.f32 %v1691, %v2934
        %v2945 = vadd.f32 %v1692, %v2935
        %v2946 = vadd.f32 %v1693, %v2936
        %v2947 = vadd.f32 %v1694, %v2937
        %v2948 = vadd.f32 %v1695, %v2938
        %2949 = vst.msk [vmem:[%s410] sm:$0xff] %vm508, %v2939
        %2950 = vst.msk [vmem:[%s410 + $0x8] sm:$0xff] %vm508, %v2940
        %2951 = vst.msk [vmem:[%s410 + $0x10] sm:$0xff] %vm508, %v2941
        %2952 = vst.msk [vmem:[%s410 + $0x18] sm:$0xff] %vm508, %v2942
        %2953 = vst.msk [vmem:[%s410 + $0x20] sm:$0xff] %vm508, %v2943
        %2954 = vst.msk [vmem:[%s410 + $0x28] sm:$0xff] %vm508, %v2944
        %2955 = vst.msk [vmem:[%s410 + $0x30] sm:$0xff] %vm508, %v2945
        %2956 = vst.msk [vmem:[%s410 + $0x38] sm:$0xff] %vm508, %v2946
        %2957 = vst.msk [vmem:[%s410 + $0x40] sm:$0xff] %vm508, %v2947
        %2958 = vst.msk [vmem:[%s410 + $0x48] sm:$0xff] %vm508, %v2948
      $region40: #{up_block_forward.6} parent=35 // pred_fallthru
        _
      %p2959 = scmp.lt.s32.totalorder %s23, 7
      // Predicated region
      $region41: #{up_block_forward.6} parent=35 // pred_check
        %p2960 = pneg %p2959
      $region42: #{up_block_forward.6} parent=35 // pred_check_branch
        %2962 = sbr.rel (%p2960) target = $region44
      $region43: #{up_block_forward.6} parent=35 // pred_region
        %v2963 = vld [vmem:[%s410] sm:$0xff]
        %v2964 = vld [vmem:[%s410 + $0x8] sm:$0xff]
        %v2965 = vld [vmem:[%s410 + $0x10] sm:$0xff]
        %v2966 = vld [vmem:[%s410 + $0x18] sm:$0xff]
        %v2967 = vld [vmem:[%s410 + $0x20] sm:$0xff]
        %v2968 = vld [vmem:[%s410 + $0x28] sm:$0xff]
        %v2969 = vld [vmem:[%s410 + $0x30] sm:$0xff]
        %v2970 = vld [vmem:[%s410 + $0x38] sm:$0xff]
        %v2971 = vld [vmem:[%s410 + $0x40] sm:$0xff]
        %v2972 = vld [vmem:[%s410 + $0x48] sm:$0xff]
        %v2973 = vld [vmem:[%s398] sm:$0xf]
        %v2974 = vld [vmem:[%s398 + $0x4] sm:$0xf]
        %v2975 = vld [vmem:[%s398 + $0x8] sm:$0xf]
        %v2976 = vld [vmem:[%s398 + $0xc] sm:$0xf]
        %v2977 = vld [vmem:[%s398 + $0x10] sm:$0xf]
        %v2978 = vld [vmem:[%s398 + $0x14] sm:$0xf]
        %v2979 = vld [vmem:[%s398 + $0x18] sm:$0xf]
        %v2980 = vld [vmem:[%s398 + $0x1c] sm:$0xf]
        %v2981 = vld [vmem:[%s398 + $0x20] sm:$0xf]
        %v2982 = vld [vmem:[%s398 + $0x24] sm:$0xf]
        %s2983 = scalar_lea.vmem %s3, 72
        %v2984 = vld [vmem:[%s2983] sm:$0xf]
        %v2985 = vld [vmem:[%s398 + $0x28] sm:$0x1]
        %s2986 = scalar_lea.vmem %s3, 76
        %v2987 = vld [vmem:[%s2986] sm:$0xf]
        %v2999 = vunpack.c.l.b16 %v2973
        %v3000 = vunpack.c.l.b16 %v2974
        %v3001 = vunpack.c.l.b16 %v2975
        %v3002 = vunpack.c.l.b16 %v2976
        %v3003 = vunpack.c.l.b16 %v2977
        %v3004 = vunpack.c.l.b16 %v2978
        %v3005 = vunpack.c.l.b16 %v2979
        %v3006 = vunpack.c.l.b16 %v2980
        %v3007 = vunpack.c.l.b16 %v2981
        %v3008 = vunpack.c.l.b16 %v2982
        %v3009 = vunpack.c.l.b16 %v2985
        %v3010 = vpack.c.b16 %v3000, %v2999
        %v3011 = vpack.c.b16 %v3002, %v3001
        %v3012 = vpack.c.b16 %v3004, %v3003
        %v3013 = vpack.c.b16 %v3006, %v3005
        %v3014 = vpack.c.b16 %v3008, %v3007
        %v3015 = vpack.c.b16 %v3009, %v3009
        %v3017 = vshrl.u32 %v3010, 16
        %v3019 = vshll.u32 %v3010, 16
        %v3021 = vrot.slane %v3019, 1
        %v3022 = vor.u32 %v3017, %v3021
        %v3024 = vshll.u32 %v3011, 16
        %v3026 = vrot.slane %v3024, 1
        %v3027 = vsel %vm463, %v3022, %v3026
        %v3028 = vshrl.u32 %v3011, 16
        %v3030 = vor.u32 %v3028, %v3026
        %v3032 = vshll.u32 %v3012, 16
        %v3034 = vrot.slane %v3032, 1
        %v3035 = vsel %vm463, %v3030, %v3034
        %v3036 = vshrl.u32 %v3012, 16
        %v3038 = vor.u32 %v3036, %v3034
        %v3040 = vshll.u32 %v3013, 16
        %v3042 = vrot.slane %v3040, 1
        %v3043 = vsel %vm463, %v3038, %v3042
        %v3044 = vshrl.u32 %v3013, 16
        %v3046 = vor.u32 %v3044, %v3042
        %v3048 = vshll.u32 %v3014, 16
        %v3050 = vrot.slane %v3048, 1
        %v3051 = vsel %vm463, %v3046, %v3050
        %v3052 = vshrl.u32 %v3014, 16
        %v3054 = vor.u32 %v3052, %v3050
        %v3056 = vshll.u32 %v3015, 16
        %v3058 = vrot.slane %v3056, 1
        %v3059 = vsel %vm463, %v3054, %v3058
        %v3061 = vsel %vm508, %v3027, 0
        %v3064 = vsel %vm508, %v3035, 0
        %v3067 = vsel %vm508, %v3043, 0
        %v3070 = vsel %vm508, %v3051, 0
        %v3073 = vsel %vm508, %v3059, 0
        %v3076 = vsel %vm524, %v2987, 0
        %3078 = vmatprep.subr.bf16.mxu0 0
        %3079 = vmatpush1.bf16.msra.mxu0 %v3076
        %3080 = vmatprep.subr.bf16.mxu0 0
        %3081 = vmatpush1.bf16.msra.mxu0 0
        %3082 = vmatprep.subr.bf16.mxu0 0
        %3083 = vmatpush1.bf16.msra.mxu0 0
        %3084 = vmatprep.subr.bf16.mxu0 0
        %3085 = vmatpush1.bf16.msra.mxu0 0
        %3086 = vmatprep.subr.bf16.mxu0 0
        %3087 = vmatpush1.bf16.msra.mxu0 0
        %3088 = vmatprep.subr.bf16.mxu0 0
        %3089 = vmatpush1.bf16.msra.mxu0 0
        %3090 = vmatprep.subr.bf16.mxu0 0
        %3091 = vmatpush1.bf16.msra.mxu0 0
        %3092 = vmatprep.subr.bf16.mxu0 0
        %3093 = vmatpush1.bf16.msra.mxu0 0
        %3094 = vmatprep.subr.bf16.mxu0 0
        %3095 = vmatpush1.bf16.msra.mxu0 0
        %3096 = vmatprep.subr.bf16.mxu0 0
        %3097 = vmatpush1.bf16.msra.mxu0 0
        %3098 = vmatprep.subr.bf16.mxu0 0
        %3099 = vmatpush1.bf16.msra.mxu0 0
        %3100 = vmatprep.subr.bf16.mxu0 0
        %3101 = vmatpush1.bf16.msra.mxu0 0
        %3102 = vmatprep.subr.bf16.mxu0 0
        %3103 = vmatpush1.bf16.msra.mxu0 0
        %3104 = vmatprep.subr.bf16.mxu0 0
        %3105 = vmatpush1.bf16.msra.mxu0 0
        %3106 = vmatprep.subr.bf16.mxu0 0
        %3107 = vmatpush1.bf16.msra.mxu0 0
        %3108 = vmatprep.subr.bf16.mxu0 0
        %3109 = vmatpush1.bf16.msra.mxu0 0
        %3110 = vmatprep.mubr.bf16.mxu0 0
        %3111 = vmatmul.mubr.bf16.gmra.mrb[0].mxu0 %v3061
        %v3112 = vpop.f32.mrb[0].mxu0
        %v3113 = vadd.f32 0.0, %v3112
        %v3114 = vpop.f32.mrb[0].mxu0
        %v3115 = vpop.f32.mrb[0].mxu0
        %v3116 = vadd.f32 0.0, %v3115
        %v3117 = vpop.f32.mrb[0].mxu0
        %3118 = vmatprep.mubr.bf16.mxu0 0
        %3119 = vmatmul.mubr.bf16.gmra.mrb[0].mxu0 %v3064
        %v3120 = vpop.f32.mrb[0].mxu0
        %v3121 = vadd.f32 0.0, %v3120
        %v3122 = vpop.f32.mrb[0].mxu0
        %v3123 = vpop.f32.mrb[0].mxu0
        %v3124 = vadd.f32 0.0, %v3123
        %v3125 = vpop.f32.mrb[0].mxu0
        %3126 = vmatprep.mubr.bf16.mxu0 0
        %3127 = vmatmul.mubr.bf16.gmra.mrb[0].mxu0 %v3067
        %v3128 = vpop.f32.mrb[0].mxu0
        %v3129 = vadd.f32 0.0, %v3128
        %v3130 = vpop.f32.mrb[0].mxu0
        %v3131 = vpop.f32.mrb[0].mxu0
        %v3132 = vadd.f32 0.0, %v3131
        %v3133 = vpop.f32.mrb[0].mxu0
        %3134 = vmatprep.mubr.bf16.mxu0 0
        %3135 = vmatmul.mubr.bf16.gmra.mrb[0].mxu0 %v3070
        %v3136 = vpop.f32.mrb[0].mxu0
        %v3137 = vadd.f32 0.0, %v3136
        %v3138 = vpop.f32.mrb[0].mxu0
        %v3139 = vpop.f32.mrb[0].mxu0
        %v3140 = vadd.f32 0.0, %v3139
        %v3141 = vpop.f32.mrb[0].mxu0
        %3142 = vmatprep.mubr.bf16.mxu0 0
        %3143 = vmatmul.mubr.bf16.gmra.mrb[0].mxu0 %v3073
        %v3144 = vpop.f32.mrb[0].mxu0
        %v3145 = vadd.f32 0.0, %v3144
        %v3146 = vpop.f32.mrb[0].mxu0
        %v3147 = vpop.f32.mrb[0].mxu0
        %v3148 = vadd.f32 0.0, %v3147
        %v3149 = vpop.f32.mrb[0].mxu0
        %3150 = vdwg.mxu0
        %v3151 = vsel %vm508, %v3010, 0
        %v3153 = vsel %vm508, %v3011, 0
        %v3155 = vsel %vm508, %v3012, 0
        %v3157 = vsel %vm508, %v3013, 0
        %v3159 = vsel %vm508, %v3014, 0
        %v3162 = vsel %vm524, %v2984, 0
        %3164 = vmatprep.subr.bf16.mxu0 0
        %3165 = vmatpush1.bf16.msra.mxu0 %v3162
        %3166 = vmatprep.subr.bf16.mxu0 0
        %3167 = vmatpush1.bf16.msra.mxu0 0
        %3168 = vmatprep.subr.bf16.mxu0 0
        %3169 = vmatpush1.bf16.msra.mxu0 0
        %3170 = vmatprep.subr.bf16.mxu0 0
        %3171 = vmatpush1.bf16.msra.mxu0 0
        %3172 = vmatprep.subr.bf16.mxu0 0
        %3173 = vmatpush1.bf16.msra.mxu0 0
        %3174 = vmatprep.subr.bf16.mxu0 0
        %3175 = vmatpush1.bf16.msra.mxu0 0
        %3176 = vmatprep.subr.bf16.mxu0 0
        %3177 = vmatpush1.bf16.msra.mxu0 0
        %3178 = vmatprep.subr.bf16.mxu0 0
        %3179 = vmatpush1.bf16.msra.mxu0 0
        %3180 = vmatprep.subr.bf16.mxu0 0
        %3181 = vmatpush1.bf16.msra.mxu0 0
        %3182 = vmatprep.subr.bf16.mxu0 0
        %3183 = vmatpush1.bf16.msra.mxu0 0
        %3184 = vmatprep.subr.bf16.mxu0 0
        %3185 = vmatpush1.bf16.msra.mxu0 0
        %3186 = vmatprep.subr.bf16.mxu0 0
        %3187 = vmatpush1.bf16.msra.mxu0 0
        %3188 = vmatprep.subr.bf16.mxu0 0
        %3189 = vmatpush1.bf16.msra.mxu0 0
        %3190 = vmatprep.subr.bf16.mxu0 0
        %3191 = vmatpush1.bf16.msra.mxu0 0
        %3192 = vmatprep.subr.bf16.mxu0 0
        %3193 = vmatpush1.bf16.msra.mxu0 0
        %3194 = vmatprep.subr.bf16.mxu0 0
        %3195 = vmatpush1.bf16.msra.mxu0 0
        %3196 = vmatprep.mubr.bf16.mxu0 0
        %3197 = vmatmul.mubr.bf16.gmra.mrb[0].mxu0 %v3151
        %v3198 = vpop.f32.mrb[0].mxu0
        %v3199 = vadd.f32 %v3113, %v3198
        %v3200 = vpop.f32.mrb[0].mxu0
        %v3201 = vpop.f32.mrb[0].mxu0
        %v3202 = vadd.f32 %v3116, %v3201
        %v3203 = vpop.f32.mrb[0].mxu0
        %3204 = vmatprep.mubr.bf16.mxu0 0
        %3205 = vmatmul.mubr.bf16.gmra.mrb[0].mxu0 %v3153
        %v3206 = vpop.f32.mrb[0].mxu0
        %v3207 = vadd.f32 %v3121, %v3206
        %v3208 = vpop.f32.mrb[0].mxu0
        %v3209 = vpop.f32.mrb[0].mxu0
        %v3210 = vadd.f32 %v3124, %v3209
        %v3211 = vpop.f32.mrb[0].mxu0
        %3212 = vmatprep.mubr.bf16.mxu0 0
        %3213 = vmatmul.mubr.bf16.gmra.mrb[0].mxu0 %v3155
        %v3214 = vpop.f32.mrb[0].mxu0
        %v3215 = vadd.f32 %v3129, %v3214
        %v3216 = vpop.f32.mrb[0].mxu0
        %v3217 = vpop.f32.mrb[0].mxu0
        %v3218 = vadd.f32 %v3132, %v3217
        %v3219 = vpop.f32.mrb[0].mxu0
        %3220 = vmatprep.mubr.bf16.mxu0 0
        %3221 = vmatmul.mubr.bf16.gmra.mrb[0].mxu0 %v3157
        %v3222 = vpop.f32.mrb[0].mxu0
        %v3223 = vadd.f32 %v3137, %v3222
        %v3224 = vpop.f32.mrb[0].mxu0
        %v3225 = vpop.f32.mrb[0].mxu0
        %v3226 = vadd.f32 %v3140, %v3225
        %v3227 = vpop.f32.mrb[0].mxu0
        %3228 = vmatprep.mubr.bf16.mxu0 0
        %3229 = vmatmul.mubr.bf16.gmra.mrb[0].mxu0 %v3159
        %v3230 = vpop.f32.mrb[0].mxu0
        %v3231 = vadd.f32 %v3145, %v3230
        %v3232 = vpop.f32.mrb[0].mxu0
        %v3233 = vpop.f32.mrb[0].mxu0
        %v3234 = vadd.f32 %v3148, %v3233
        %v3235 = vpop.f32.mrb[0].mxu0
        %3236 = vdwg.mxu0
        %v3237 = vld [vmem:[%s398] sm:$0xe]
        %s3238 = scalar_lea.vmem %s3, 80
        %v3239 = vld [vmem:[%s3238] sm:$0xf]
        %v3241 = vunpack.c.l.b16 %v3237
        %v3242 = vpack.c.b16 %v3000, %v3241
        %v3243 = vrot.slane %v3242, 1
        %v3244 = vrot.slane %v3011, 1
        %v3245 = vsel %vm693, %v3243, %v3244
        %v3246 = vrot.slane %v3012, 1
        %v3247 = vsel %vm693, %v3244, %v3246
        %v3248 = vrot.slane %v3013, 1
        %v3249 = vsel %vm693, %v3246, %v3248
        %v3250 = vrot.slane %v3014, 1
        %v3251 = vsel %vm693, %v3248, %v3250
        %v3252 = vrot.slane %v3015, 1
        %v3253 = vsel %vm693, %v3250, %v3252
        %v3255 = vsel %vm508, %v3245, 0
        %v3258 = vsel %vm508, %v3247, 0
        %v3261 = vsel %vm508, %v3249, 0
        %v3264 = vsel %vm508, %v3251, 0
        %v3267 = vsel %vm508, %v3253, 0
        %v3270 = vsel %vm524, %v3239, 0
        %3272 = vmatprep.subr.bf16.mxu0 0
        %3273 = vmatpush1.bf16.msra.mxu0 %v3270
        %3274 = vmatprep.subr.bf16.mxu0 0
        %3275 = vmatpush1.bf16.msra.mxu0 0
        %3276 = vmatprep.subr.bf16.mxu0 0
        %3277 = vmatpush1.bf16.msra.mxu0 0
        %3278 = vmatprep.subr.bf16.mxu0 0
        %3279 = vmatpush1.bf16.msra.mxu0 0
        %3280 = vmatprep.subr.bf16.mxu0 0
        %3281 = vmatpush1.bf16.msra.mxu0 0
        %3282 = vmatprep.subr.bf16.mxu0 0
        %3283 = vmatpush1.bf16.msra.mxu0 0
        %3284 = vmatprep.subr.bf16.mxu0 0
        %3285 = vmatpush1.bf16.msra.mxu0 0
        %3286 = vmatprep.subr.bf16.mxu0 0
        %3287 = vmatpush1.bf16.msra.mxu0 0
        %3288 = vmatprep.subr.bf16.mxu0 0
        %3289 = vmatpush1.bf16.msra.mxu0 0
        %3290 = vmatprep.subr.bf16.mxu0 0
        %3291 = vmatpush1.bf16.msra.mxu0 0
        %3292 = vmatprep.subr.bf16.mxu0 0
        %3293 = vmatpush1.bf16.msra.mxu0 0
        %3294 = vmatprep.subr.bf16.mxu0 0
        %3295 = vmatpush1.bf16.msra.mxu0 0
        %3296 = vmatprep.subr.bf16.mxu0 0
        %3297 = vmatpush1.bf16.msra.mxu0 0
        %3298 = vmatprep.subr.bf16.mxu0 0
        %3299 = vmatpush1.bf16.msra.mxu0 0
        %3300 = vmatprep.subr.bf16.mxu0 0
        %3301 = vmatpush1.bf16.msra.mxu0 0
        %3302 = vmatprep.subr.bf16.mxu0 0
        %3303 = vmatpush1.bf16.msra.mxu0 0
        %3304 = vmatprep.mubr.bf16.mxu0 0
        %3305 = vmatmul.mubr.bf16.gmra.mrb[0].mxu0 %v3255
        %v3306 = vpop.f32.mrb[0].mxu0
        %v3307 = vadd.f32 0.0, %v3306
        %v3308 = vpop.f32.mrb[0].mxu0
        %v3309 = vpop.f32.mrb[0].mxu0
        %v3310 = vadd.f32 0.0, %v3309
        %v3311 = vpop.f32.mrb[0].mxu0
        %3312 = vmatprep.mubr.bf16.mxu0 0
        %3313 = vmatmul.mubr.bf16.gmra.mrb[0].mxu0 %v3258
        %v3314 = vpop.f32.mrb[0].mxu0
        %v3315 = vadd.f32 0.0, %v3314
        %v3316 = vpop.f32.mrb[0].mxu0
        %v3317 = vpop.f32.mrb[0].mxu0
        %v3318 = vadd.f32 0.0, %v3317
        %v3319 = vpop.f32.mrb[0].mxu0
        %3320 = vmatprep.mubr.bf16.mxu0 0
        %3321 = vmatmul.mubr.bf16.gmra.mrb[0].mxu0 %v3261
        %v3322 = vpop.f32.mrb[0].mxu0
        %v3323 = vadd.f32 0.0, %v3322
        %v3324 = vpop.f32.mrb[0].mxu0
        %v3325 = vpop.f32.mrb[0].mxu0
        %v3326 = vadd.f32 0.0, %v3325
        %v3327 = vpop.f32.mrb[0].mxu0
        %3328 = vmatprep.mubr.bf16.mxu0 0
        %3329 = vmatmul.mubr.bf16.gmra.mrb[0].mxu0 %v3264
        %v3330 = vpop.f32.mrb[0].mxu0
        %v3331 = vadd.f32 0.0, %v3330
        %v3332 = vpop.f32.mrb[0].mxu0
        %v3333 = vpop.f32.mrb[0].mxu0
        %v3334 = vadd.f32 0.0, %v3333
        %v3335 = vpop.f32.mrb[0].mxu0
        %3336 = vmatprep.mubr.bf16.mxu0 0
        %3337 = vmatmul.mubr.bf16.gmra.mrb[0].mxu0 %v3267
        %v3338 = vpop.f32.mrb[0].mxu0
        %v3339 = vadd.f32 0.0, %v3338
        %v3340 = vpop.f32.mrb[0].mxu0
        %v3341 = vpop.f32.mrb[0].mxu0
        %v3342 = vadd.f32 0.0, %v3341
        %v3343 = vpop.f32.mrb[0].mxu0
        %3344 = vdwg.mxu0
        %v3345 = vadd.f32 %v3199, %v3307
        %v3346 = vadd.f32 %v3202, %v3310
        %v3347 = vadd.f32 %v3207, %v3315
        %v3348 = vadd.f32 %v3210, %v3318
        %v3349 = vadd.f32 %v3215, %v3323
        %v3350 = vadd.f32 %v3218, %v3326
        %v3351 = vadd.f32 %v3223, %v3331
        %v3352 = vadd.f32 %v3226, %v3334
        %v3353 = vadd.f32 %v3231, %v3339
        %v3354 = vadd.f32 %v3234, %v3342
        %v3355 = vld [vmem:[%s398 + $0x4] sm:$0xe]
        %v3356 = vld [vmem:[%s398 + $0x8] sm:$0xf]
        %v3357 = vld [vmem:[%s398 + $0xc] sm:$0xf]
        %v3358 = vld [vmem:[%s398 + $0x10] sm:$0xf]
        %v3359 = vld [vmem:[%s398 + $0x14] sm:$0xf]
        %v3360 = vld [vmem:[%s398 + $0x18] sm:$0xf]
        %v3361 = vld [vmem:[%s398 + $0x1c] sm:$0xf]
        %v3362 = vld [vmem:[%s398 + $0x20] sm:$0xf]
        %v3363 = vld [vmem:[%s398 + $0x24] sm:$0xf]
        %v3364 = vld [vmem:[%s398 + $0x28] sm:$0xf]
        %v3365 = vld [vmem:[%s398 + $0x2c] sm:$0x1]
        %s3366 = scalar_lea.vmem %s3, 84
        %v3367 = vld [vmem:[%s3366] sm:$0xf]
        %v3379 = vunpack.c.l.b16 %v3355
        %v3380 = vunpack.c.l.b16 %v3356
        %v3381 = vunpack.c.l.b16 %v3357
        %v3382 = vunpack.c.l.b16 %v3358
        %v3383 = vunpack.c.l.b16 %v3359
        %v3384 = vunpack.c.l.b16 %v3360
        %v3385 = vunpack.c.l.b16 %v3361
        %v3386 = vunpack.c.l.b16 %v3362
        %v3387 = vunpack.c.l.b16 %v3363
        %v3388 = vunpack.c.l.b16 %v3364
        %v3389 = vunpack.c.l.b16 %v3365
        %v3390 = vpack.c.b16 %v3380, %v3379
        %v3391 = vpack.c.b16 %v3382, %v3381
        %v3392 = vpack.c.b16 %v3384, %v3383
        %v3393 = vpack.c.b16 %v3386, %v3385
        %v3394 = vpack.c.b16 %v3388, %v3387
        %v3395 = vpack.c.b16 %v3389, %v3389
        %v3396 = vrot.slane %v3390, 1
        %v3397 = vrot.slane %v3391, 1
        %v3398 = vsel %vm693, %v3396, %v3397
        %v3399 = vrot.slane %v3392, 1
        %v3400 = vsel %vm693, %v3397, %v3399
        %v3401 = vrot.slane %v3393, 1
        %v3402 = vsel %vm693, %v3399, %v3401
        %v3403 = vrot.slane %v3394, 1
        %v3404 = vsel %vm693, %v3401, %v3403
        %v3405 = vrot.slane %v3395, 1
        %v3406 = vsel %vm693, %v3403, %v3405
        %v3408 = vsel %vm508, %v3398, 0
        %v3411 = vsel %vm508, %v3400, 0
        %v3414 = vsel %vm508, %v3402, 0
        %v3417 = vsel %vm508, %v3404, 0
        %v3420 = vsel %vm508, %v3406, 0
        %v3423 = vsel %vm524, %v3367, 0
        %3425 = vmatprep.subr.bf16.mxu0 0
        %3426 = vmatpush1.bf16.msra.mxu0 %v3423
        %3427 = vmatprep.subr.bf16.mxu0 0
        %3428 = vmatpush1.bf16.msra.mxu0 0
        %3429 = vmatprep.subr.bf16.mxu0 0
        %3430 = vmatpush1.bf16.msra.mxu0 0
        %3431 = vmatprep.subr.bf16.mxu0 0
        %3432 = vmatpush1.bf16.msra.mxu0 0
        %3433 = vmatprep.subr.bf16.mxu0 0
        %3434 = vmatpush1.bf16.msra.mxu0 0
        %3435 = vmatprep.subr.bf16.mxu0 0
        %3436 = vmatpush1.bf16.msra.mxu0 0
        %3437 = vmatprep.subr.bf16.mxu0 0
        %3438 = vmatpush1.bf16.msra.mxu0 0
        %3439 = vmatprep.subr.bf16.mxu0 0
        %3440 = vmatpush1.bf16.msra.mxu0 0
        %3441 = vmatprep.subr.bf16.mxu0 0
        %3442 = vmatpush1.bf16.msra.mxu0 0
        %3443 = vmatprep.subr.bf16.mxu0 0
        %3444 = vmatpush1.bf16.msra.mxu0 0
        %3445 = vmatprep.subr.bf16.mxu0 0
        %3446 = vmatpush1.bf16.msra.mxu0 0
        %3447 = vmatprep.subr.bf16.mxu0 0
        %3448 = vmatpush1.bf16.msra.mxu0 0
        %3449 = vmatprep.subr.bf16.mxu0 0
        %3450 = vmatpush1.bf16.msra.mxu0 0
        %3451 = vmatprep.subr.bf16.mxu0 0
        %3452 = vmatpush1.bf16.msra.mxu0 0
        %3453 = vmatprep.subr.bf16.mxu0 0
        %3454 = vmatpush1.bf16.msra.mxu0 0
        %3455 = vmatprep.subr.bf16.mxu0 0
        %3456 = vmatpush1.bf16.msra.mxu0 0
        %3457 = vmatprep.mubr.bf16.mxu0 0
        %3458 = vmatmul.mubr.bf16.gmra.mrb[0].mxu0 %v3408
        %v3459 = vpop.f32.mrb[0].mxu0
        %v3460 = vadd.f32 0.0, %v3459
        %v3461 = vpop.f32.mrb[0].mxu0
        %v3462 = vpop.f32.mrb[0].mxu0
        %v3463 = vadd.f32 0.0, %v3462
        %v3464 = vpop.f32.mrb[0].mxu0
        %3465 = vmatprep.mubr.bf16.mxu0 0
        %3466 = vmatmul.mubr.bf16.gmra.mrb[0].mxu0 %v3411
        %v3467 = vpop.f32.mrb[0].mxu0
        %v3468 = vadd.f32 0.0, %v3467
        %v3469 = vpop.f32.mrb[0].mxu0
        %v3470 = vpop.f32.mrb[0].mxu0
        %v3471 = vadd.f32 0.0, %v3470
        %v3472 = vpop.f32.mrb[0].mxu0
        %3473 = vmatprep.mubr.bf16.mxu0 0
        %3474 = vmatmul.mubr.bf16.gmra.mrb[0].mxu0 %v3414
        %v3475 = vpop.f32.mrb[0].mxu0
        %v3476 = vadd.f32 0.0, %v3475
        %v3477 = vpop.f32.mrb[0].mxu0
        %v3478 = vpop.f32.mrb[0].mxu0
        %v3479 = vadd.f32 0.0, %v3478
        %v3480 = vpop.f32.mrb[0].mxu0
        %3481 = vmatprep.mubr.bf16.mxu0 0
        %3482 = vmatmul.mubr.bf16.gmra.mrb[0].mxu0 %v3417
        %v3483 = vpop.f32.mrb[0].mxu0
        %v3484 = vadd.f32 0.0, %v3483
        %v3485 = vpop.f32.mrb[0].mxu0
        %v3486 = vpop.f32.mrb[0].mxu0
        %v3487 = vadd.f32 0.0, %v3486
        %v3488 = vpop.f32.mrb[0].mxu0
        %3489 = vmatprep.mubr.bf16.mxu0 0
        %3490 = vmatmul.mubr.bf16.gmra.mrb[0].mxu0 %v3420
        %v3491 = vpop.f32.mrb[0].mxu0
        %v3492 = vadd.f32 0.0, %v3491
        %v3493 = vpop.f32.mrb[0].mxu0
        %v3494 = vpop.f32.mrb[0].mxu0
        %v3495 = vadd.f32 0.0, %v3494
        %v3496 = vpop.f32.mrb[0].mxu0
        %3497 = vdwg.mxu0
        %v3498 = vadd.f32 %v3345, %v3460
        %v3499 = vadd.f32 %v3346, %v3463
        %v3500 = vadd.f32 %v3347, %v3468
        %v3501 = vadd.f32 %v3348, %v3471
        %v3502 = vadd.f32 %v3349, %v3476
        %v3503 = vadd.f32 %v3350, %v3479
        %v3504 = vadd.f32 %v3351, %v3484
        %v3505 = vadd.f32 %v3352, %v3487
        %v3506 = vadd.f32 %v3353, %v3492
        %v3507 = vadd.f32 %v3354, %v3495
        %v3508 = vld [vmem:[%s398 + $0x2c] sm:$0x3]
        %s3509 = scalar_lea.vmem %s3, 88
        %v3510 = vld [vmem:[%s3509] sm:$0xf]
        %v3512 = vunpack.c.l.b16 %v3508
        %v3513 = vpack.c.b16 %v3512, %v3512
        %v3515 = vshrl.u32 %v3390, 16
        %v3517 = vrot.slane %v3515, 1
        %v3518 = vshll.u32 %v3390, 16
        %v3520 = vrot.slane %v3518, 2
        %v3521 = vor.u32 %v3517, %v3520
        %v3523 = vshrl.u32 %v3391, 16
        %v3525 = vrot.slane %v3523, 1
        %v3526 = vshll.u32 %v3391, 16
        %v3528 = vrot.slane %v3526, 2
        %v3529 = vor.u32 %v3525, %v3528
        %v3530 = vsel %vm965, %v3521, %v3529
        %v3532 = vshrl.u32 %v3392, 16
        %v3534 = vrot.slane %v3532, 1
        %v3535 = vshll.u32 %v3392, 16
        %v3537 = vrot.slane %v3535, 2
        %v3538 = vor.u32 %v3534, %v3537
        %v3539 = vsel %vm965, %v3529, %v3538
        %v3541 = vshrl.u32 %v3393, 16
        %v3543 = vrot.slane %v3541, 1
        %v3544 = vshll.u32 %v3393, 16
        %v3546 = vrot.slane %v3544, 2
        %v3547 = vor.u32 %v3543, %v3546
        %v3548 = vsel %vm965, %v3538, %v3547
        %v3550 = vshrl.u32 %v3394, 16
        %v3552 = vrot.slane %v3550, 1
        %v3553 = vshll.u32 %v3394, 16
        %v3555 = vrot.slane %v3553, 2
        %v3556 = vor.u32 %v3552, %v3555
        %v3557 = vsel %vm965, %v3547, %v3556
        %v3559 = vshrl.u32 %v3513, 16
        %v3561 = vrot.slane %v3559, 1
        %v3562 = vshll.u32 %v3513, 16
        %v3564 = vrot.slane %v3562, 2
        %v3565 = vor.u32 %v3561, %v3564
        %v3566 = vsel %vm965, %v3556, %v3565
        %v3568 = vsel %vm508, %v3530, 0
        %v3571 = vsel %vm508, %v3539, 0
        %v3574 = vsel %vm508, %v3548, 0
        %v3577 = vsel %vm508, %v3557, 0
        %v3580 = vsel %vm508, %v3566, 0
        %v3583 = vsel %vm524, %v3510, 0
        %3585 = vmatprep.subr.bf16.mxu0 0
        %3586 = vmatpush1.bf16.msra.mxu0 %v3583
        %3587 = vmatprep.subr.bf16.mxu0 0
        %3588 = vmatpush1.bf16.msra.mxu0 0
        %3589 = vmatprep.subr.bf16.mxu0 0
        %3590 = vmatpush1.bf16.msra.mxu0 0
        %3591 = vmatprep.subr.bf16.mxu0 0
        %3592 = vmatpush1.bf16.msra.mxu0 0
        %3593 = vmatprep.subr.bf16.mxu0 0
        %3594 = vmatpush1.bf16.msra.mxu0 0
        %3595 = vmatprep.subr.bf16.mxu0 0
        %3596 = vmatpush1.bf16.msra.mxu0 0
        %3597 = vmatprep.subr.bf16.mxu0 0
        %3598 = vmatpush1.bf16.msra.mxu0 0
        %3599 = vmatprep.subr.bf16.mxu0 0
        %3600 = vmatpush1.bf16.msra.mxu0 0
        %3601 = vmatprep.subr.bf16.mxu0 0
        %3602 = vmatpush1.bf16.msra.mxu0 0
        %3603 = vmatprep.subr.bf16.mxu0 0
        %3604 = vmatpush1.bf16.msra.mxu0 0
        %3605 = vmatprep.subr.bf16.mxu0 0
        %3606 = vmatpush1.bf16.msra.mxu0 0
        %3607 = vmatprep.subr.bf16.mxu0 0
        %3608 = vmatpush1.bf16.msra.mxu0 0
        %3609 = vmatprep.subr.bf16.mxu0 0
        %3610 = vmatpush1.bf16.msra.mxu0 0
        %3611 = vmatprep.subr.bf16.mxu0 0
        %3612 = vmatpush1.bf16.msra.mxu0 0
        %3613 = vmatprep.subr.bf16.mxu0 0
        %3614 = vmatpush1.bf16.msra.mxu0 0
        %3615 = vmatprep.subr.bf16.mxu0 0
        %3616 = vmatpush1.bf16.msra.mxu0 0
        %3617 = vmatprep.mubr.bf16.mxu0 0
        %3618 = vmatmul.mubr.bf16.gmra.mrb[0].mxu0 %v3568
        %v3619 = vpop.f32.mrb[0].mxu0
        %v3620 = vadd.f32 0.0, %v3619
        %v3621 = vpop.f32.mrb[0].mxu0
        %v3622 = vpop.f32.mrb[0].mxu0
        %v3623 = vadd.f32 0.0, %v3622
        %v3624 = vpop.f32.mrb[0].mxu0
        %3625 = vmatprep.mubr.bf16.mxu0 0
        %3626 = vmatmul.mubr.bf16.gmra.mrb[0].mxu0 %v3571
        %v3627 = vpop.f32.mrb[0].mxu0
        %v3628 = vadd.f32 0.0, %v3627
        %v3629 = vpop.f32.mrb[0].mxu0
        %v3630 = vpop.f32.mrb[0].mxu0
        %v3631 = vadd.f32 0.0, %v3630
        %v3632 = vpop.f32.mrb[0].mxu0
        %3633 = vmatprep.mubr.bf16.mxu0 0
        %3634 = vmatmul.mubr.bf16.gmra.mrb[0].mxu0 %v3574
        %v3635 = vpop.f32.mrb[0].mxu0
        %v3636 = vadd.f32 0.0, %v3635
        %v3637 = vpop.f32.mrb[0].mxu0
        %v3638 = vpop.f32.mrb[0].mxu0
        %v3639 = vadd.f32 0.0, %v3638
        %v3640 = vpop.f32.mrb[0].mxu0
        %3641 = vmatprep.mubr.bf16.mxu0 0
        %3642 = vmatmul.mubr.bf16.gmra.mrb[0].mxu0 %v3577
        %v3643 = vpop.f32.mrb[0].mxu0
        %v3644 = vadd.f32 0.0, %v3643
        %v3645 = vpop.f32.mrb[0].mxu0
        %v3646 = vpop.f32.mrb[0].mxu0
        %v3647 = vadd.f32 0.0, %v3646
        %v3648 = vpop.f32.mrb[0].mxu0
        %3649 = vmatprep.mubr.bf16.mxu0 0
        %3650 = vmatmul.mubr.bf16.gmra.mrb[0].mxu0 %v3580
        %v3651 = vpop.f32.mrb[0].mxu0
        %v3652 = vadd.f32 0.0, %v3651
        %v3653 = vpop.f32.mrb[0].mxu0
        %v3654 = vpop.f32.mrb[0].mxu0
        %v3655 = vadd.f32 0.0, %v3654
        %v3656 = vpop.f32.mrb[0].mxu0
        %3657 = vdwg.mxu0
        %v3658 = vadd.f32 %v3498, %v3620
        %v3659 = vadd.f32 %v3499, %v3623
        %v3660 = vadd.f32 %v3500, %v3628
        %v3661 = vadd.f32 %v3501, %v3631
        %v3662 = vadd.f32 %v3502, %v3636
        %v3663 = vadd.f32 %v3503, %v3639
        %v3664 = vadd.f32 %v3504, %v3644
        %v3665 = vadd.f32 %v3505, %v3647
        %v3666 = vadd.f32 %v3506, %v3652
        %v3667 = vadd.f32 %v3507, %v3655
        %v3668 = vld [vmem:[%s398 + $0x4] sm:$0xc]
        %s3669 = scalar_lea.vmem %s3, 92
        %v3670 = vld [vmem:[%s3669] sm:$0xf]
        %v3672 = vunpack.c.l.b16 %v3668
        %v3673 = vpack.c.b16 %v3380, %v3672
        %v3674 = vrot.slane %v3673, 2
        %v3675 = vrot.slane %v3391, 2
        %v3676 = vsel %vm1126, %v3674, %v3675
        %v3677 = vrot.slane %v3392, 2
        %v3678 = vsel %vm1126, %v3675, %v3677
        %v3679 = vrot.slane %v3393, 2
        %v3680 = vsel %vm1126, %v3677, %v3679
        %v3681 = vrot.slane %v3394, 2
        %v3682 = vsel %vm1126, %v3679, %v3681
        %v3683 = vrot.slane %v3513, 2
        %v3684 = vsel %vm1126, %v3681, %v3683
        %v3686 = vsel %vm508, %v3676, 0
        %v3689 = vsel %vm508, %v3678, 0
        %v3692 = vsel %vm508, %v3680, 0
        %v3695 = vsel %vm508, %v3682, 0
        %v3698 = vsel %vm508, %v3684, 0
        %v3701 = vsel %vm524, %v3670, 0
        %3703 = vmatprep.subr.bf16.mxu0 0
        %3704 = vmatpush1.bf16.msra.mxu0 %v3701
        %3705 = vmatprep.subr.bf16.mxu0 0
        %3706 = vmatpush1.bf16.msra.mxu0 0
        %3707 = vmatprep.subr.bf16.mxu0 0
        %3708 = vmatpush1.bf16.msra.mxu0 0
        %3709 = vmatprep.subr.bf16.mxu0 0
        %3710 = vmatpush1.bf16.msra.mxu0 0
        %3711 = vmatprep.subr.bf16.mxu0 0
        %3712 = vmatpush1.bf16.msra.mxu0 0
        %3713 = vmatprep.subr.bf16.mxu0 0
        %3714 = vmatpush1.bf16.msra.mxu0 0
        %3715 = vmatprep.subr.bf16.mxu0 0
        %3716 = vmatpush1.bf16.msra.mxu0 0
        %3717 = vmatprep.subr.bf16.mxu0 0
        %3718 = vmatpush1.bf16.msra.mxu0 0
        %3719 = vmatprep.subr.bf16.mxu0 0
        %3720 = vmatpush1.bf16.msra.mxu0 0
        %3721 = vmatprep.subr.bf16.mxu0 0
        %3722 = vmatpush1.bf16.msra.mxu0 0
        %3723 = vmatprep.subr.bf16.mxu0 0
        %3724 = vmatpush1.bf16.msra.mxu0 0
        %3725 = vmatprep.subr.bf16.mxu0 0
        %3726 = vmatpush1.bf16.msra.mxu0 0
        %3727 = vmatprep.subr.bf16.mxu0 0
        %3728 = vmatpush1.bf16.msra.mxu0 0
        %3729 = vmatprep.subr.bf16.mxu0 0
        %3730 = vmatpush1.bf16.msra.mxu0 0
        %3731 = vmatprep.subr.bf16.mxu0 0
        %3732 = vmatpush1.bf16.msra.mxu0 0
        %3733 = vmatprep.subr.bf16.mxu0 0
        %3734 = vmatpush1.bf16.msra.mxu0 0
        %3735 = vmatprep.mubr.bf16.mxu0 0
        %3736 = vmatmul.mubr.bf16.gmra.mrb[0].mxu0 %v3686
        %v3737 = vpop.f32.mrb[0].mxu0
        %v3738 = vadd.f32 0.0, %v3737
        %v3739 = vpop.f32.mrb[0].mxu0
        %v3740 = vpop.f32.mrb[0].mxu0
        %v3741 = vadd.f32 0.0, %v3740
        %v3742 = vpop.f32.mrb[0].mxu0
        %3743 = vmatprep.mubr.bf16.mxu0 0
        %3744 = vmatmul.mubr.bf16.gmra.mrb[0].mxu0 %v3689
        %v3745 = vpop.f32.mrb[0].mxu0
        %v3746 = vadd.f32 0.0, %v3745
        %v3747 = vpop.f32.mrb[0].mxu0
        %v3748 = vpop.f32.mrb[0].mxu0
        %v3749 = vadd.f32 0.0, %v3748
        %v3750 = vpop.f32.mrb[0].mxu0
        %3751 = vmatprep.mubr.bf16.mxu0 0
        %3752 = vmatmul.mubr.bf16.gmra.mrb[0].mxu0 %v3692
        %v3753 = vpop.f32.mrb[0].mxu0
        %v3754 = vadd.f32 0.0, %v3753
        %v3755 = vpop.f32.mrb[0].mxu0
        %v3756 = vpop.f32.mrb[0].mxu0
        %v3757 = vadd.f32 0.0, %v3756
        %v3758 = vpop.f32.mrb[0].mxu0
        %3759 = vmatprep.mubr.bf16.mxu0 0
        %3760 = vmatmul.mubr.bf16.gmra.mrb[0].mxu0 %v3695
        %v3761 = vpop.f32.mrb[0].mxu0
        %v3762 = vadd.f32 0.0, %v3761
        %v3763 = vpop.f32.mrb[0].mxu0
        %v3764 = vpop.f32.mrb[0].mxu0
        %v3765 = vadd.f32 0.0, %v3764
        %v3766 = vpop.f32.mrb[0].mxu0
        %3767 = vmatprep.mubr.bf16.mxu0 0
        %3768 = vmatmul.mubr.bf16.gmra.mrb[0].mxu0 %v3698
        %v3769 = vpop.f32.mrb[0].mxu0
        %v3770 = vadd.f32 0.0, %v3769
        %v3771 = vpop.f32.mrb[0].mxu0
        %v3772 = vpop.f32.mrb[0].mxu0
        %v3773 = vadd.f32 0.0, %v3772
        %v3774 = vpop.f32.mrb[0].mxu0
        %3775 = vdwg.mxu0
        %v3776 = vadd.f32 %v3658, %v3738
        %v3777 = vadd.f32 %v3659, %v3741
        %v3778 = vadd.f32 %v3660, %v3746
        %v3779 = vadd.f32 %v3661, %v3749
        %v3780 = vadd.f32 %v3662, %v3754
        %v3781 = vadd.f32 %v3663, %v3757
        %v3782 = vadd.f32 %v3664, %v3762
        %v3783 = vadd.f32 %v3665, %v3765
        %v3784 = vadd.f32 %v3666, %v3770
        %v3785 = vadd.f32 %v3667, %v3773
        %v3786 = vld [vmem:[%s398 + $0x8] sm:$0xc]
        %v3787 = vld [vmem:[%s398 + $0xc] sm:$0xf]
        %v3788 = vld [vmem:[%s398 + $0x10] sm:$0xf]
        %v3789 = vld [vmem:[%s398 + $0x14] sm:$0xf]
        %v3790 = vld [vmem:[%s398 + $0x18] sm:$0xf]
        %v3791 = vld [vmem:[%s398 + $0x1c] sm:$0xf]
        %v3792 = vld [vmem:[%s398 + $0x20] sm:$0xf]
        %v3793 = vld [vmem:[%s398 + $0x24] sm:$0xf]
        %v3794 = vld [vmem:[%s398 + $0x28] sm:$0xf]
        %v3795 = vld [vmem:[%s398 + $0x2c] sm:$0xf]
        %v3796 = vld [vmem:[%s398 + $0x30] sm:$0x3]
        %s3797 = scalar_lea.vmem %s3, 96
        %v3798 = vld [vmem:[%s3797] sm:$0xf]
        %v3810 = vunpack.c.l.b16 %v3786
        %v3811 = vunpack.c.l.b16 %v3787
        %v3812 = vunpack.c.l.b16 %v3788
        %v3813 = vunpack.c.l.b16 %v3789
        %v3814 = vunpack.c.l.b16 %v3790
        %v3815 = vunpack.c.l.b16 %v3791
        %v3816 = vunpack.c.l.b16 %v3792
        %v3817 = vunpack.c.l.b16 %v3793
        %v3818 = vunpack.c.l.b16 %v3794
        %v3819 = vunpack.c.l.b16 %v3795
        %v3820 = vunpack.c.l.b16 %v3796
        %v3821 = vpack.c.b16 %v3811, %v3810
        %v3822 = vpack.c.b16 %v3813, %v3812
        %v3823 = vpack.c.b16 %v3815, %v3814
        %v3824 = vpack.c.b16 %v3817, %v3816
        %v3825 = vpack.c.b16 %v3819, %v3818
        %v3826 = vpack.c.b16 %v3820, %v3820
        %v3827 = vrot.slane %v3821, 2
        %v3828 = vrot.slane %v3822, 2
        %v3829 = vsel %vm1126, %v3827, %v3828
        %v3830 = vrot.slane %v3823, 2
        %v3831 = vsel %vm1126, %v3828, %v3830
        %v3832 = vrot.slane %v3824, 2
        %v3833 = vsel %vm1126, %v3830, %v3832
        %v3834 = vrot.slane %v3825, 2
        %v3835 = vsel %vm1126, %v3832, %v3834
        %v3836 = vrot.slane %v3826, 2
        %v3837 = vsel %vm1126, %v3834, %v3836
        %v3839 = vsel %vm508, %v3829, 0
        %v3842 = vsel %vm508, %v3831, 0
        %v3845 = vsel %vm508, %v3833, 0
        %v3848 = vsel %vm508, %v3835, 0
        %v3851 = vsel %vm508, %v3837, 0
        %v3854 = vsel %vm524, %v3798, 0
        %3856 = vmatprep.subr.bf16.mxu0 0
        %3857 = vmatpush1.bf16.msra.mxu0 %v3854
        %3858 = vmatprep.subr.bf16.mxu0 0
        %3859 = vmatpush1.bf16.msra.mxu0 0
        %3860 = vmatprep.subr.bf16.mxu0 0
        %3861 = vmatpush1.bf16.msra.mxu0 0
        %3862 = vmatprep.subr.bf16.mxu0 0
        %3863 = vmatpush1.bf16.msra.mxu0 0
        %3864 = vmatprep.subr.bf16.mxu0 0
        %3865 = vmatpush1.bf16.msra.mxu0 0
        %3866 = vmatprep.subr.bf16.mxu0 0
        %3867 = vmatpush1.bf16.msra.mxu0 0
        %3868 = vmatprep.subr.bf16.mxu0 0
        %3869 = vmatpush1.bf16.msra.mxu0 0
        %3870 = vmatprep.subr.bf16.mxu0 0
        %3871 = vmatpush1.bf16.msra.mxu0 0
        %3872 = vmatprep.subr.bf16.mxu0 0
        %3873 = vmatpush1.bf16.msra.mxu0 0
        %3874 = vmatprep.subr.bf16.mxu0 0
        %3875 = vmatpush1.bf16.msra.mxu0 0
        %3876 = vmatprep.subr.bf16.mxu0 0
        %3877 = vmatpush1.bf16.msra.mxu0 0
        %3878 = vmatprep.subr.bf16.mxu0 0
        %3879 = vmatpush1.bf16.msra.mxu0 0
        %3880 = vmatprep.subr.bf16.mxu0 0
        %3881 = vmatpush1.bf16.msra.mxu0 0
        %3882 = vmatprep.subr.bf16.mxu0 0
        %3883 = vmatpush1.bf16.msra.mxu0 0
        %3884 = vmatprep.subr.bf16.mxu0 0
        %3885 = vmatpush1.bf16.msra.mxu0 0
        %3886 = vmatprep.subr.bf16.mxu0 0
        %3887 = vmatpush1.bf16.msra.mxu0 0
        %3888 = vmatprep.mubr.bf16.mxu0 0
        %3889 = vmatmul.mubr.bf16.gmra.mrb[0].mxu0 %v3839
        %v3890 = vpop.f32.mrb[0].mxu0
        %v3891 = vadd.f32 0.0, %v3890
        %v3892 = vpop.f32.mrb[0].mxu0
        %v3893 = vpop.f32.mrb[0].mxu0
        %v3894 = vadd.f32 0.0, %v3893
        %v3895 = vpop.f32.mrb[0].mxu0
        %3896 = vmatprep.mubr.bf16.mxu0 0
        %3897 = vmatmul.mubr.bf16.gmra.mrb[0].mxu0 %v3842
        %v3898 = vpop.f32.mrb[0].mxu0
        %v3899 = vadd.f32 0.0, %v3898
        %v3900 = vpop.f32.mrb[0].mxu0
        %v3901 = vpop.f32.mrb[0].mxu0
        %v3902 = vadd.f32 0.0, %v3901
        %v3903 = vpop.f32.mrb[0].mxu0
        %3904 = vmatprep.mubr.bf16.mxu0 0
        %3905 = vmatmul.mubr.bf16.gmra.mrb[0].mxu0 %v3845
        %v3906 = vpop.f32.mrb[0].mxu0
        %v3907 = vadd.f32 0.0, %v3906
        %v3908 = vpop.f32.mrb[0].mxu0
        %v3909 = vpop.f32.mrb[0].mxu0
        %v3910 = vadd.f32 0.0, %v3909
        %v3911 = vpop.f32.mrb[0].mxu0
        %3912 = vmatprep.mubr.bf16.mxu0 0
        %3913 = vmatmul.mubr.bf16.gmra.mrb[0].mxu0 %v3848
        %v3914 = vpop.f32.mrb[0].mxu0
        %v3915 = vadd.f32 0.0, %v3914
        %v3916 = vpop.f32.mrb[0].mxu0
        %v3917 = vpop.f32.mrb[0].mxu0
        %v3918 = vadd.f32 0.0, %v3917
        %v3919 = vpop.f32.mrb[0].mxu0
        %3920 = vmatprep.mubr.bf16.mxu0 0
        %3921 = vmatmul.mubr.bf16.gmra.mrb[0].mxu0 %v3851
        %v3922 = vpop.f32.mrb[0].mxu0
        %v3923 = vadd.f32 0.0, %v3922
        %v3924 = vpop.f32.mrb[0].mxu0
        %v3925 = vpop.f32.mrb[0].mxu0
        %v3926 = vadd.f32 0.0, %v3925
        %v3927 = vpop.f32.mrb[0].mxu0
        %3928 = vdwg.mxu0
        %v3929 = vadd.f32 %v3776, %v3891
        %v3930 = vadd.f32 %v3777, %v3894
        %v3931 = vadd.f32 %v3778, %v3899
        %v3932 = vadd.f32 %v3779, %v3902
        %v3933 = vadd.f32 %v3780, %v3907
        %v3934 = vadd.f32 %v3781, %v3910
        %v3935 = vadd.f32 %v3782, %v3915
        %v3936 = vadd.f32 %v3783, %v3918
        %v3937 = vadd.f32 %v3784, %v3923
        %v3938 = vadd.f32 %v3785, %v3926
        %v3939 = vld [vmem:[%s398 + $0x30] sm:$0x7]
        %s3940 = scalar_lea.vmem %s3, 100
        %v3941 = vld [vmem:[%s3940] sm:$0xf]
        %v3943 = vunpack.c.l.b16 %v3939
        %v3944 = vpack.c.b16 %v3943, %v3943
        %v3946 = vshrl.u32 %v3821, 16
        %v3948 = vrot.slane %v3946, 2
        %v3949 = vshll.u32 %v3821, 16
        %v3951 = vrot.slane %v3949, 3
        %v3952 = vor.u32 %v3948, %v3951
        %v3954 = vshrl.u32 %v3822, 16
        %v3956 = vrot.slane %v3954, 2
        %v3957 = vshll.u32 %v3822, 16
        %v3959 = vrot.slane %v3957, 3
        %v3960 = vor.u32 %v3956, %v3959
        %v3961 = vsel %vm1398, %v3952, %v3960
        %v3963 = vshrl.u32 %v3823, 16
        %v3965 = vrot.slane %v3963, 2
        %v3966 = vshll.u32 %v3823, 16
        %v3968 = vrot.slane %v3966, 3
        %v3969 = vor.u32 %v3965, %v3968
        %v3970 = vsel %vm1398, %v3960, %v3969
        %v3972 = vshrl.u32 %v3824, 16
        %v3974 = vrot.slane %v3972, 2
        %v3975 = vshll.u32 %v3824, 16
        %v3977 = vrot.slane %v3975, 3
        %v3978 = vor.u32 %v3974, %v3977
        %v3979 = vsel %vm1398, %v3969, %v3978
        %v3981 = vshrl.u32 %v3825, 16
        %v3983 = vrot.slane %v3981, 2
        %v3984 = vshll.u32 %v3825, 16
        %v3986 = vrot.slane %v3984, 3
        %v3987 = vor.u32 %v3983, %v3986
        %v3988 = vsel %vm1398, %v3978, %v3987
        %v3990 = vshrl.u32 %v3944, 16
        %v3992 = vrot.slane %v3990, 2
        %v3993 = vshll.u32 %v3944, 16
        %v3995 = vrot.slane %v3993, 3
        %v3996 = vor.u32 %v3992, %v3995
        %v3997 = vsel %vm1398, %v3987, %v3996
        %v3999 = vsel %vm508, %v3961, 0
        %v4002 = vsel %vm508, %v3970, 0
        %v4005 = vsel %vm508, %v3979, 0
        %v4008 = vsel %vm508, %v3988, 0
        %v4011 = vsel %vm508, %v3997, 0
        %v4014 = vsel %vm524, %v3941, 0
        %4016 = vmatprep.subr.bf16.mxu0 0
        %4017 = vmatpush1.bf16.msra.mxu0 %v4014
        %4018 = vmatprep.subr.bf16.mxu0 0
        %4019 = vmatpush1.bf16.msra.mxu0 0
        %4020 = vmatprep.subr.bf16.mxu0 0
        %4021 = vmatpush1.bf16.msra.mxu0 0
        %4022 = vmatprep.subr.bf16.mxu0 0
        %4023 = vmatpush1.bf16.msra.mxu0 0
        %4024 = vmatprep.subr.bf16.mxu0 0
        %4025 = vmatpush1.bf16.msra.mxu0 0
        %4026 = vmatprep.subr.bf16.mxu0 0
        %4027 = vmatpush1.bf16.msra.mxu0 0
        %4028 = vmatprep.subr.bf16.mxu0 0
        %4029 = vmatpush1.bf16.msra.mxu0 0
        %4030 = vmatprep.subr.bf16.mxu0 0
        %4031 = vmatpush1.bf16.msra.mxu0 0
        %4032 = vmatprep.subr.bf16.mxu0 0
        %4033 = vmatpush1.bf16.msra.mxu0 0
        %4034 = vmatprep.subr.bf16.mxu0 0
        %4035 = vmatpush1.bf16.msra.mxu0 0
        %4036 = vmatprep.subr.bf16.mxu0 0
        %4037 = vmatpush1.bf16.msra.mxu0 0
        %4038 = vmatprep.subr.bf16.mxu0 0
        %4039 = vmatpush1.bf16.msra.mxu0 0
        %4040 = vmatprep.subr.bf16.mxu0 0
        %4041 = vmatpush1.bf16.msra.mxu0 0
        %4042 = vmatprep.subr.bf16.mxu0 0
        %4043 = vmatpush1.bf16.msra.mxu0 0
        %4044 = vmatprep.subr.bf16.mxu0 0
        %4045 = vmatpush1.bf16.msra.mxu0 0
        %4046 = vmatprep.subr.bf16.mxu0 0
        %4047 = vmatpush1.bf16.msra.mxu0 0
        %4048 = vmatprep.mubr.bf16.mxu0 0
        %4049 = vmatmul.mubr.bf16.gmra.mrb[0].mxu0 %v3999
        %v4050 = vpop.f32.mrb[0].mxu0
        %v4051 = vadd.f32 0.0, %v4050
        %v4052 = vpop.f32.mrb[0].mxu0
        %v4053 = vpop.f32.mrb[0].mxu0
        %v4054 = vadd.f32 0.0, %v4053
        %v4055 = vpop.f32.mrb[0].mxu0
        %4056 = vmatprep.mubr.bf16.mxu0 0
        %4057 = vmatmul.mubr.bf16.gmra.mrb[0].mxu0 %v4002
        %v4058 = vpop.f32.mrb[0].mxu0
        %v4059 = vadd.f32 0.0, %v4058
        %v4060 = vpop.f32.mrb[0].mxu0
        %v4061 = vpop.f32.mrb[0].mxu0
        %v4062 = vadd.f32 0.0, %v4061
        %v4063 = vpop.f32.mrb[0].mxu0
        %4064 = vmatprep.mubr.bf16.mxu0 0
        %4065 = vmatmul.mubr.bf16.gmra.mrb[0].mxu0 %v4005
        %v4066 = vpop.f32.mrb[0].mxu0
        %v4067 = vadd.f32 0.0, %v4066
        %v4068 = vpop.f32.mrb[0].mxu0
        %v4069 = vpop.f32.mrb[0].mxu0
        %v4070 = vadd.f32 0.0, %v4069
        %v4071 = vpop.f32.mrb[0].mxu0
        %4072 = vmatprep.mubr.bf16.mxu0 0
        %4073 = vmatmul.mubr.bf16.gmra.mrb[0].mxu0 %v4008
        %v4074 = vpop.f32.mrb[0].mxu0
        %v4075 = vadd.f32 0.0, %v4074
        %v4076 = vpop.f32.mrb[0].mxu0
        %v4077 = vpop.f32.mrb[0].mxu0
        %v4078 = vadd.f32 0.0, %v4077
        %v4079 = vpop.f32.mrb[0].mxu0
        %4080 = vmatprep.mubr.bf16.mxu0 0
        %4081 = vmatmul.mubr.bf16.gmra.mrb[0].mxu0 %v4011
        %v4082 = vpop.f32.mrb[0].mxu0
        %v4083 = vadd.f32 0.0, %v4082
        %v4084 = vpop.f32.mrb[0].mxu0
        %v4085 = vpop.f32.mrb[0].mxu0
        %v4086 = vadd.f32 0.0, %v4085
        %v4087 = vpop.f32.mrb[0].mxu0
        %4088 = vdwg.mxu0
        %v4089 = vadd.f32 %v3929, %v4051
        %v4090 = vadd.f32 %v3930, %v4054
        %v4091 = vadd.f32 %v3931, %v4059
        %v4092 = vadd.f32 %v3932, %v4062
        %v4093 = vadd.f32 %v3933, %v4067
        %v4094 = vadd.f32 %v3934, %v4070
        %v4095 = vadd.f32 %v3935, %v4075
        %v4096 = vadd.f32 %v3936, %v4078
        %v4097 = vadd.f32 %v3937, %v4083
        %v4098 = vadd.f32 %v3938, %v4086
        %v4099 = vld [vmem:[%s398 + $0x8] sm:$0x8]
        %s4100 = scalar_lea.vmem %s3, 104
        %v4101 = vld [vmem:[%s4100] sm:$0xf]
        %v4103 = vunpack.c.l.b16 %v4099
        %v4104 = vpack.c.b16 %v3811, %v4103
        %v4105 = vrot.slane %v4104, 3
        %v4106 = vrot.slane %v3822, 3
        %v4107 = vsel %vm1559, %v4105, %v4106
        %v4108 = vrot.slane %v3823, 3
        %v4109 = vsel %vm1559, %v4106, %v4108
        %v4110 = vrot.slane %v3824, 3
        %v4111 = vsel %vm1559, %v4108, %v4110
        %v4112 = vrot.slane %v3825, 3
        %v4113 = vsel %vm1559, %v4110, %v4112
        %v4114 = vrot.slane %v3944, 3
        %v4115 = vsel %vm1559, %v4112, %v4114
        %v4117 = vsel %vm508, %v4107, 0
        %v4120 = vsel %vm508, %v4109, 0
        %v4123 = vsel %vm508, %v4111, 0
        %v4126 = vsel %vm508, %v4113, 0
        %v4129 = vsel %vm508, %v4115, 0
        %v4132 = vsel %vm524, %v4101, 0
        %4134 = vmatprep.subr.bf16.mxu0 0
        %4135 = vmatpush1.bf16.msra.mxu0 %v4132
        %4136 = vmatprep.subr.bf16.mxu0 0
        %4137 = vmatpush1.bf16.msra.mxu0 0
        %4138 = vmatprep.subr.bf16.mxu0 0
        %4139 = vmatpush1.bf16.msra.mxu0 0
        %4140 = vmatprep.subr.bf16.mxu0 0
        %4141 = vmatpush1.bf16.msra.mxu0 0
        %4142 = vmatprep.subr.bf16.mxu0 0
        %4143 = vmatpush1.bf16.msra.mxu0 0
        %4144 = vmatprep.subr.bf16.mxu0 0
        %4145 = vmatpush1.bf16.msra.mxu0 0
        %4146 = vmatprep.subr.bf16.mxu0 0
        %4147 = vmatpush1.bf16.msra.mxu0 0
        %4148 = vmatprep.subr.bf16.mxu0 0
        %4149 = vmatpush1.bf16.msra.mxu0 0
        %4150 = vmatprep.subr.bf16.mxu0 0
        %4151 = vmatpush1.bf16.msra.mxu0 0
        %4152 = vmatprep.subr.bf16.mxu0 0
        %4153 = vmatpush1.bf16.msra.mxu0 0
        %4154 = vmatprep.subr.bf16.mxu0 0
        %4155 = vmatpush1.bf16.msra.mxu0 0
        %4156 = vmatprep.subr.bf16.mxu0 0
        %4157 = vmatpush1.bf16.msra.mxu0 0
        %4158 = vmatprep.subr.bf16.mxu0 0
        %4159 = vmatpush1.bf16.msra.mxu0 0
        %4160 = vmatprep.subr.bf16.mxu0 0
        %4161 = vmatpush1.bf16.msra.mxu0 0
        %4162 = vmatprep.subr.bf16.mxu0 0
        %4163 = vmatpush1.bf16.msra.mxu0 0
        %4164 = vmatprep.subr.bf16.mxu0 0
        %4165 = vmatpush1.bf16.msra.mxu0 0
        %4166 = vmatprep.mubr.bf16.mxu0 0
        %4167 = vmatmul.mubr.bf16.gmra.mrb[0].mxu0 %v4117
        %v4168 = vpop.f32.mrb[0].mxu0
        %v4169 = vadd.f32 0.0, %v4168
        %v4170 = vpop.f32.mrb[0].mxu0
        %v4171 = vpop.f32.mrb[0].mxu0
        %v4172 = vadd.f32 0.0, %v4171
        %v4173 = vpop.f32.mrb[0].mxu0
        %4174 = vmatprep.mubr.bf16.mxu0 0
        %4175 = vmatmul.mubr.bf16.gmra.mrb[0].mxu0 %v4120
        %v4176 = vpop.f32.mrb[0].mxu0
        %v4177 = vadd.f32 0.0, %v4176
        %v4178 = vpop.f32.mrb[0].mxu0
        %v4179 = vpop.f32.mrb[0].mxu0
        %v4180 = vadd.f32 0.0, %v4179
        %v4181 = vpop.f32.mrb[0].mxu0
        %4182 = vmatprep.mubr.bf16.mxu0 0
        %4183 = vmatmul.mubr.bf16.gmra.mrb[0].mxu0 %v4123
        %v4184 = vpop.f32.mrb[0].mxu0
        %v4185 = vadd.f32 0.0, %v4184
        %v4186 = vpop.f32.mrb[0].mxu0
        %v4187 = vpop.f32.mrb[0].mxu0
        %v4188 = vadd.f32 0.0, %v4187
        %v4189 = vpop.f32.mrb[0].mxu0
        %4190 = vmatprep.mubr.bf16.mxu0 0
        %4191 = vmatmul.mubr.bf16.gmra.mrb[0].mxu0 %v4126
        %v4192 = vpop.f32.mrb[0].mxu0
        %v4193 = vadd.f32 0.0, %v4192
        %v4194 = vpop.f32.mrb[0].mxu0
        %v4195 = vpop.f32.mrb[0].mxu0
        %v4196 = vadd.f32 0.0, %v4195
        %v4197 = vpop.f32.mrb[0].mxu0
        %4198 = vmatprep.mubr.bf16.mxu0 0
        %4199 = vmatmul.mubr.bf16.gmra.mrb[0].mxu0 %v4129
        %v4200 = vpop.f32.mrb[0].mxu0
        %v4201 = vadd.f32 0.0, %v4200
        %v4202 = vpop.f32.mrb[0].mxu0
        %v4203 = vpop.f32.mrb[0].mxu0
        %v4204 = vadd.f32 0.0, %v4203
        %v4205 = vpop.f32.mrb[0].mxu0
        %4206 = vdwg.mxu0
        %v4207 = vadd.f32 %v4089, %v4169
        %v4208 = vadd.f32 %v4090, %v4172
        %v4209 = vadd.f32 %v4091, %v4177
        %v4210 = vadd.f32 %v4092, %v4180
        %v4211 = vadd.f32 %v4093, %v4185
        %v4212 = vadd.f32 %v4094, %v4188
        %v4213 = vadd.f32 %v4095, %v4193
        %v4214 = vadd.f32 %v4096, %v4196
        %v4215 = vadd.f32 %v4097, %v4201
        %v4216 = vadd.f32 %v4098, %v4204
        %v4217 = vadd.f32 %v2963, %v4207
        %v4218 = vadd.f32 %v2964, %v4208
        %v4219 = vadd.f32 %v2965, %v4209
        %v4220 = vadd.f32 %v2966, %v4210
        %v4221 = vadd.f32 %v2967, %v4211
        %v4222 = vadd.f32 %v2968, %v4212
        %v4223 = vadd.f32 %v2969, %v4213
        %v4224 = vadd.f32 %v2970, %v4214
        %v4225 = vadd.f32 %v2971, %v4215
        %v4226 = vadd.f32 %v2972, %v4216
        %4227 = vst.msk [vmem:[%s410] sm:$0xff] %vm508, %v4217
        %4228 = vst.msk [vmem:[%s410 + $0x8] sm:$0xff] %vm508, %v4218
        %4229 = vst.msk [vmem:[%s410 + $0x10] sm:$0xff] %vm508, %v4219
        %4230 = vst.msk [vmem:[%s410 + $0x18] sm:$0xff] %vm508, %v4220
        %4231 = vst.msk [vmem:[%s410 + $0x20] sm:$0xff] %vm508, %v4221
        %4232 = vst.msk [vmem:[%s410 + $0x28] sm:$0xff] %vm508, %v4222
        %4233 = vst.msk [vmem:[%s410 + $0x30] sm:$0xff] %vm508, %v4223
        %4234 = vst.msk [vmem:[%s410 + $0x38] sm:$0xff] %vm508, %v4224
        %4235 = vst.msk [vmem:[%s410 + $0x40] sm:$0xff] %vm508, %v4225
        %4236 = vst.msk [vmem:[%s410 + $0x48] sm:$0xff] %vm508, %v4226
      $region44: #{up_block_forward.6} parent=35 // pred_fallthru
        _
      %v4237 = vld [vmem:[%s410] sm:$0xff]
      %v4238 = vld [vmem:[%s410 + $0x8] sm:$0xff]
      %v4239 = vld [vmem:[%s410 + $0x10] sm:$0xff]
      %v4240 = vld [vmem:[%s410 + $0x18] sm:$0xff]
      %v4241 = vld [vmem:[%s410 + $0x20] sm:$0xff]
      %v4242 = vld [vmem:[%s410 + $0x28] sm:$0xff]
      %v4243 = vld [vmem:[%s410 + $0x30] sm:$0xff]
      %v4244 = vld [vmem:[%s410 + $0x38] sm:$0xff]
      %v4245 = vld [vmem:[%s410 + $0x40] sm:$0xff]
      %v4246 = vld [vmem:[%s410 + $0x48] sm:$0xff]
      %v4247 = vlaneseq
      %v4248 = vshrl.u32 %v4247, 7
      %v4249 = vadd.s32 %v4248, 8
      %v4250 = vadd.s32 %v4248, 16
      %v4251 = vadd.s32 %v4248, 24
      %v4252 = vadd.s32 %v4248, 32
      %v4253 = vadd.s32 %v4248, 40
      %v4254 = vadd.s32 %v4248, 48
      %v4255 = vadd.s32 %v4248, 56
      %v4256 = vadd.s32 %v4248, 64
      %v4257 = vadd.s32 %v4248, 72
      %vm4258 = vcmp.lt.s32.totalorder %v4248, 0
      %v4259 = vsub.s32 0, %v4248
      %v4260 = vsel %vm4258, %v4259, %v4248
      %v4261 = vmul.u32.u64.compose %v4260, 3435973837
      %v4262 = vextract.low.u32 %v4261
      %v4263 = vextract.high.u32 %v4261
      %v4264 = vshrl.u32 %v4263, 3
      %v4265 = vmul.u32 %v4264, 10
      %v4266 = vsub.s32 %v4260, %v4265
      %v4267 = vsub.s32 0, %v4266
      %v4268 = vsel %vm4258, %v4267, %v4266
      %vm4269 = vcmp.lt.s32.totalorder %v4249, 0
      %v4270 = vsub.s32 0, %v4249
      %v4271 = vsel %vm4269, %v4270, %v4249
      %v4272 = vmul.u32.u64.compose %v4271, 3435973837
      %v4273 = vextract.low.u32 %v4272
      %v4274 = vextract.high.u32 %v4272
      %v4275 = vshrl.u32 %v4274, 3
      %v4276 = vmul.u32 %v4275, 10
      %v4277 = vsub.s32 %v4271, %v4276
      %v4278 = vsub.s32 0, %v4277
      %v4279 = vsel %vm4269, %v4278, %v4277
      %vm4280 = vcmp.lt.s32.totalorder %v4250, 0
      %v4281 = vsub.s32 0, %v4250
      %v4282 = vsel %vm4280, %v4281, %v4250
      %v4283 = vmul.u32.u64.compose %v4282, 3435973837
      %v4284 = vextract.low.u32 %v4283
      %v4285 = vextract.high.u32 %v4283
      %v4286 = vshrl.u32 %v4285, 3
      %v4287 = vmul.u32 %v4286, 10
      %v4288 = vsub.s32 %v4282, %v4287
      %v4289 = vsub.s32 0, %v4288
      %v4290 = vsel %vm4280, %v4289, %v4288
      %vm4291 = vcmp.lt.s32.totalorder %v4251, 0
      %v4292 = vsub.s32 0, %v4251
      %v4293 = vsel %vm4291, %v4292, %v4251
      %v4294 = vmul.u32.u64.compose %v4293, 3435973837
      %v4295 = vextract.low.u32 %v4294
      %v4296 = vextract.high.u32 %v4294
      %v4297 = vshrl.u32 %v4296, 3
      %v4298 = vmul.u32 %v4297, 10
      %v4299 = vsub.s32 %v4293, %v4298
      %v4300 = vsub.s32 0, %v4299
      %v4301 = vsel %vm4291, %v4300, %v4299
      %vm4302 = vcmp.lt.s32.totalorder %v4252, 0
      %v4303 = vsub.s32 0, %v4252
      %v4304 = vsel %vm4302, %v4303, %v4252
      %v4305 = vmul.u32.u64.compose %v4304, 3435973837
      %v4306 = vextract.low.u32 %v4305
      %v4307 = vextract.high.u32 %v4305
      %v4308 = vshrl.u32 %v4307, 3
      %v4309 = vmul.u32 %v4308, 10
      %v4310 = vsub.s32 %v4304, %v4309
      %v4311 = vsub.s32 0, %v4310
      %v4312 = vsel %vm4302, %v4311, %v4310
      %vm4313 = vcmp.lt.s32.totalorder %v4253, 0
      %v4314 = vsub.s32 0, %v4253
      %v4315 = vsel %vm4313, %v4314, %v4253
      %v4316 = vmul.u32.u64.compose %v4315, 3435973837
      %v4317 = vextract.low.u32 %v4316
      %v4318 = vextract.high.u32 %v4316
      %v4319 = vshrl.u32 %v4318, 3
      %v4320 = vmul.u32 %v4319, 10
      %v4321 = vsub.s32 %v4315, %v4320
      %v4322 = vsub.s32 0, %v4321
      %v4323 = vsel %vm4313, %v4322, %v4321
      %vm4324 = vcmp.lt.s32.totalorder %v4254, 0
      %v4325 = vsub.s32 0, %v4254
      %v4326 = vsel %vm4324, %v4325, %v4254
      %v4327 = vmul.u32.u64.compose %v4326, 3435973837
      %v4328 = vextract.low.u32 %v4327
      %v4329 = vextract.high.u32 %v4327
      %v4330 = vshrl.u32 %v4329, 3
      %v4331 = vmul.u32 %v4330, 10
      %v4332 = vsub.s32 %v4326, %v4331
      %v4333 = vsub.s32 0, %v4332
      %v4334 = vsel %vm4324, %v4333, %v4332
      %vm4335 = vcmp.lt.s32.totalorder %v4255, 0
      %v4336 = vsub.s32 0, %v4255
      %v4337 = vsel %vm4335, %v4336, %v4255
      %v4338 = vmul.u32.u64.compose %v4337, 3435973837
      %v4339 = vextract.low.u32 %v4338
      %v4340 = vextract.high.u32 %v4338
      %v4341 = vshrl.u32 %v4340, 3
      %v4342 = vmul.u32 %v4341, 10
      %v4343 = vsub.s32 %v4337, %v4342
      %v4344 = vsub.s32 0, %v4343
      %v4345 = vsel %vm4335, %v4344, %v4343
      %vm4346 = vcmp.lt.s32.totalorder %v4256, 0
      %v4347 = vsub.s32 0, %v4256
      %v4348 = vsel %vm4346, %v4347, %v4256
      %v4349 = vmul.u32.u64.compose %v4348, 3435973837
      %v4350 = vextract.low.u32 %v4349
      %v4351 = vextract.high.u32 %v4349
      %v4352 = vshrl.u32 %v4351, 3
      %v4353 = vmul.u32 %v4352, 10
      %v4354 = vsub.s32 %v4348, %v4353
      %v4355 = vsub.s32 0, %v4354
      %v4356 = vsel %vm4346, %v4355, %v4354
      %vm4357 = vcmp.lt.s32.totalorder %v4257, 0
      %v4358 = vsub.s32 0, %v4257
      %v4359 = vsel %vm4357, %v4358, %v4257
      %v4360 = vmul.u32.u64.compose %v4359, 3435973837
      %v4361 = vextract.low.u32 %v4360
      %v4362 = vextract.high.u32 %v4360
      %v4363 = vshrl.u32 %v4362, 3
      %v4364 = vmul.u32 %v4363, 10
      %v4365 = vsub.s32 %v4359, %v4364
      %v4366 = vsub.s32 0, %v4365
      %v4367 = vsel %vm4357, %v4366, %v4365
      %vm4368 = vcmp.ne.s32.totalorder %v4268, 0
      %vm4369 = vcmp.ne.s32.totalorder %v4279, 0
      %vm4370 = vcmp.ne.s32.totalorder %v4290, 0
      %vm4371 = vcmp.ne.s32.totalorder %v4301, 0
      %vm4372 = vcmp.ne.s32.totalorder %v4312, 0
      %vm4373 = vcmp.ne.s32.totalorder %v4323, 0
      %vm4374 = vcmp.ne.s32.totalorder %v4334, 0
      %vm4375 = vcmp.ne.s32.totalorder %v4345, 0
      %vm4376 = vcmp.ne.s32.totalorder %v4356, 0
      %vm4377 = vcmp.ne.s32.totalorder %v4367, 0
      %vm4378 = vcmp.lt.s32.totalorder %v4268, 0
      %vm4379 = vcmp.lt.s32.totalorder %v4279, 0
      %vm4380 = vcmp.lt.s32.totalorder %v4290, 0
      %vm4381 = vcmp.lt.s32.totalorder %v4301, 0
      %vm4382 = vcmp.lt.s32.totalorder %v4312, 0
      %vm4383 = vcmp.lt.s32.totalorder %v4323, 0
      %vm4384 = vcmp.lt.s32.totalorder %v4334, 0
      %vm4385 = vcmp.lt.s32.totalorder %v4345, 0
      %vm4386 = vcmp.lt.s32.totalorder %v4356, 0
      %vm4387 = vcmp.lt.s32.totalorder %v4367, 0
      %vm4388 = vmand %vm4378, %vm4368
      %vm4389 = vmand %vm4379, %vm4369
      %vm4390 = vmand %vm4380, %vm4370
      %vm4391 = vmand %vm4381, %vm4371
      %vm4392 = vmand %vm4382, %vm4372
      %vm4393 = vmand %vm4383, %vm4373
      %vm4394 = vmand %vm4384, %vm4374
      %vm4395 = vmand %vm4385, %vm4375
      %vm4396 = vmand %vm4386, %vm4376
      %vm4397 = vmand %vm4387, %vm4377
      %v4398 = vadd.s32 %v4268, 10
      %v4399 = vadd.s32 %v4279, 10
      %v4400 = vadd.s32 %v4290, 10
      %v4401 = vadd.s32 %v4301, 10
      %v4402 = vadd.s32 %v4312, 10
      %v4403 = vadd.s32 %v4323, 10
      %v4404 = vadd.s32 %v4334, 10
      %v4405 = vadd.s32 %v4345, 10
      %v4406 = vadd.s32 %v4356, 10
      %v4407 = vadd.s32 %v4367, 10
      %v4408 = vsel %vm4388, %v4398, %v4268
      %v4409 = vsel %vm4389, %v4399, %v4279
      %v4410 = vsel %vm4390, %v4400, %v4290
      %v4411 = vsel %vm4391, %v4401, %v4301
      %v4412 = vsel %vm4392, %v4402, %v4312
      %v4413 = vsel %vm4393, %v4403, %v4323
      %v4414 = vsel %vm4394, %v4404, %v4334
      %v4415 = vsel %vm4395, %v4405, %v4345
      %v4416 = vsel %vm4396, %v4406, %v4356
      %v4417 = vsel %vm4397, %v4407, %v4367
      %vm4418 = vcmp.lt.s32.totalorder %v4408, 8
      %vm4419 = vcmp.lt.s32.totalorder %v4409, 8
      %vm4420 = vcmp.lt.s32.totalorder %v4410, 8
      %vm4421 = vcmp.lt.s32.totalorder %v4411, 8
      %vm4422 = vcmp.lt.s32.totalorder %v4412, 8
      %vm4423 = vcmp.lt.s32.totalorder %v4413, 8
      %vm4424 = vcmp.lt.s32.totalorder %v4414, 8
      %vm4425 = vcmp.lt.s32.totalorder %v4415, 8
      %vm4426 = vcmp.lt.s32.totalorder %v4416, 8
      %vm4427 = vcmp.lt.s32.totalorder %v4417, 8
      %v4428 = vsel %vm4418, 1, 0
      %v4429 = vsel %vm4419, 1, 0
      %v4430 = vsel %vm4420, 1, 0
      %v4431 = vsel %vm4421, 1, 0
      %v4432 = vsel %vm4422, 1, 0
      %v4433 = vsel %vm4423, 1, 0
      %v4434 = vsel %vm4424, 1, 0
      %v4435 = vsel %vm4425, 1, 0
      %v4436 = vsel %vm4426, 1, 0
      %v4437 = vsel %vm4427, 1, 0
      %vm4438 = vcmp.eq.s32.totalorder %v4428, 1
      %vm4439 = vcmp.eq.s32.totalorder %v4429, 1
      %vm4440 = vcmp.eq.s32.totalorder %v4430, 1
      %vm4441 = vcmp.eq.s32.totalorder %v4431, 1
      %vm4442 = vcmp.eq.s32.totalorder %v4432, 1
      %vm4443 = vcmp.eq.s32.totalorder %v4433, 1
      %vm4444 = vcmp.eq.s32.totalorder %v4434, 1
      %vm4445 = vcmp.eq.s32.totalorder %v4435, 1
      %vm4446 = vcmp.eq.s32.totalorder %v4436, 1
      %vm4447 = vcmp.eq.s32.totalorder %v4437, 1
      %v4448 = vsel %vm4438, %v4237, 0.0
      %v4449 = vsel %vm4439, %v4238, 0.0
      %v4450 = vsel %vm4440, %v4239, 0.0
      %v4451 = vsel %vm4441, %v4240, 0.0
      %v4452 = vsel %vm4442, %v4241, 0.0
      %v4453 = vsel %vm4443, %v4242, 0.0
      %v4454 = vsel %vm4444, %v4243, 0.0
      %v4455 = vsel %vm4445, %v4244, 0.0
      %v4456 = vsel %vm4446, %v4245, 0.0
      %v4457 = vsel %vm4447, %v4246, 0.0
      %p4458 = scmp.eq.s32.totalorder %s23, 0
      // Predicated region
      $region45: #{up_block_forward.6} parent=35 // pred_check
        %p4459 = pneg %p4458
      $region46: #{up_block_forward.6} parent=35 // pred_check_branch
        %4461 = sbr.rel (%p4459) target = $region48
      $region47: #{up_block_forward.6} parent=35 // pred_region
        %4462 = vst.msk [vmem:[%s414] sm:$0xff] %vm508, 0.0
        %4463 = vst.msk [vmem:[%s418] sm:$0xff] %vm508, 0.0
      $region48: #{up_block_forward.6} parent=35 // pred_fallthru
        _
      %v4464 = vld [vmem:[%s414] sm:$0xff]
      %v4465 = vsel %vm508, %v4448, 0.0
      %v4466 = vsel %vm508, %v4449, 0.0
      %v4467 = vadd.f32 %v4465, %v4466
      %v4468 = vsel %vm508, %v4450, 0.0
      %v4469 = vadd.f32 %v4467, %v4468
      %v4470 = vsel %vm508, %v4451, 0.0
      %v4471 = vadd.f32 %v4469, %v4470
      %v4472 = vsel %vm508, %v4452, 0.0
      %v4473 = vadd.f32 %v4471, %v4472
      %v4474 = vsel %vm508, %v4453, 0.0
      %v4475 = vadd.f32 %v4473, %v4474
      %v4476 = vsel %vm508, %v4454, 0.0
      %v4477 = vadd.f32 %v4475, %v4476
      %v4478 = vsel %vm508, %v4455, 0.0
      %v4479 = vadd.f32 %v4477, %v4478
      %v4480 = vsel %vm508, %v4456, 0.0
      %v4481 = vadd.f32 %v4479, %v4480
      %v4482 = vsel %vm508, %v4457, 0.0
      %v4483 = vadd.f32 %v4481, %v4482
      %v4484 = vrot.slane %v4483, 4
      %v4485 = vadd.f32 %v4483, %v4484
      %v4486 = vrot.slane %v4485, 2
      %v4487 = vadd.f32 %v4485, %v4486
      %v4488 = vrot.slane %v4487, 1
      %v4489 = vadd.f32 %v4487, %v4488
      %v4490 = vadd.f32 %v4464, %v4489
      %4491 = vst.msk [vmem:[%s414] sm:$0xff] %vm508, %v4490
      %v4492 = vld [vmem:[%s418] sm:$0xff]
      %v4493 = vmul.f32 %v4448, %v4448
      %v4494 = vmul.f32 %v4449, %v4449
      %v4495 = vmul.f32 %v4450, %v4450
      %v4496 = vmul.f32 %v4451, %v4451
      %v4497 = vmul.f32 %v4452, %v4452
      %v4498 = vmul.f32 %v4453, %v4453
      %v4499 = vmul.f32 %v4454, %v4454
      %v4500 = vmul.f32 %v4455, %v4455
      %v4501 = vmul.f32 %v4456, %v4456
      %v4502 = vmul.f32 %v4457, %v4457
      %v4503 = vsel %vm508, %v4493, 0.0
      %v4504 = vsel %vm508, %v4494, 0.0
      %v4505 = vadd.f32 %v4503, %v4504
      %v4506 = vsel %vm508, %v4495, 0.0
      %v4507 = vadd.f32 %v4505, %v4506
      %v4508 = vsel %vm508, %v4496, 0.0
      %v4509 = vadd.f32 %v4507, %v4508
      %v4510 = vsel %vm508, %v4497, 0.0
      %v4511 = vadd.f32 %v4509, %v4510
      %v4512 = vsel %vm508, %v4498, 0.0
      %v4513 = vadd.f32 %v4511, %v4512
      %v4514 = vsel %vm508, %v4499, 0.0
      %v4515 = vadd.f32 %v4513, %v4514
      %v4516 = vsel %vm508, %v4500, 0.0
      %v4517 = vadd.f32 %v4515, %v4516
      %v4518 = vsel %vm508, %v4501, 0.0
      %v4519 = vadd.f32 %v4517, %v4518
      %v4520 = vsel %vm508, %v4502, 0.0
      %v4521 = vadd.f32 %v4519, %v4520
      %v4522 = vrot.slane %v4521, 4
      %v4523 = vadd.f32 %v4521, %v4522
      %v4524 = vrot.slane %v4523, 2
      %v4525 = vadd.f32 %v4523, %v4524
      %v4526 = vrot.slane %v4525, 1
      %v4527 = vadd.f32 %v4525, %v4526
      %v4528 = vadd.f32 %v4492, %v4527
      %4529 = vst.msk [vmem:[%s418] sm:$0xff] %vm508, %v4528
      %p4530 = scmp.lt.s32.totalorder %s22, 1
      %s4531 = scalar_select %p4530, %s22, 1
      %p4532 = scmp.lt.s32.totalorder %s23, 7
      %s4533 = scalar_select %p4532, %s23, 7
      %s4534 = smul.addr %s4533, 10
      %s4535 = smul.addr %s4531, 80
      %s4536 = sadd.s32 %s4534, %s4535
      %s4537 = smul.addr %s4536, 8
      %s4538 = scalar_lea.vmem %s4, %s4537
      %p4539 = scmp.lt.s32.totalorder %s22, 1
      %s4540 = scalar_select %p4539, %s22, 1
      %s4541 = smul.addr %s4540, 8
      %s4542 = scalar_lea.vmem %s5, %s4541
      %p4543 = scmp.lt.s32.totalorder %s22, 1
      %s4544 = scalar_select %p4543, %s22, 1
      %s4545 = smul.addr %s4544, 8
      %s4546 = scalar_lea.vmem %s6, %s4545
      // Predicated region
      $region49: #{up_block_forward.6} parent=35 // pred_check
        %p4547 = pneg %p167
      $region50: #{up_block_forward.6} parent=35 // pred_check_branch
        %4549 = sbr.rel (%p4547) target = $region52
      $region51: #{up_block_forward.6} parent=35 // pred_region
        _
      $region52: #{up_block_forward.6} parent=35 // pred_fallthru
        _
      // Predicated region
      $region53: #{up_block_forward.6} parent=35 // pred_check
        %p4550 = pneg %p193
      $region54: #{up_block_forward.6} parent=35 // pred_check_branch
        %4552 = sbr.rel (%p4550) target = $region56
      $region55: #{up_block_forward.6} parent=35 // pred_region
        _
      $region56: #{up_block_forward.6} parent=35 // pred_fallthru
        _
      // Predicated region
      $region57: #{up_block_forward.6} parent=35 // pred_check
        %p4553 = pneg %p219
      $region58: #{up_block_forward.6} parent=35 // pred_check_branch
        %4555 = sbr.rel (%p4553) target = $region60
      $region59: #{up_block_forward.6} parent=35 // pred_region
        _
      $region60: #{up_block_forward.6} parent=35 // pred_fallthru
        _
    $region36: #{up_block_forward.6} parent=5 // pred_fallthru
      _
    %p4556 = scmp.le.s32.totalorder 2, %s13
    // Predicated region
    $region61: #{up_block_forward.6} parent=5 // pred_check
      %p4557 = pneg %p4556
    $region62: #{up_block_forward.6} parent=5 // pred_check_branch
      %4559 = sbr.rel (%p4557) target = $region64
    $region63: #{up_block_forward.6} parent=5 // pred_region
      %s4560 = ssub.s32 %s13, 2
      // Predicated region
      $region65: #{up_block_forward.6} parent=63 // pred_check
        %p4561 = pneg %p173
      $region66: #{up_block_forward.6} parent=63 // pred_check_branch
        %4563 = sbr.rel (%p4561) target = $region68
      $region67: #{up_block_forward.6} parent=63 // pred_region
        %p4564 = scmp.lt.s32.totalorder %s24, 1
        %s4565 = scalar_select %p4564, %s24, 1
        %p4566 = scmp.lt.s32.totalorder %s25, 7
        %s4567 = scalar_select %p4566, %s25, 7
        %s4568 = smul.addr %s4567, 10
        %s4569 = smul.addr %s4565, 80
        %s4570 = sadd.s32 %s4568, %s4569
        %s4571 = smul.addr %s4570, 8
        %s4572 = scalar_lea.vmem %s4, %s4571
      $region68: #{up_block_forward.6} parent=63 // pred_fallthru
        _
      // Predicated region
      $region69: #{up_block_forward.6} parent=63 // pred_check
        %p4573 = pneg %p199
      $region70: #{up_block_forward.6} parent=63 // pred_check_branch
        %4575 = sbr.rel (%p4573) target = $region72
      $region71: #{up_block_forward.6} parent=63 // pred_region
        %p4576 = scmp.lt.s32.totalorder %s24, 1
        %s4577 = scalar_select %p4576, %s24, 1
        %s4578 = smul.addr %s4577, 8
        %s4579 = scalar_lea.vmem %s5, %s4578
      $region72: #{up_block_forward.6} parent=63 // pred_fallthru
        _
      // Predicated region
      $region73: #{up_block_forward.6} parent=63 // pred_check
        %p4580 = pneg %p225
      $region74: #{up_block_forward.6} parent=63 // pred_check_branch
        %4582 = sbr.rel (%p4580) target = $region76
      $region75: #{up_block_forward.6} parent=63 // pred_region
        %p4583 = scmp.lt.s32.totalorder %s24, 1
        %s4584 = scalar_select %p4583, %s24, 1
        %s4585 = smul.addr %s4584, 8
        %s4586 = scalar_lea.vmem %s6, %s4585
      $region76: #{up_block_forward.6} parent=63 // pred_fallthru
        _
    $region64: #{up_block_forward.6} parent=5 // pred_fallthru
      _
  $region6: #{up_block_forward.6} parent=0 // loop_footer
    %s17 = sadd.s32 1, %s13
  $region7: #{up_block_forward.6} parent=0 // loop_footer_branch
    %12 = sbr.rel target = $region3
  $region8: #{up_block_forward.6} parent=0 // loop_exit
    _

</llo_original>
